<compile_context>
chip_gen: v5e
topology: v5e:2x2
jax: 0.10.0
libtpu: 0.0.40
codegen_flags: <defaults>
</compile_context>

<pallas_src>
import functools

import jax
import jax.numpy as jnp
from jax import lax
from jax.experimental import pallas as pl
from jax.experimental.pallas import tpu as pltpu

CP = 128       # channel width all conv-trunk activations/weights are padded to
ROW_MULT = 8   # sublane padding granularity (the real (8,128) block constraint)


def _round_up(x, m):
    return (x + m - 1) // m * m


# ------------------------------------------------------------------
# Pallas kernels
# ------------------------------------------------------------------

def _matmul_bias_kernel(x_ref, w_ref, b_ref, o_ref, *, relu):
    # out = maybe_relu(x @ w + b)      (bias == folded-BN shift)
    acc = jnp.dot(x_ref[...], w_ref[...], preferred_element_type=jnp.float32)
    out = acc + b_ref[...]
    if relu:
        out = jnp.maximum(out, 0.0)
    o_ref[...] = out.astype(o_ref.dtype)


def _matmul_bias_res_kernel(x_ref, w_ref, b_ref, r_ref, o_ref, *, relu):
    # out = maybe_relu(x @ w + b + residual)
    acc = jnp.dot(x_ref[...], w_ref[...], preferred_element_type=jnp.float32)
    out = acc + b_ref[...] + r_ref[...].astype(jnp.float32)
    if relu:
        out = jnp.maximum(out, 0.0)
    o_ref[...] = out.astype(o_ref.dtype)


def _matmul_dual_kernel(x_ref, w1_ref, b1_ref, wd_ref, bd_ref, o1_ref, od_ref,
                        *, center_start):
    # Downsample BasicBlock entry: one im2col feeds BOTH
    #   o1 = relu(cols @ W1 + b1)                (3x3 conv, stride 2)
    #   od = cols[:, center_tap] @ Wd + bd       (1x1 downsample conv, stride 2)
    x = x_ref[...]
    acc1 = jnp.dot(x, w1_ref[...], preferred_element_type=jnp.float32)
    o1_ref[...] = jnp.maximum(acc1 + b1_ref[...], 0.0).astype(o1_ref.dtype)
    xc = x[:, center_start:center_start + CP]          # lane-aligned static slice
    accd = jnp.dot(xc, wd_ref[...], preferred_element_type=jnp.float32)
    od_ref[...] = (accd + bd_ref[...]).astype(od_ref.dtype)


def _window_max_kernel(p_ref, o_ref, *, n_win):
    # p_ref: (n_win, M, C), window axis leading -> each slice is a dense plane
    m = p_ref[0]
    for j in range(1, n_win):
        m = jnp.maximum(m, p_ref[j])
    o_ref[...] = m


def _pool_fc_head_kernel(feat_ref, l_ref, w1a_ref, w1b_ref, b1_ref,
                         w2_ref, b2_ref, w3_ref, b3_ref, w4_ref, b4_ref,
                         o_ref, *, hw):
    # Fused AdaptiveAvgPool2d((1,1)) + flatten(start_dim=0) + fc head:
    #   g = relu( (relu(p0@W1a + p1@W1b + b1) @ W3 + b3)
    #           + (relu(l @ W2 + b2)          @ W4 + b4) )
    # feat_ref: (rows, C) with rows >= 2*hw; rows 0..hw-1 = image 0, hw..2hw-1 = image 1.
    feat = feat_ref[...].astype(jnp.float32)
    row = lax.broadcasted_iota(jnp.int32, feat.shape, 0)
    inv = 1.0 / hw
    p0 = jnp.sum(jnp.where(row < hw, feat, 0.0), axis=0, keepdims=True) * inv
    p1 = jnp.sum(jnp.where((row >= hw) & (row < 2 * hw), feat, 0.0),
                 axis=0, keepdims=True) * inv
    rows_out = o_ref.shape[0]
    p0 = jnp.broadcast_to(p0, (rows_out, p0.shape[1]))
    p1 = jnp.broadcast_to(p1, (rows_out, p1.shape[1]))
    h1 = (jnp.dot(p0, w1a_ref[...], preferred_element_type=jnp.float32)
          + jnp.dot(p1, w1b_ref[...], preferred_element_type=jnp.float32)
          + b1_ref[...])
    h1 = jnp.maximum(h1, 0.0)
    h2 = jnp.dot(l_ref[...], w2_ref[...], preferred_element_type=jnp.float32) + b2_ref[...]
    h2 = jnp.maximum(h2, 0.0)
    what = jnp.dot(h1, w3_ref[...], preferred_element_type=jnp.float32) + b3_ref[...]
    where = jnp.dot(h2, w4_ref[...], preferred_element_type=jnp.float32) + b4_ref[...]
    o_ref[...] = jnp.maximum(what + where, 0.0)


# ------------------------------------------------------------------
# Pallas wrappers
# ------------------------------------------------------------------

def fused_linear(x, w, b, residual=None, relu=False, out_dtype=jnp.float32):
    """maybe_relu(x @ w + b [+ residual]) on the MXU.

    `w` (K, N) and `b` (1, N) are pre-padded (N multiple of 128) at parameter
    preparation time.  Only the row (M) axis may be padded here, and only when
    it is not already 8-aligned.
    """
    M, K = x.shape
    Kw, N = w.shape
    assert K == Kw and N % 128 == 0
    if M > 512:
        TM = 256                        # row-tiled path: bounded VMEM, both v7x cores
    else:
        TM = _round_up(M, ROW_MULT)     # single full block
    Mp = _round_up(M, TM)
    if Mp != M:
        x = jnp.pad(x, ((0, Mp - M), (0, 0)))
        if residual is not None:
            residual = jnp.pad(residual, ((0, Mp - M), (0, 0)))

    in_specs = [
        pl.BlockSpec((TM, K), lambda i: (i, 0)),
        pl.BlockSpec((K, N), lambda i: (0, 0)),
        pl.BlockSpec((1, N), lambda i: (0, 0)),
    ]
    args = [x, w, b]
    if residual is not None:
        in_specs.append(pl.BlockSpec((TM, N), lambda i: (i, 0)))
        args.append(residual)
        kernel = functools.partial(_matmul_bias_res_kernel, relu=relu)
    else:
        kernel = functools.partial(_matmul_bias_kernel, relu=relu)

    out = pl.pallas_call(
        kernel,
        out_shape=jax.ShapeDtypeStruct((Mp, N), out_dtype),
        grid=(Mp // TM,),
        in_specs=in_specs,
        out_specs=pl.BlockSpec((TM, N), lambda i: (i, 0)),
        compiler_params=pltpu.CompilerParams(dimension_semantics=("parallel",)),
    )(*args)
    return out[:M] if Mp != M else out


def _im2col(x, kh, kw, stride, pad, k_target):
    """NHWC -> (N*Ho*Wo, kh*kw*C) patches, right-padded to k_target columns."""
    N, H, W, C = x.shape
    xp = jnp.pad(x, ((0, 0), (pad, pad), (pad, pad), (0, 0)))
    Ho = (H + 2 * pad - kh) // stride + 1
    Wo = (W + 2 * pad - kw) // stride + 1
    cols = []
    for i in range(kh):
        for j in range(kw):
            cols.append(xp[:, i:i + stride * Ho:stride, j:j + stride * Wo:stride, :])
    cols = jnp.stack(cols, axis=3)                 # (N, Ho, Wo, kh*kw, C)
    cols = cols.reshape(N * Ho * Wo, kh * kw * C)
    if cols.shape[1] < k_target:                   # only the 7x7 stem (147 -> 256)
        cols = jnp.pad(cols, ((0, 0), (0, k_target - cols.shape[1])))
    return cols, (N, Ho, Wo)


def conv_bn(x, w, b, k, stride, pad, relu, residual=None):
    """Conv2d (no bias) + folded BN (+ residual) (+ ReLU) via the Pallas matmul.
    `w`/`b` arrive pre-folded, channel-padded to CP=128 and bf16."""
    cols, (N, Ho, Wo) = _im2col(x, k, k, stride, pad, w.shape[0])
    cout = w.shape[1]
    res = None if residual is None else residual.reshape(N * Ho * Wo, cout)
    y = fused_linear(cols, w, b, residual=res, relu=relu, out_dtype=x.dtype)
    return y.reshape(N, Ho, Wo, cout)


def conv_bn_dual(x, w1, b1, wd, bd, k, stride, pad):
    """Downsample-block entry: 3x3/stride conv (+BN+ReLU) AND the 1x1/stride
    downsample conv (+BN) in ONE pallas_call sharing one im2col."""
    cols, (N, Ho, Wo) = _im2col(x, k, k, stride, pad, w1.shape[0])
    M = N * Ho * Wo
    Mp = _round_up(M, ROW_MULT)
    if Mp != M:
        cols = jnp.pad(cols, ((0, Mp - M), (0, 0)))
    K = cols.shape[1]
    cout = w1.shape[1]
    center = (k * k // 2) * CP                      # center tap of the kxk patch
    out, ident = pl.pallas_call(
        functools.partial(_matmul_dual_kernel, center_start=center),
        out_shape=(jax.ShapeDtypeStruct((Mp, cout), x.dtype),
                   jax.ShapeDtypeStruct((Mp, cout), x.dtype)),
        grid=(1,),
        in_specs=[pl.BlockSpec((Mp, K), lambda i: (0, 0)),
                  pl.BlockSpec((K, cout), lambda i: (0, 0)),
                  pl.BlockSpec((1, cout), lambda i: (0, 0)),
                  pl.BlockSpec((CP, cout), lambda i: (0, 0)),
                  pl.BlockSpec((1, cout), lambda i: (0, 0))],
        out_specs=(pl.BlockSpec((Mp, cout), lambda i: (0, 0)),
                   pl.BlockSpec((Mp, cout), lambda i: (0, 0))),
    )(cols, w1, b1, wd, bd)
    if Mp != M:
        out, ident = out[:M], ident[:M]
    return out.reshape(N, Ho, Wo, cout), ident.reshape(N, Ho, Wo, cout)


def maxpool_3x3_s2_p1(x):
    """MaxPool2d(kernel=3, stride=2, padding=1), NHWC, window axis leading."""
    N, H, W, C = x.shape
    neg = float(jnp.finfo(x.dtype).min)
    xp = jnp.pad(x, ((0, 0), (1, 1), (1, 1), (0, 0)), constant_values=neg)
    Ho = (H + 2 - 3) // 2 + 1
    Wo = (W + 2 - 3) // 2 + 1
    wins = [xp[:, i:i + 2 * Ho:2, j:j + 2 * Wo:2, :]
            for i in range(3) for j in range(3)]
    p = jnp.stack(wins, axis=0).reshape(9, N * Ho * Wo, C)   # (KW, M, C)
    M = N * Ho * Wo
    Mp = _round_up(M, ROW_MULT)
    if Mp != M:
        p = jnp.pad(p, ((0, 0), (0, Mp - M), (0, 0)))
    out = pl.pallas_call(
        functools.partial(_window_max_kernel, n_win=9),
        out_shape=jax.ShapeDtypeStruct((Mp, C), x.dtype),
        grid=(1,),
        in_specs=[pl.BlockSpec((9, Mp, C), lambda i: (0, 0, 0))],
        out_specs=pl.BlockSpec((Mp, C), lambda i: (0, 0)),
    )(p)
    return out[:M].reshape(N, Ho, Wo, C)


def pool_fc_head(feat, l, params, n_out, hw):
    """Fused AdaptiveAvgPool2d((1,1)) + flatten + fc1..fc4 + relu(what+where)
    in ONE pallas_call.  `feat` is (B*k*hw, 128) with spatial rows grouped per
    image; B*k == 2 is required by fc1 (D_in == 2*128), as in the reference."""
    w1a, w1b, b1 = params["fc1"]
    w2, b2 = params["fc2"]
    w3, b3 = params["fc3"]
    w4, b4 = params["fc4"]
    assert feat.shape[0] == 2 * hw and feat.shape[1] == CP
    Fp = _round_up(feat.shape[0], ROW_MULT)
    if Fp != feat.shape[0]:
        feat = jnp.pad(feat, ((0, Fp - feat.shape[0]), (0, 0)))
    M = 8  # output rows padded to one f32 sublane tile; row 0 is the answer
    l_p = jnp.pad(l.astype(jnp.float32),
                  ((0, M - l.shape[0]), (0, w2.shape[0] - l.shape[1])))
    args = [feat, l_p, w1a, w1b, b1, w2, b2, w3, b3, w4, b4]
    in_specs = [pl.BlockSpec(a.shape, lambda i: (0, 0)) for a in args]
    out = pl.pallas_call(
        functools.partial(_pool_fc_head_kernel, hw=hw),
        out_shape=jax.ShapeDtypeStruct((M, w3.shape[1]), jnp.float32),
        grid=(1,),
        in_specs=in_specs,
        out_specs=pl.BlockSpec((M, w3.shape[1]), lambda i: (0, 0)),
    )(*args)
    return out[:l.shape[0], :n_out]


# ------------------------------------------------------------------
# Retina (data-dependent crop — plain-JAX glue, same semantics as reference)
# ------------------------------------------------------------------

def retina_foveate(x_nchw, l, k, s):
    """Replicates Retina.foveate for B == 1 (the only batch the reference
    supports, since denormalize() always returns a single coordinate row).
    NOTE on centering: exactly like the PyTorch code, the patch is sliced out
    of the size//2-zero-padded image at the raw denormalized start index — the
    padding offset is what centers the patch on the location."""
    B, C, H, W = x_nchw.shape
    assert B == 1, "reference Retina only supports B == 1"
    og = int(min(H, W) / 5)
    lx, ly = l[0, 0], l[0, 1]
    wc = jnp.floor(0.5 * (lx + 1.0) * W).astype(jnp.int32)   # column start
    hc = jnp.floor(0.5 * (ly + 1.0) * H).astype(jnp.int32)   # row start
    img = x_nchw[0]
    patches = []
    size = og
    for _ in range(k):
        pad = size // 2
        xp = jnp.pad(img, ((0, 0), (pad, pad), (pad, pad)))
        # "fix" logic: l in [-1,1] => starts are non-negative, only the
        # `to_* > H/W` overflow branches can trigger.
        from_x = jnp.where(hc + size > H, H - size, hc)
        from_y = jnp.where(wc + size > W, W - size, wc)
        patch = lax.dynamic_slice(xp, (0, from_x, from_y), (C, size, size))
        patches.append(patch)
        size = int(s * size)
    out = [patches[0]]
    for i in range(1, k):
        S = patches[i].shape[-1]
        idx = (jnp.arange(og) * S) // og          # nearest-neighbor resize
        out.append(patches[i][:, idx, :][:, :, idx])
    return jnp.stack(out, axis=0)                 # (k, C, og, og), NCHW


# ------------------------------------------------------------------
# Parameters: deterministic synthetic init + one-time prepare (fold/pad/cast)
# ------------------------------------------------------------------

def init_raw_params(key, h_g, h_l, c):
    keys = iter(jax.random.split(key, 64))

    def conv_w(cin, cout, kk):
        fan_in = kk * kk * cin
        # layout (kh*kw*cin, cout), i.e. PyTorch (Cout,Cin,kh,kw).transpose(2,3,1,0)
        return jax.random.normal(next(keys), (fan_in, cout), jnp.float32) / jnp.sqrt(fan_in)

    def bn(cc):
        gamma = jax.random.uniform(next(keys), (cc,), minval=0.5, maxval=1.5)
        beta = 0.1 * jax.random.normal(next(keys), (cc,))
        mean = 0.1 * jax.random.normal(next(keys), (cc,))
        var = jax.random.uniform(next(keys), (cc,), minval=0.5, maxval=1.5)
        scale = gamma / jnp.sqrt(var + 1e-5)
        shift = beta - mean * scale
        return scale.astype(jnp.float32), shift.astype(jnp.float32)

    def fc(din, dout):
        w = jax.random.normal(next(keys), (din, dout), jnp.float32) / jnp.sqrt(din)
        b = 0.1 * jax.random.normal(next(keys), (dout,))
        return w, b.astype(jnp.float32)

    def block(cin, cout, downsample):
        d = {"conv1": (conv_w(cin, cout, 3), bn(cout)),
             "conv2": (conv_w(cout, cout, 3), bn(cout))}
        if downsample:
            d["ds"] = (conv_w(cin, cout, 1), bn(cout))
        return d

    return {
        "conv1": (conv_w(c, 64, 7), bn(64)),
        "l1b0": block(64, 64, False),
        "l1b1": block(64, 64, False),
        "l2b0": block(64, 128, True),
        "l2b1": block(128, 128, False),
        "fc1": fc(2 * 128 * 1 * 1, h_g),
        "fc2": fc(2, h_l),
        "fc3": fc(h_g, h_g + h_l),
        "fc4": fc(h_l, h_g + h_l),
    }


def prepare_params(raw, h_g, h_l):
    """One-time: fold BN scale into weights, pad channels/N to 128, cast conv
    weights to bf16, split fc1 into its two per-image 128-row blocks.  Done
    outside the forward, so no per-call pad ops."""

    def conv_stem(entry):
        w, (scale, shift) = entry                      # (kh*kw*cin, cout)
        w = w * scale                                  # fold BN scale
        K, cout = w.shape
        Kp = _round_up(K, 128)
        w = jnp.pad(w, ((0, Kp - K), (0, CP - cout))).astype(jnp.bfloat16)
        b = jnp.pad(shift, (0, CP - cout)).reshape(1, CP).astype(jnp.float32)
        return w, b

    def conv_layer(entry, kk, cin):
        # input activations of these layers are channel-padded to CP, so pad
        # the per-tap input-channel dim (padded rows are zero => no-op).
        w, (scale, shift) = entry
        cout = w.shape[1]
        w = (w * scale).reshape(kk * kk, cin, cout)
        w = jnp.pad(w, ((0, 0), (0, CP - cin), (0, CP - cout)))
        w = w.reshape(kk * kk * CP, CP).astype(jnp.bfloat16)
        b = jnp.pad(shift, (0, CP - cout)).reshape(1, CP).astype(jnp.float32)
        return w, b

    def fc(entry, kp, np_):
        w, b = entry
        K, N = w.shape
        w = jnp.pad(w, ((0, kp - K), (0, np_ - N))).astype(jnp.float32)
        b = jnp.pad(b, (0, np_ - N)).reshape(1, np_).astype(jnp.float32)
        return w, b

    def fc1_split(entry):
        w, b = entry                                   # (256, h_g)
        n = w.shape[1]
        w1a = jnp.pad(w[:CP], ((0, 0), (0, CP - n))).astype(jnp.float32)
        w1b = jnp.pad(w[CP:], ((0, 0), (0, CP - n))).astype(jnp.float32)
        b1 = jnp.pad(b, (0, CP - n)).reshape(1, CP).astype(jnp.float32)
        return w1a, w1b, b1

    def block(bp, cin, cout):
        d = {"conv1": conv_layer(bp["conv1"], 3, cin),
             "conv2": conv_layer(bp["conv2"], 3, cout)}
        if "ds" in bp:
            d["ds"] = conv_layer(bp["ds"], 1, cin)
        return d

    return {
        "conv1": conv_stem(raw["conv1"]),
        "l1b0": block(raw["l1b0"], 64, 64),
        "l1b1": block(raw["l1b1"], 64, 64),
        "l2b0": block(raw["l2b0"], 64, 128),
        "l2b1": block(raw["l2b1"], 128, 128),
        "fc1": fc1_split(raw["fc1"]),
        "fc2": fc(raw["fc2"], 128, 128),
        "fc3": fc(raw["fc3"], 128, 128),
        "fc4": fc(raw["fc4"], 128, 128),
    }


# ------------------------------------------------------------------
# GlimpseNetwork forward
# ------------------------------------------------------------------

def basic_block(x, p, stride):
    w1, b1 = p["conv1"]
    w2, b2 = p["conv2"]
    if "ds" in p:
        wd, bd = p["ds"]
        # conv1 + downsample branch share one im2col / one pallas_call
        out, identity = conv_bn_dual(x, w1, b1, wd, bd, 3, stride, 1)
    else:
        out = conv_bn(x, w1, b1, 3, stride, 1, relu=True)
        identity = x
    # out = relu(bn2(conv2(out)) + identity)   (residual add fused in-kernel)
    return conv_bn(out, w2, b2, 3, 1, 1, relu=True, residual=identity)


def glimpse_network_forward(params, x, l_t_prev, *, k=2, s=2, h_g=64, h_l=32):
    # retina (what) + resnet18 stem / layer1 / layer2 (miniConv)
    phi = retina_foveate(x, l_t_prev, k, s)                       # (B*k, C, og, og) NCHW
    phi = jnp.transpose(phi, (0, 2, 3, 1)).astype(jnp.bfloat16)   # NHWC, bf16 MXU path
    w1, b1 = params["conv1"]
    h = conv_bn(phi, w1, b1, 7, 2, 3, relu=True)
    h = maxpool_3x3_s2_p1(h)
    h = basic_block(h, params["l1b0"], 1)
    h = basic_block(h, params["l1b1"], 1)
    h = basic_block(h, params["l2b0"], 2)
    h = basic_block(h, params["l2b1"], 1)

    # AdaptiveAvgPool2d((1,1)) + flatten(start_dim=0) + fc head, fused in one call
    N, Ho, Wo, C = h.shape
    feat = h.reshape(N * Ho * Wo, C)                              # rows grouped per image
    return pool_fc_head(feat, l_t_prev, params, h_g + h_l, hw=Ho * Wo)


if __name__ == "__main__":
    key = jax.random.PRNGKey(0)
    k_param, k_x, k_l = jax.random.split(key, 3)

    # small shapes consistent with the module: fc1 input = 2*128 forces B*k == 2
    B, C, H, W = 1, 3, 64, 64
    h_g, h_l, k_patches, scale = 64, 32, 2, 2

    raw = init_raw_params(k_param, h_g, h_l, C)
    params = prepare_params(raw, h_g, h_l)     # fold/pad/cast ONCE, outside forward

    x = jax.random.normal(k_x, (B, C, H, W), jnp.float32)
    l_t_prev = jax.random.uniform(k_l, (B, 2), jnp.float32, minval=-1.0, maxval=1.0)

    fwd = jax.jit(functools.partial(glimpse_network_forward,
                                    k=k_patches, s=scale, h_g=h_g, h_l=h_l))
    g_t = jax.block_until_ready(fwd(params, x, l_t_prev))
    assert g_t.shape == (B, h_g + h_l)
    assert bool(jnp.all(jnp.isfinite(g_t)))
    print("KERNEL_OK")
</pallas_src>

<mosaic_0001>
module attributes {stable_mosaic.version = 11 : i64} {
  func.func @_matmul_bias_kernel(%arg0: i32, %arg1: memref<72x256xbf16, #tpu.memory_space<vmem>>, %arg2: memref<256x128xbf16, #tpu.memory_space<vmem>>, %arg3: memref<1x128xf32, #tpu.memory_space<vmem>>, %arg4: memref<72x128xbf16, #tpu.memory_space<vmem>>) attributes {dimension_semantics = [#tpu.dimension_semantics<parallel>], iteration_bounds = array<i64: 1>, scalar_prefetch = 0 : i64, scratch_operands = 0 : i64, tpu.core_type = #tpu.core_type<tc>, window_params = [{transform_indices = @transform_0, window_bounds = array<i64: 72, 256>}, {pipeline_mode = #tpu.pipeline_mode<synchronous>, transform_indices = @transform_1, window_bounds = array<i64: 256, 128>}, {pipeline_mode = #tpu.pipeline_mode<synchronous>, transform_indices = @transform_2, window_bounds = array<i64: 1, 128>}, {transform_indices = @transform_3, window_bounds = array<i64: 72, 128>}]} {
    %c0 = arith.constant 0 : index
    %c0_0 = arith.constant 0 : index
    %0 = vector.load %arg1[%c0, %c0_0] : memref<72x256xbf16, #tpu.memory_space<vmem>>, vector<72x256xbf16>
    %c0_1 = arith.constant 0 : index
    %c0_2 = arith.constant 0 : index
    %1 = vector.load %arg2[%c0_1, %c0_2] : memref<256x128xbf16, #tpu.memory_space<vmem>>, vector<256x128xbf16>
    %cst = arith.constant dense<0.000000e+00> : vector<72x128xf32>
    %2 = tpu.matmul %0, %1, %cst {dimension_numbers = #tpu.dot_dimension_numbers<[1], [0], [0], [1], [0, 0, 1, 1], [], []>} : vector<72x256xbf16>, vector<256x128xbf16>, vector<72x128xf32> -> vector<72x128xf32>
    %c0_3 = arith.constant 0 : index
    %c0_4 = arith.constant 0 : index
    %3 = vector.load %arg3[%c0_3, %c0_4] : memref<1x128xf32, #tpu.memory_space<vmem>>, vector<1x128xf32>
    %4 = vector.broadcast %3 : vector<1x128xf32> to vector<72x128xf32>
    %5 = arith.addf %2, %4 : vector<72x128xf32>
    %cst_5 = arith.constant 0.000000e+00 : f32
    %6 = vector.broadcast %cst_5 : f32 to vector<72x128xf32>
    %7 = arith.maximumf %5, %6 : vector<72x128xf32>
    %8 = arith.truncf %7 : vector<72x128xf32> to vector<72x128xbf16>
    %c0_6 = arith.constant 0 : index
    %c0_7 = arith.constant 0 : index
    %9 = vector.load %arg4[%c0_6, %c0_7] : memref<72x128xbf16, #tpu.memory_space<vmem>>, vector<72x128xbf16>
    tpu.vector_store %arg4[%c0_6, %c0_7], %8 {strides = array<i32>} : memref<72x128xbf16, #tpu.memory_space<vmem>>, vector<72x128xbf16>,
    return
  }
  func.func @transform_0(%arg0: i32) -> (i32, i32) {
    %c0_i32 = arith.constant 0 : i32
    %c0_i32_0 = arith.constant 0 : i32
    return %arg0, %c0_i32 : i32, i32
  }
  func.func @transform_1(%arg0: i32) -> (i32, i32) {
    %c0_i32 = arith.constant 0 : i32
    %c0_i32_0 = arith.constant 0 : i32
    %c0_i32_1 = arith.constant 0 : i32
    return %c0_i32, %c0_i32_0 : i32, i32
  }
  func.func @transform_2(%arg0: i32) -> (i32, i32) {
    %c0_i32 = arith.constant 0 : i32
    %c0_i32_0 = arith.constant 0 : i32
    %c0_i32_1 = arith.constant 0 : i32
    return %c0_i32, %c0_i32_0 : i32, i32
  }
  func.func @transform_3(%arg0: i32) -> (i32, i32) {
    %c0_i32 = arith.constant 0 : i32
    %c0_i32_0 = arith.constant 0 : i32
    return %arg0, %c0_i32 : i32, i32
  }
}

module attributes {stable_mosaic.version = 11 : i64} {
  func.func @_window_max_kernel(%arg0: i32, %arg1: memref<9x24x128xbf16, #tpu.memory_space<vmem>>, %arg2: memref<24x128xbf16, #tpu.memory_space<vmem>>) attributes {dimension_semantics = [#tpu.dimension_semantics<arbitrary>], iteration_bounds = array<i64: 1>, scalar_prefetch = 0 : i64, scratch_operands = 0 : i64, tpu.core_type = #tpu.core_type<tc>, window_params = [{pipeline_mode = #tpu.pipeline_mode<synchronous>, transform_indices = @transform_0, window_bounds = array<i64: 9, 24, 128>}, {pipeline_mode = #tpu.pipeline_mode<synchronous>, transform_indices = @transform_1, window_bounds = array<i64: 24, 128>}]} {
    %c0 = arith.constant 0 : index
    %c0_0 = arith.constant 0 : index
    %c0_1 = arith.constant 0 : index
    %0 = vector.load %arg1[%c0, %c0_0, %c0_1] : memref<9x24x128xbf16, #tpu.memory_space<vmem>>, vector<1x24x128xbf16>
    %1 = vector.shape_cast %0 : vector<1x24x128xbf16> to vector<24x128xbf16>
    %c1 = arith.constant 1 : index
    %c0_2 = arith.constant 0 : index
    %c0_3 = arith.constant 0 : index
    %2 = vector.load %arg1[%c1, %c0_2, %c0_3] : memref<9x24x128xbf16, #tpu.memory_space<vmem>>, vector<1x24x128xbf16>
    %3 = vector.shape_cast %2 : vector<1x24x128xbf16> to vector<24x128xbf16>
    %4 = arith.maximumf %1, %3 : vector<24x128xbf16>
    %c2 = arith.constant 2 : index
    %c0_4 = arith.constant 0 : index
    %c0_5 = arith.constant 0 : index
    %5 = vector.load %arg1[%c2, %c0_4, %c0_5] : memref<9x24x128xbf16, #tpu.memory_space<vmem>>, vector<1x24x128xbf16>
    %6 = vector.shape_cast %5 : vector<1x24x128xbf16> to vector<24x128xbf16>
    %7 = arith.maximumf %4, %6 : vector<24x128xbf16>
    %c3 = arith.constant 3 : index
    %c0_6 = arith.constant 0 : index
    %c0_7 = arith.constant 0 : index
    %8 = vector.load %arg1[%c3, %c0_6, %c0_7] : memref<9x24x128xbf16, #tpu.memory_space<vmem>>, vector<1x24x128xbf16>
    %9 = vector.shape_cast %8 : vector<1x24x128xbf16> to vector<24x128xbf16>
    %10 = arith.maximumf %7, %9 : vector<24x128xbf16>
    %c4 = arith.constant 4 : index
    %c0_8 = arith.constant 0 : index
    %c0_9 = arith.constant 0 : index
    %11 = vector.load %arg1[%c4, %c0_8, %c0_9] : memref<9x24x128xbf16, #tpu.memory_space<vmem>>, vector<1x24x128xbf16>
    %12 = vector.shape_cast %11 : vector<1x24x128xbf16> to vector<24x128xbf16>
    %13 = arith.maximumf %10, %12 : vector<24x128xbf16>
    %c5 = arith.constant 5 : index
    %c0_10 = arith.constant 0 : index
    %c0_11 = arith.constant 0 : index
    %14 = vector.load %arg1[%c5, %c0_10, %c0_11] : memref<9x24x128xbf16, #tpu.memory_space<vmem>>, vector<1x24x128xbf16>
    %15 = vector.shape_cast %14 : vector<1x24x128xbf16> to vector<24x128xbf16>
    %16 = arith.maximumf %13, %15 : vector<24x128xbf16>
    %c6 = arith.constant 6 : index
    %c0_12 = arith.constant 0 : index
    %c0_13 = arith.constant 0 : index
    %17 = vector.load %arg1[%c6, %c0_12, %c0_13] : memref<9x24x128xbf16, #tpu.memory_space<vmem>>, vector<1x24x128xbf16>
    %18 = vector.shape_cast %17 : vector<1x24x128xbf16> to vector<24x128xbf16>
    %19 = arith.maximumf %16, %18 : vector<24x128xbf16>
    %c7 = arith.constant 7 : index
    %c0_14 = arith.constant 0 : index
    %c0_15 = arith.constant 0 : index
    %20 = vector.load %arg1[%c7, %c0_14, %c0_15] : memref<9x24x128xbf16, #tpu.memory_space<vmem>>, vector<1x24x128xbf16>
    %21 = vector.shape_cast %20 : vector<1x24x128xbf16> to vector<24x128xbf16>
    %22 = arith.maximumf %19, %21 : vector<24x128xbf16>
    %c8 = arith.constant 8 : index
    %c0_16 = arith.constant 0 : index
    %c0_17 = arith.constant 0 : index
    %23 = vector.load %arg1[%c8, %c0_16, %c0_17] : memref<9x24x128xbf16, #tpu.memory_space<vmem>>, vector<1x24x128xbf16>
    %24 = vector.shape_cast %23 : vector<1x24x128xbf16> to vector<24x128xbf16>
    %25 = arith.maximumf %22, %24 : vector<24x128xbf16>
    %c0_18 = arith.constant 0 : index
    %c0_19 = arith.constant 0 : index
    %26 = vector.load %arg2[%c0_18, %c0_19] : memref<24x128xbf16, #tpu.memory_space<vmem>>, vector<24x128xbf16>
    tpu.vector_store %arg2[%c0_18, %c0_19], %25 {strides = array<i32>} : memref<24x128xbf16, #tpu.memory_space<vmem>>, vector<24x128xbf16>,
    return
  }
  func.func @transform_0(%arg0: i32) -> (i32, i32, i32) {
    %c0_i32 = arith.constant 0 : i32
    %c0_i32_0 = arith.constant 0 : i32
    %c0_i32_1 = arith.constant 0 : i32
    %c0_i32_2 = arith.constant 0 : i32
    return %c0_i32, %c0_i32_0, %c0_i32_1 : i32, i32, i32
  }
  func.func @transform_1(%arg0: i32) -> (i32, i32) {
    %c0_i32 = arith.constant 0 : i32
    %c0_i32_0 = arith.constant 0 : i32
    %c0_i32_1 = arith.constant 0 : i32
    return %c0_i32, %c0_i32_0 : i32, i32
  }
}

module attributes {stable_mosaic.version = 11 : i64} {
  func.func @_matmul_bias_kernel(%arg0: i32, %arg1: memref<24x1152xbf16, #tpu.memory_space<vmem>>, %arg2: memref<1152x128xbf16, #tpu.memory_space<vmem>>, %arg3: memref<1x128xf32, #tpu.memory_space<vmem>>, %arg4: memref<24x128xbf16, #tpu.memory_space<vmem>>) attributes {dimension_semantics = [#tpu.dimension_semantics<parallel>], iteration_bounds = array<i64: 1>, scalar_prefetch = 0 : i64, scratch_operands = 0 : i64, tpu.core_type = #tpu.core_type<tc>, window_params = [{transform_indices = @transform_0, window_bounds = array<i64: 24, 1152>}, {pipeline_mode = #tpu.pipeline_mode<synchronous>, transform_indices = @transform_1, window_bounds = array<i64: 1152, 128>}, {pipeline_mode = #tpu.pipeline_mode<synchronous>, transform_indices = @transform_2, window_bounds = array<i64: 1, 128>}, {transform_indices = @transform_3, window_bounds = array<i64: 24, 128>}]} {
    %c0 = arith.constant 0 : index
    %c0_0 = arith.constant 0 : index
    %0 = vector.load %arg1[%c0, %c0_0] : memref<24x1152xbf16, #tpu.memory_space<vmem>>, vector<24x1152xbf16>
    %c0_1 = arith.constant 0 : index
    %c0_2 = arith.constant 0 : index
    %1 = vector.load %arg2[%c0_1, %c0_2] : memref<1152x128xbf16, #tpu.memory_space<vmem>>, vector<1152x128xbf16>
    %cst = arith.constant dense<0.000000e+00> : vector<24x128xf32>
    %2 = tpu.matmul %0, %1, %cst {dimension_numbers = #tpu.dot_dimension_numbers<[1], [0], [0], [1], [0, 0, 1, 1], [], []>} : vector<24x1152xbf16>, vector<1152x128xbf16>, vector<24x128xf32> -> vector<24x128xf32>
    %c0_3 = arith.constant 0 : index
    %c0_4 = arith.constant 0 : index
    %3 = vector.load %arg3[%c0_3, %c0_4] : memref<1x128xf32, #tpu.memory_space<vmem>>, vector<1x128xf32>
    %4 = vector.broadcast %3 : vector<1x128xf32> to vector<24x128xf32>
    %5 = arith.addf %2, %4 : vector<24x128xf32>
    %cst_5 = arith.constant 0.000000e+00 : f32
    %6 = vector.broadcast %cst_5 : f32 to vector<24x128xf32>
    %7 = arith.maximumf %5, %6 : vector<24x128xf32>
    %8 = arith.truncf %7 : vector<24x128xf32> to vector<24x128xbf16>
    %c0_6 = arith.constant 0 : index
    %c0_7 = arith.constant 0 : index
    %9 = vector.load %arg4[%c0_6, %c0_7] : memref<24x128xbf16, #tpu.memory_space<vmem>>, vector<24x128xbf16>
    tpu.vector_store %arg4[%c0_6, %c0_7], %8 {strides = array<i32>} : memref<24x128xbf16, #tpu.memory_space<vmem>>, vector<24x128xbf16>,
    return
  }
  func.func @transform_0(%arg0: i32) -> (i32, i32) {
    %c0_i32 = arith.constant 0 : i32
    %c0_i32_0 = arith.constant 0 : i32
    return %arg0, %c0_i32 : i32, i32
  }
  func.func @transform_1(%arg0: i32) -> (i32, i32) {
    %c0_i32 = arith.constant 0 : i32
    %c0_i32_0 = arith.constant 0 : i32
    %c0_i32_1 = arith.constant 0 : i32
    return %c0_i32, %c0_i32_0 : i32, i32
  }
  func.func @transform_2(%arg0: i32) -> (i32, i32) {
    %c0_i32 = arith.constant 0 : i32
    %c0_i32_0 = arith.constant 0 : i32
    %c0_i32_1 = arith.constant 0 : i32
    return %c0_i32, %c0_i32_0 : i32, i32
  }
  func.func @transform_3(%arg0: i32) -> (i32, i32) {
    %c0_i32 = arith.constant 0 : i32
    %c0_i32_0 = arith.constant 0 : i32
    return %arg0, %c0_i32 : i32, i32
  }
}

module attributes {stable_mosaic.version = 11 : i64} {
  func.func @_matmul_bias_res_kernel(%arg0: i32, %arg1: memref<24x1152xbf16, #tpu.memory_space<vmem>>, %arg2: memref<1152x128xbf16, #tpu.memory_space<vmem>>, %arg3: memref<1x128xf32, #tpu.memory_space<vmem>>, %arg4: memref<24x128xbf16, #tpu.memory_space<vmem>>, %arg5: memref<24x128xbf16, #tpu.memory_space<vmem>>) attributes {dimension_semantics = [#tpu.dimension_semantics<parallel>], iteration_bounds = array<i64: 1>, scalar_prefetch = 0 : i64, scratch_operands = 0 : i64, tpu.core_type = #tpu.core_type<tc>, window_params = [{transform_indices = @transform_0, window_bounds = array<i64: 24, 1152>}, {pipeline_mode = #tpu.pipeline_mode<synchronous>, transform_indices = @transform_1, window_bounds = array<i64: 1152, 128>}, {pipeline_mode = #tpu.pipeline_mode<synchronous>, transform_indices = @transform_2, window_bounds = array<i64: 1, 128>}, {transform_indices = @transform_3, window_bounds = array<i64: 24, 128>}, {transform_indices = @transform_4, window_bounds = array<i64: 24, 128>}]} {
    %c0 = arith.constant 0 : index
    %c0_0 = arith.constant 0 : index
    %0 = vector.load %arg1[%c0, %c0_0] : memref<24x1152xbf16, #tpu.memory_space<vmem>>, vector<24x1152xbf16>
    %c0_1 = arith.constant 0 : index
    %c0_2 = arith.constant 0 : index
    %1 = vector.load %arg2[%c0_1, %c0_2] : memref<1152x128xbf16, #tpu.memory_space<vmem>>, vector<1152x128xbf16>
    %cst = arith.constant dense<0.000000e+00> : vector<24x128xf32>
    %2 = tpu.matmul %0, %1, %cst {dimension_numbers = #tpu.dot_dimension_numbers<[1], [0], [0], [1], [0, 0, 1, 1], [], []>} : vector<24x1152xbf16>, vector<1152x128xbf16>, vector<24x128xf32> -> vector<24x128xf32>
    %c0_3 = arith.constant 0 : index
    %c0_4 = arith.constant 0 : index
    %3 = vector.load %arg3[%c0_3, %c0_4] : memref<1x128xf32, #tpu.memory_space<vmem>>, vector<1x128xf32>
    %4 = vector.broadcast %3 : vector<1x128xf32> to vector<24x128xf32>
    %5 = arith.addf %2, %4 : vector<24x128xf32>
    %c0_5 = arith.constant 0 : index
    %c0_6 = arith.constant 0 : index
    %6 = vector.load %arg4[%c0_5, %c0_6] : memref<24x128xbf16, #tpu.memory_space<vmem>>, vector<24x128xbf16>
    %7 = arith.extf %6 : vector<24x128xbf16> to vector<24x128xf32>
    %8 = arith.addf %5, %7 : vector<24x128xf32>
    %cst_7 = arith.constant 0.000000e+00 : f32
    %9 = vector.broadcast %cst_7 : f32 to vector<24x128xf32>
    %10 = arith.maximumf %8, %9 : vector<24x128xf32>
    %11 = arith.truncf %10 : vector<24x128xf32> to vector<24x128xbf16>
    %c0_8 = arith.constant 0 : index
    %c0_9 = arith.constant 0 : index
    %12 = vector.load %arg5[%c0_8, %c0_9] : memref<24x128xbf16, #tpu.memory_space<vmem>>, vector<24x128xbf16>
    tpu.vector_store %arg5[%c0_8, %c0_9], %11 {strides = array<i32>} : memref<24x128xbf16, #tpu.memory_space<vmem>>, vector<24x128xbf16>,
    return
  }
  func.func @transform_0(%arg0: i32) -> (i32, i32) {
    %c0_i32 = arith.constant 0 : i32
    %c0_i32_0 = arith.constant 0 : i32
    return %arg0, %c0_i32 : i32, i32
  }
  func.func @transform_1(%arg0: i32) -> (i32, i32) {
    %c0_i32 = arith.constant 0 : i32
    %c0_i32_0 = arith.constant 0 : i32
    %c0_i32_1 = arith.constant 0 : i32
    return %c0_i32, %c0_i32_0 : i32, i32
  }
  func.func @transform_2(%arg0: i32) -> (i32, i32) {
    %c0_i32 = arith.constant 0 : i32
    %c0_i32_0 = arith.constant 0 : i32
    %c0_i32_1 = arith.constant 0 : i32
    return %c0_i32, %c0_i32_0 : i32, i32
  }
  func.func @transform_3(%arg0: i32) -> (i32, i32) {
    %c0_i32 = arith.constant 0 : i32
    %c0_i32_0 = arith.constant 0 : i32
    return %arg0, %c0_i32 : i32, i32
  }
  func.func @transform_4(%arg0: i32) -> (i32, i32) {
    %c0_i32 = arith.constant 0 : i32
    %c0_i32_0 = arith.constant 0 : i32
    return %arg0, %c0_i32 : i32, i32
  }
}

module attributes {stable_mosaic.version = 11 : i64} {
  func.func @_matmul_dual_kernel(%arg0: i32, %arg1: memref<8x1152xbf16, #tpu.memory_space<vmem>>, %arg2: memref<1152x128xbf16, #tpu.memory_space<vmem>>, %arg3: memref<1x128xf32, #tpu.memory_space<vmem>>, %arg4: memref<128x128xbf16, #tpu.memory_space<vmem>>, %arg5: memref<1x128xf32, #tpu.memory_space<vmem>>, %arg6: memref<8x128xbf16, #tpu.memory_space<vmem>>, %arg7: memref<8x128xbf16, #tpu.memory_space<vmem>>) attributes {dimension_semantics = [#tpu.dimension_semantics<arbitrary>], iteration_bounds = array<i64: 1>, scalar_prefetch = 0 : i64, scratch_operands = 0 : i64, tpu.core_type = #tpu.core_type<tc>, window_params = [{pipeline_mode = #tpu.pipeline_mode<synchronous>, transform_indices = @transform_0, window_bounds = array<i64: 8, 1152>}, {pipeline_mode = #tpu.pipeline_mode<synchronous>, transform_indices = @transform_1, window_bounds = array<i64: 1152, 128>}, {pipeline_mode = #tpu.pipeline_mode<synchronous>, transform_indices = @transform_2, window_bounds = array<i64: 1, 128>}, {pipeline_mode = #tpu.pipeline_mode<synchronous>, transform_indices = @transform_3, window_bounds = array<i64: 128, 128>}, {pipeline_mode = #tpu.pipeline_mode<synchronous>, transform_indices = @transform_4, window_bounds = array<i64: 1, 128>}, {pipeline_mode = #tpu.pipeline_mode<synchronous>, transform_indices = @transform_5, window_bounds = array<i64: 8, 128>}, {pipeline_mode = #tpu.pipeline_mode<synchronous>, transform_indices = @transform_6, window_bounds = array<i64: 8, 128>}]} {
    %c0 = arith.constant 0 : index
    %c0_0 = arith.constant 0 : index
    %0 = vector.load %arg1[%c0, %c0_0] : memref<8x1152xbf16, #tpu.memory_space<vmem>>, vector<8x1152xbf16>
    %c0_1 = arith.constant 0 : index
    %c0_2 = arith.constant 0 : index
    %1 = vector.load %arg2[%c0_1, %c0_2] : memref<1152x128xbf16, #tpu.memory_space<vmem>>, vector<1152x128xbf16>
    %cst = arith.constant dense<0.000000e+00> : vector<8x128xf32>
    %2 = tpu.matmul %0, %1, %cst {dimension_numbers = #tpu.dot_dimension_numbers<[1], [0], [0], [1], [0, 0, 1, 1], [], []>} : vector<8x1152xbf16>, vector<1152x128xbf16>, vector<8x128xf32> -> vector<8x128xf32>
    %c0_3 = arith.constant 0 : index
    %c0_4 = arith.constant 0 : index
    %3 = vector.load %arg3[%c0_3, %c0_4] : memref<1x128xf32, #tpu.memory_space<vmem>>, vector<1x128xf32>
    %4 = vector.broadcast %3 : vector<1x128xf32> to vector<8x128xf32>
    %5 = arith.addf %2, %4 : vector<8x128xf32>
    %cst_5 = arith.constant 0.000000e+00 : f32
    %6 = vector.broadcast %cst_5 : f32 to vector<8x128xf32>
    %7 = arith.maximumf %5, %6 : vector<8x128xf32>
    %8 = arith.truncf %7 : vector<8x128xf32> to vector<8x128xbf16>
    %c0_6 = arith.constant 0 : index
    %c0_7 = arith.constant 0 : index
    %9 = vector.load %arg6[%c0_6, %c0_7] : memref<8x128xbf16, #tpu.memory_space<vmem>>, vector<8x128xbf16>
    tpu.vector_store %arg6[%c0_6, %c0_7], %8 {strides = array<i32>} : memref<8x128xbf16, #tpu.memory_space<vmem>>, vector<8x128xbf16>,
    %10 = vector.extract_strided_slice %0 {offsets = [0, 512], sizes = [8, 128], strides = [1, 1]} : vector<8x1152xbf16> to vector<8x128xbf16>
    %c0_8 = arith.constant 0 : index
    %c0_9 = arith.constant 0 : index
    %11 = vector.load %arg4[%c0_8, %c0_9] : memref<128x128xbf16, #tpu.memory_space<vmem>>, vector<128x128xbf16>
    %cst_10 = arith.constant dense<0.000000e+00> : vector<8x128xf32>
    %12 = tpu.matmul %10, %11, %cst_10 {dimension_numbers = #tpu.dot_dimension_numbers<[1], [0], [0], [1], [0, 0, 1, 1], [], []>} : vector<8x128xbf16>, vector<128x128xbf16>, vector<8x128xf32> -> vector<8x128xf32>
    %c0_11 = arith.constant 0 : index
    %c0_12 = arith.constant 0 : index
    %13 = vector.load %arg5[%c0_11, %c0_12] : memref<1x128xf32, #tpu.memory_space<vmem>>, vector<1x128xf32>
    %14 = vector.broadcast %13 : vector<1x128xf32> to vector<8x128xf32>
    %15 = arith.addf %12, %14 : vector<8x128xf32>
    %16 = arith.truncf %15 : vector<8x128xf32> to vector<8x128xbf16>
    %c0_13 = arith.constant 0 : index
    %c0_14 = arith.constant 0 : index
    %17 = vector.load %arg7[%c0_13, %c0_14] : memref<8x128xbf16, #tpu.memory_space<vmem>>, vector<8x128xbf16>
    tpu.vector_store %arg7[%c0_13, %c0_14], %16 {strides = array<i32>} : memref<8x128xbf16, #tpu.memory_space<vmem>>, vector<8x128xbf16>,
    return
  }
  func.func @transform_0(%arg0: i32) -> (i32, i32) {
    %c0_i32 = arith.constant 0 : i32
    %c0_i32_0 = arith.constant 0 : i32
    %c0_i32_1 = arith.constant 0 : i32
    return %c0_i32, %c0_i32_0 : i32, i32
  }
  func.func @transform_1(%arg0: i32) -> (i32, i32) {
    %c0_i32 = arith.constant 0 : i32
    %c0_i32_0 = arith.constant 0 : i32
    %c0_i32_1 = arith.constant 0 : i32
    return %c0_i32, %c0_i32_0 : i32, i32
  }
  func.func @transform_2(%arg0: i32) -> (i32, i32) {
    %c0_i32 = arith.constant 0 : i32
    %c0_i32_0 = arith.constant 0 : i32
    %c0_i32_1 = arith.constant 0 : i32
    return %c0_i32, %c0_i32_0 : i32, i32
  }
  func.func @transform_3(%arg0: i32) -> (i32, i32) {
    %c0_i32 = arith.constant 0 : i32
    %c0_i32_0 = arith.constant 0 : i32
    %c0_i32_1 = arith.constant 0 : i32
    return %c0_i32, %c0_i32_0 : i32, i32
  }
  func.func @transform_4(%arg0: i32) -> (i32, i32) {
    %c0_i32 = arith.constant 0 : i32
    %c0_i32_0 = arith.constant 0 : i32
    %c0_i32_1 = arith.constant 0 : i32
    return %c0_i32, %c0_i32_0 : i32, i32
  }
  func.func @transform_5(%arg0: i32) -> (i32, i32) {
    %c0_i32 = arith.constant 0 : i32
    %c0_i32_0 = arith.constant 0 : i32
    %c0_i32_1 = arith.constant 0 : i32
    return %c0_i32, %c0_i32_0 : i32, i32
  }
  func.func @transform_6(%arg0: i32) -> (i32, i32) {
    %c0_i32 = arith.constant 0 : i32
    %c0_i32_0 = arith.constant 0 : i32
    %c0_i32_1 = arith.constant 0 : i32
    return %c0_i32, %c0_i32_0 : i32, i32
  }
}

module attributes {stable_mosaic.version = 11 : i64} {
  func.func @_matmul_bias_res_kernel(%arg0: i32, %arg1: memref<8x1152xbf16, #tpu.memory_space<vmem>>, %arg2: memref<1152x128xbf16, #tpu.memory_space<vmem>>, %arg3: memref<1x128xf32, #tpu.memory_space<vmem>>, %arg4: memref<8x128xbf16, #tpu.memory_space<vmem>>, %arg5: memref<8x128xbf16, #tpu.memory_space<vmem>>) attributes {dimension_semantics = [#tpu.dimension_semantics<parallel>], iteration_bounds = array<i64: 1>, scalar_prefetch = 0 : i64, scratch_operands = 0 : i64, tpu.core_type = #tpu.core_type<tc>, window_params = [{transform_indices = @transform_0, window_bounds = array<i64: 8, 1152>}, {pipeline_mode = #tpu.pipeline_mode<synchronous>, transform_indices = @transform_1, window_bounds = array<i64: 1152, 128>}, {pipeline_mode = #tpu.pipeline_mode<synchronous>, transform_indices = @transform_2, window_bounds = array<i64: 1, 128>}, {transform_indices = @transform_3, window_bounds = array<i64: 8, 128>}, {transform_indices = @transform_4, window_bounds = array<i64: 8, 128>}]} {
    %c0 = arith.constant 0 : index
    %c0_0 = arith.constant 0 : index
    %0 = vector.load %arg1[%c0, %c0_0] : memref<8x1152xbf16, #tpu.memory_space<vmem>>, vector<8x1152xbf16>
    %c0_1 = arith.constant 0 : index
    %c0_2 = arith.constant 0 : index
    %1 = vector.load %arg2[%c0_1, %c0_2] : memref<1152x128xbf16, #tpu.memory_space<vmem>>, vector<1152x128xbf16>
    %cst = arith.constant dense<0.000000e+00> : vector<8x128xf32>
    %2 = tpu.matmul %0, %1, %cst {dimension_numbers = #tpu.dot_dimension_numbers<[1], [0], [0], [1], [0, 0, 1, 1], [], []>} : vector<8x1152xbf16>, vector<1152x128xbf16>, vector<8x128xf32> -> vector<8x128xf32>
    %c0_3 = arith.constant 0 : index
    %c0_4 = arith.constant 0 : index
    %3 = vector.load %arg3[%c0_3, %c0_4] : memref<1x128xf32, #tpu.memory_space<vmem>>, vector<1x128xf32>
    %4 = vector.broadcast %3 : vector<1x128xf32> to vector<8x128xf32>
    %5 = arith.addf %2, %4 : vector<8x128xf32>
    %c0_5 = arith.constant 0 : index
    %c0_6 = arith.constant 0 : index
    %6 = vector.load %arg4[%c0_5, %c0_6] : memref<8x128xbf16, #tpu.memory_space<vmem>>, vector<8x128xbf16>
    %7 = arith.extf %6 : vector<8x128xbf16> to vector<8x128xf32>
    %8 = arith.addf %5, %7 : vector<8x128xf32>
    %cst_7 = arith.constant 0.000000e+00 : f32
    %9 = vector.broadcast %cst_7 : f32 to vector<8x128xf32>
    %10 = arith.maximumf %8, %9 : vector<8x128xf32>
    %11 = arith.truncf %10 : vector<8x128xf32> to vector<8x128xbf16>
    %c0_8 = arith.constant 0 : index
    %c0_9 = arith.constant 0 : index
    %12 = vector.load %arg5[%c0_8, %c0_9] : memref<8x128xbf16, #tpu.memory_space<vmem>>, vector<8x128xbf16>
    tpu.vector_store %arg5[%c0_8, %c0_9], %11 {strides = array<i32>} : memref<8x128xbf16, #tpu.memory_space<vmem>>, vector<8x128xbf16>,
    return
  }
  func.func @transform_0(%arg0: i32) -> (i32, i32) {
    %c0_i32 = arith.constant 0 : i32
    %c0_i32_0 = arith.constant 0 : i32
    return %arg0, %c0_i32 : i32, i32
  }
  func.func @transform_1(%arg0: i32) -> (i32, i32) {
    %c0_i32 = arith.constant 0 : i32
    %c0_i32_0 = arith.constant 0 : i32
    %c0_i32_1 = arith.constant 0 : i32
    return %c0_i32, %c0_i32_0 : i32, i32
  }
  func.func @transform_2(%arg0: i32) -> (i32, i32) {
    %c0_i32 = arith.constant 0 : i32
    %c0_i32_0 = arith.constant 0 : i32
    %c0_i32_1 = arith.constant 0 : i32
    return %c0_i32, %c0_i32_0 : i32, i32
  }
  func.func @transform_3(%arg0: i32) -> (i32, i32) {
    %c0_i32 = arith.constant 0 : i32
    %c0_i32_0 = arith.constant 0 : i32
    return %arg0, %c0_i32 : i32, i32
  }
  func.func @transform_4(%arg0: i32) -> (i32, i32) {
    %c0_i32 = arith.constant 0 : i32
    %c0_i32_0 = arith.constant 0 : i32
    return %arg0, %c0_i32 : i32, i32
  }
}

module attributes {stable_mosaic.version = 11 : i64} {
  func.func @_matmul_bias_kernel(%arg0: i32, %arg1: memref<8x1152xbf16, #tpu.memory_space<vmem>>, %arg2: memref<1152x128xbf16, #tpu.memory_space<vmem>>, %arg3: memref<1x128xf32, #tpu.memory_space<vmem>>, %arg4: memref<8x128xbf16, #tpu.memory_space<vmem>>) attributes {dimension_semantics = [#tpu.dimension_semantics<parallel>], iteration_bounds = array<i64: 1>, scalar_prefetch = 0 : i64, scratch_operands = 0 : i64, tpu.core_type = #tpu.core_type<tc>, window_params = [{transform_indices = @transform_0, window_bounds = array<i64: 8, 1152>}, {pipeline_mode = #tpu.pipeline_mode<synchronous>, transform_indices = @transform_1, window_bounds = array<i64: 1152, 128>}, {pipeline_mode = #tpu.pipeline_mode<synchronous>, transform_indices = @transform_2, window_bounds = array<i64: 1, 128>}, {transform_indices = @transform_3, window_bounds = array<i64: 8, 128>}]} {
    %c0 = arith.constant 0 : index
    %c0_0 = arith.constant 0 : index
    %0 = vector.load %arg1[%c0, %c0_0] : memref<8x1152xbf16, #tpu.memory_space<vmem>>, vector<8x1152xbf16>
    %c0_1 = arith.constant 0 : index
    %c0_2 = arith.constant 0 : index
    %1 = vector.load %arg2[%c0_1, %c0_2] : memref<1152x128xbf16, #tpu.memory_space<vmem>>, vector<1152x128xbf16>
    %cst = arith.constant dense<0.000000e+00> : vector<8x128xf32>
    %2 = tpu.matmul %0, %1, %cst {dimension_numbers = #tpu.dot_dimension_numbers<[1], [0], [0], [1], [0, 0, 1, 1], [], []>} : vector<8x1152xbf16>, vector<1152x128xbf16>, vector<8x128xf32> -> vector<8x128xf32>
    %c0_3 = arith.constant 0 : index
    %c0_4 = arith.constant 0 : index
    %3 = vector.load %arg3[%c0_3, %c0_4] : memref<1x128xf32, #tpu.memory_space<vmem>>, vector<1x128xf32>
    %4 = vector.broadcast %3 : vector<1x128xf32> to vector<8x128xf32>
    %5 = arith.addf %2, %4 : vector<8x128xf32>
    %cst_5 = arith.constant 0.000000e+00 : f32
    %6 = vector.broadcast %cst_5 : f32 to vector<8x128xf32>
    %7 = arith.maximumf %5, %6 : vector<8x128xf32>
    %8 = arith.truncf %7 : vector<8x128xf32> to vector<8x128xbf16>
    %c0_6 = arith.constant 0 : index
    %c0_7 = arith.constant 0 : index
    %9 = vector.load %arg4[%c0_6, %c0_7] : memref<8x128xbf16, #tpu.memory_space<vmem>>, vector<8x128xbf16>
    tpu.vector_store %arg4[%c0_6, %c0_7], %8 {strides = array<i32>} : memref<8x128xbf16, #tpu.memory_space<vmem>>, vector<8x128xbf16>,
    return
  }
  func.func @transform_0(%arg0: i32) -> (i32, i32) {
    %c0_i32 = arith.constant 0 : i32
    %c0_i32_0 = arith.constant 0 : i32
    return %arg0, %c0_i32 : i32, i32
  }
  func.func @transform_1(%arg0: i32) -> (i32, i32) {
    %c0_i32 = arith.constant 0 : i32
    %c0_i32_0 = arith.constant 0 : i32
    %c0_i32_1 = arith.constant 0 : i32
    return %c0_i32, %c0_i32_0 : i32, i32
  }
  func.func @transform_2(%arg0: i32) -> (i32, i32) {
    %c0_i32 = arith.constant 0 : i32
    %c0_i32_0 = arith.constant 0 : i32
    %c0_i32_1 = arith.constant 0 : i32
    return %c0_i32, %c0_i32_0 : i32, i32
  }
  func.func @transform_3(%arg0: i32) -> (i32, i32) {
    %c0_i32 = arith.constant 0 : i32
    %c0_i32_0 = arith.constant 0 : i32
    return %arg0, %c0_i32 : i32, i32
  }
}

module attributes {stable_mosaic.version = 11 : i64} {
  func.func @_pool_fc_head_kernel(%arg0: i32, %arg1: memref<8x128xbf16, #tpu.memory_space<vmem>>, %arg2: memref<8x128xf32, #tpu.memory_space<vmem>>, %arg3: memref<128x128xf32, #tpu.memory_space<vmem>>, %arg4: memref<128x128xf32, #tpu.memory_space<vmem>>, %arg5: memref<1x128xf32, #tpu.memory_space<vmem>>, %arg6: memref<128x128xf32, #tpu.memory_space<vmem>>, %arg7: memref<1x128xf32, #tpu.memory_space<vmem>>, %arg8: memref<128x128xf32, #tpu.memory_space<vmem>>, %arg9: memref<1x128xf32, #tpu.memory_space<vmem>>, %arg10: memref<128x128xf32, #tpu.memory_space<vmem>>, %arg11: memref<1x128xf32, #tpu.memory_space<vmem>>, %arg12: memref<8x128xf32, #tpu.memory_space<vmem>>) attributes {dimension_semantics = [#tpu.dimension_semantics<arbitrary>], iteration_bounds = array<i64: 1>, scalar_prefetch = 0 : i64, scratch_operands = 0 : i64, tpu.core_type = #tpu.core_type<tc>, window_params = [{pipeline_mode = #tpu.pipeline_mode<synchronous>, transform_indices = @transform_0, window_bounds = array<i64: 8, 128>}, {pipeline_mode = #tpu.pipeline_mode<synchronous>, transform_indices = @transform_1, window_bounds = array<i64: 8, 128>}, {pipeline_mode = #tpu.pipeline_mode<synchronous>, transform_indices = @transform_2, window_bounds = array<i64: 128, 128>}, {pipeline_mode = #tpu.pipeline_mode<synchronous>, transform_indices = @transform_3, window_bounds = array<i64: 128, 128>}, {pipeline_mode = #tpu.pipeline_mode<synchronous>, transform_indices = @transform_4, window_bounds = array<i64: 1, 128>}, {pipeline_mode = #tpu.pipeline_mode<synchronous>, transform_indices = @transform_5, window_bounds = array<i64: 128, 128>}, {pipeline_mode = #tpu.pipeline_mode<synchronous>, transform_indices = @transform_6, window_bounds = array<i64: 1, 128>}, {pipeline_mode = #tpu.pipeline_mode<synchronous>, transform_indices = @transform_7, window_bounds = array<i64: 128, 128>}, {pipeline_mode = #tpu.pipeline_mode<synchronous>, transform_indices = @transform_8, window_bounds = array<i64: 1, 128>}, {pipeline_mode = #tpu.pipeline_mode<synchronous>, transform_indices = @transform_9, window_bounds = array<i64: 128, 128>}, {pipeline_mode = #tpu.pipeline_mode<synchronous>, transform_indices = @transform_10, window_bounds = array<i64: 1, 128>}, {pipeline_mode = #tpu.pipeline_mode<synchronous>, transform_indices = @transform_11, window_bounds = array<i64: 8, 128>}]} {
    %c0 = arith.constant 0 : index
    %c0_0 = arith.constant 0 : index
    %0 = vector.load %arg1[%c0, %c0_0] : memref<8x128xbf16, #tpu.memory_space<vmem>>, vector<8x128xbf16>
    %1 = arith.extf %0 : vector<8x128xbf16> to vector<8x128xf32>
    %2 = tpu.iota {dimensions = array<i32: 0>} : vector<8x128xi32>
    %c4_i32 = arith.constant 4 : i32
    %3 = vector.broadcast %c4_i32 : i32 to vector<8x128xi32>
    %4 = arith.cmpi slt, %2, %3 : vector<8x128xi32>
    %cst = arith.constant 0.000000e+00 : f32
    %5 = vector.broadcast %cst : f32 to vector<8x128xf32>
    %6 = arith.select %4, %1, %5 : vector<8x128xi1>, vector<8x128xf32>
    %cst_1 = arith.constant dense<0.000000e+00> : vector<128xf32>
    %7 = vector.multi_reduction <add>, %6, %cst_1 [0] : vector<8x128xf32> to vector<128xf32>
    %8 = vector.shape_cast %7 : vector<128xf32> to vector<1x128xf32>
    %cst_2 = arith.constant 2.500000e-01 : f32
    %9 = vector.broadcast %cst_2 : f32 to vector<1x128xf32>
    %10 = arith.mulf %8, %9 : vector<1x128xf32>
    %c4_i32_3 = arith.constant 4 : i32
    %11 = vector.broadcast %c4_i32_3 : i32 to vector<8x128xi32>
    %12 = arith.cmpi sge, %2, %11 : vector<8x128xi32>
    %c8_i32 = arith.constant 8 : i32
    %13 = vector.broadcast %c8_i32 : i32 to vector<8x128xi32>
    %14 = arith.cmpi slt, %2, %13 : vector<8x128xi32>
    %15 = arith.andi %12, %14 : vector<8x128xi1>
    %cst_4 = arith.constant 0.000000e+00 : f32
    %16 = vector.broadcast %cst_4 : f32 to vector<8x128xf32>
    %17 = arith.select %15, %1, %16 : vector<8x128xi1>, vector<8x128xf32>
    %cst_5 = arith.constant dense<0.000000e+00> : vector<128xf32>
    %18 = vector.multi_reduction <add>, %17, %cst_5 [0] : vector<8x128xf32> to vector<128xf32>
    %19 = vector.shape_cast %18 : vector<128xf32> to vector<1x128xf32>
    %cst_6 = arith.constant 2.500000e-01 : f32
    %20 = vector.broadcast %cst_6 : f32 to vector<1x128xf32>
    %21 = arith.mulf %19, %20 : vector<1x128xf32>
    %22 = vector.shape_cast %10 : vector<1x128xf32> to vector<1x128xf32>
    %23 = vector.broadcast %22 : vector<1x128xf32> to vector<8x128xf32>
    %24 = vector.shape_cast %21 : vector<1x128xf32> to vector<1x128xf32>
    %25 = vector.broadcast %24 : vector<1x128xf32> to vector<8x128xf32>
    %c0_7 = arith.constant 0 : index
    %c0_8 = arith.constant 0 : index
    %26 = vector.load %arg3[%c0_7, %c0_8] : memref<128x128xf32, #tpu.memory_space<vmem>>, vector<128x128xf32>
    %cst_9 = arith.constant dense<0.000000e+00> : vector<8x128xf32>
    %27 = tpu.matmul %23, %26, %cst_9 {dimension_numbers = #tpu.dot_dimension_numbers<[1], [0], [0], [1], [0, 0, 1, 1], [], []>} : vector<8x128xf32>, vector<128x128xf32>, vector<8x128xf32> -> vector<8x128xf32>
    %c0_10 = arith.constant 0 : index
    %c0_11 = arith.constant 0 : index
    %28 = vector.load %arg4[%c0_10, %c0_11] : memref<128x128xf32, #tpu.memory_space<vmem>>, vector<128x128xf32>
    %cst_12 = arith.constant dense<0.000000e+00> : vector<8x128xf32>
    %29 = tpu.matmul %25, %28, %cst_12 {dimension_numbers = #tpu.dot_dimension_numbers<[1], [0], [0], [1], [0, 0, 1, 1], [], []>} : vector<8x128xf32>, vector<128x128xf32>, vector<8x128xf32> -> vector<8x128xf32>
    %30 = arith.addf %27, %29 : vector<8x128xf32>
    %c0_13 = arith.constant 0 : index
    %c0_14 = arith.constant 0 : index
    %31 = vector.load %arg5[%c0_13, %c0_14] : memref<1x128xf32, #tpu.memory_space<vmem>>, vector<1x128xf32>
    %32 = vector.broadcast %31 : vector<1x128xf32> to vector<8x128xf32>
    %33 = arith.addf %30, %32 : vector<8x128xf32>
    %cst_15 = arith.constant 0.000000e+00 : f32
    %34 = vector.broadcast %cst_15 : f32 to vector<8x128xf32>
    %35 = arith.maximumf %33, %34 : vector<8x128xf32>
    %c0_16 = arith.constant 0 : index
    %c0_17 = arith.constant 0 : index
    %36 = vector.load %arg2[%c0_16, %c0_17] : memref<8x128xf32, #tpu.memory_space<vmem>>, vector<8x128xf32>
    %c0_18 = arith.constant 0 : index
    %c0_19 = arith.constant 0 : index
    %37 = vector.load %arg6[%c0_18, %c0_19] : memref<128x128xf32, #tpu.memory_space<vmem>>, vector<128x128xf32>
    %cst_20 = arith.constant dense<0.000000e+00> : vector<8x128xf32>
    %38 = tpu.matmul %36, %37, %cst_20 {dimension_numbers = #tpu.dot_dimension_numbers<[1], [0], [0], [1], [0, 0, 1, 1], [], []>} : vector<8x128xf32>, vector<128x128xf32>, vector<8x128xf32> -> vector<8x128xf32>
    %c0_21 = arith.constant 0 : index
    %c0_22 = arith.constant 0 : index
    %39 = vector.load %arg7[%c0_21, %c0_22] : memref<1x128xf32, #tpu.memory_space<vmem>>, vector<1x128xf32>
    %40 = vector.broadcast %39 : vector<1x128xf32> to vector<8x128xf32>
    %41 = arith.addf %38, %40 : vector<8x128xf32>
    %cst_23 = arith.constant 0.000000e+00 : f32
    %42 = vector.broadcast %cst_23 : f32 to vector<8x128xf32>
    %43 = arith.maximumf %41, %42 : vector<8x128xf32>
    %c0_24 = arith.constant 0 : index
    %c0_25 = arith.constant 0 : index
    %44 = vector.load %arg8[%c0_24, %c0_25] : memref<128x128xf32, #tpu.memory_space<vmem>>, vector<128x128xf32>
    %cst_26 = arith.constant dense<0.000000e+00> : vector<8x128xf32>
    %45 = tpu.matmul %35, %44, %cst_26 {dimension_numbers = #tpu.dot_dimension_numbers<[1], [0], [0], [1], [0, 0, 1, 1], [], []>} : vector<8x128xf32>, vector<128x128xf32>, vector<8x128xf32> -> vector<8x128xf32>
    %c0_27 = arith.constant 0 : index
    %c0_28 = arith.constant 0 : index
    %46 = vector.load %arg9[%c0_27, %c0_28] : memref<1x128xf32, #tpu.memory_space<vmem>>, vector<1x128xf32>
    %47 = vector.broadcast %46 : vector<1x128xf32> to vector<8x128xf32>
    %48 = arith.addf %45, %47 : vector<8x128xf32>
    %c0_29 = arith.constant 0 : index
    %c0_30 = arith.constant 0 : index
    %49 = vector.load %arg10[%c0_29, %c0_30] : memref<128x128xf32, #tpu.memory_space<vmem>>, vector<128x128xf32>
    %cst_31 = arith.constant dense<0.000000e+00> : vector<8x128xf32>
    %50 = tpu.matmul %43, %49, %cst_31 {dimension_numbers = #tpu.dot_dimension_numbers<[1], [0], [0], [1], [0, 0, 1, 1], [], []>} : vector<8x128xf32>, vector<128x128xf32>, vector<8x128xf32> -> vector<8x128xf32>
    %c0_32 = arith.constant 0 : index
    %c0_33 = arith.constant 0 : index
    %51 = vector.load %arg11[%c0_32, %c0_33] : memref<1x128xf32, #tpu.memory_space<vmem>>, vector<1x128xf32>
    %52 = vector.broadcast %51 : vector<1x128xf32> to vector<8x128xf32>
    %53 = arith.addf %50, %52 : vector<8x128xf32>
    %54 = arith.addf %48, %53 : vector<8x128xf32>
    %cst_34 = arith.constant 0.000000e+00 : f32
    %55 = vector.broadcast %cst_34 : f32 to vector<8x128xf32>
    %56 = arith.maximumf %54, %55 : vector<8x128xf32>
    %c0_35 = arith.constant 0 : index
    %c0_36 = arith.constant 0 : index
    %57 = vector.load %arg12[%c0_35, %c0_36] : memref<8x128xf32, #tpu.memory_space<vmem>>, vector<8x128xf32>
    tpu.vector_store %arg12[%c0_35, %c0_36], %56 {strides = array<i32>} : memref<8x128xf32, #tpu.memory_space<vmem>>, vector<8x128xf32>,
    return
  }
  func.func @transform_0(%arg0: i32) -> (i32, i32) {
    %c0_i32 = arith.constant 0 : i32
    %c0_i32_0 = arith.constant 0 : i32
    %c0_i32_1 = arith.constant 0 : i32
    return %c0_i32, %c0_i32_0 : i32, i32
  }
  func.func @transform_1(%arg0: i32) -> (i32, i32) {
    %c0_i32 = arith.constant 0 : i32
    %c0_i32_0 = arith.constant 0 : i32
    %c0_i32_1 = arith.constant 0 : i32
    return %c0_i32, %c0_i32_0 : i32, i32
  }
  func.func @transform_2(%arg0: i32) -> (i32, i32) {
    %c0_i32 = arith.constant 0 : i32
    %c0_i32_0 = arith.constant 0 : i32
    %c0_i32_1 = arith.constant 0 : i32
    return %c0_i32, %c0_i32_0 : i32, i32
  }
  func.func @transform_3(%arg0: i32) -> (i32, i32) {
    %c0_i32 = arith.constant 0 : i32
    %c0_i32_0 = arith.constant 0 : i32
    %c0_i32_1 = arith.constant 0 : i32
    return %c0_i32, %c0_i32_0 : i32, i32
  }
  func.func @transform_4(%arg0: i32) -> (i32, i32) {
    %c0_i32 = arith.constant 0 : i32
    %c0_i32_0 = arith.constant 0 : i32
    %c0_i32_1 = arith.constant 0 : i32
    return %c0_i32, %c0_i32_0 : i32, i32
  }
  func.func @transform_5(%arg0: i32) -> (i32, i32) {
    %c0_i32 = arith.constant 0 : i32
    %c0_i32_0 = arith.constant 0 : i32
    %c0_i32_1 = arith.constant 0 : i32
    return %c0_i32, %c0_i32_0 : i32, i32
  }
  func.func @transform_6(%arg0: i32) -> (i32, i32) {
    %c0_i32 = arith.constant 0 : i32
    %c0_i32_0 = arith.constant 0 : i32
    %c0_i32_1 = arith.constant 0 : i32
    return %c0_i32, %c0_i32_0 : i32, i32
  }
  func.func @transform_7(%arg0: i32) -> (i32, i32) {
    %c0_i32 = arith.constant 0 : i32
    %c0_i32_0 = arith.constant 0 : i32
    %c0_i32_1 = arith.constant 0 : i32
    return %c0_i32, %c0_i32_0 : i32, i32
  }
  func.func @transform_8(%arg0: i32) -> (i32, i32) {
    %c0_i32 = arith.constant 0 : i32
    %c0_i32_0 = arith.constant 0 : i32
    %c0_i32_1 = arith.constant 0 : i32
    return %c0_i32, %c0_i32_0 : i32, i32
  }
  func.func @transform_9(%arg0: i32) -> (i32, i32) {
    %c0_i32 = arith.constant 0 : i32
    %c0_i32_0 = arith.constant 0 : i32
    %c0_i32_1 = arith.constant 0 : i32
    return %c0_i32, %c0_i32_0 : i32, i32
  }
  func.func @transform_10(%arg0: i32) -> (i32, i32) {
    %c0_i32 = arith.constant 0 : i32
    %c0_i32_0 = arith.constant 0 : i32
    %c0_i32_1 = arith.constant 0 : i32
    return %c0_i32, %c0_i32_0 : i32, i32
  }
  func.func @transform_11(%arg0: i32) -> (i32, i32) {
    %c0_i32 = arith.constant 0 : i32
    %c0_i32_0 = arith.constant 0 : i32
    %c0_i32_1 = arith.constant 0 : i32
    return %c0_i32, %c0_i32_0 : i32, i32
  }
}

</mosaic_0001>

<llo_original>
// kernel: glimpse_network_forward.11
$region0: #{glimpse_network_forward.11}
  #allocation0 [shape = 'u32[]', space=smem, size = 0x4, offset = 0x4, fixed_abs, tag = 'smem constant byte address 0x4 - core index']
  #allocation1 [shape = 'u32[72,128]{1,0:T(1,128)}', space=vmem, size = 0x9000, scoped, tag = 'internal scratch']
  %s0 = inlined_call_operand.vmem [shape: bf16[72,256], index: 0, kind: input, shape index: {}]
  %s1 = inlined_call_operand.vmem [shape: bf16[256,128], index: 1, kind: input, shape index: {}]
  %s2 = inlined_call_operand.vmem [shape: f32[1,128], index: 2, kind: input, shape index: {}]
  %s3 = inlined_call_operand.vmem [shape: bf16[72,128], index: 3, kind: output, shape index: {}]
  %s4 = sld [smem:[#allocation0]]
  $region22: #{glimpse_network_forward.11} parent=0
    _
  %s6 = ssub.s32 1, %s4
  %s7 = scalar_select 0, %s6, %s4
  // Predicated region
  $region2: #{glimpse_network_forward.11} parent=0 // pred_check
    _
  $region3: #{glimpse_network_forward.11} parent=0 // pred_check_branch
    %9 = sbr.rel (0) target = $region5
  $region4: #{glimpse_network_forward.11} parent=0 // pred_region
    _
  $region5: #{glimpse_network_forward.11} parent=0 // pred_fallthru
    _
  // Predicated region
  $region6: #{glimpse_network_forward.11} parent=0 // pred_check
    _
  $region7: #{glimpse_network_forward.11} parent=0 // pred_check_branch
    %11 = sbr.rel (0) target = $region9
  $region8: #{glimpse_network_forward.11} parent=0 // pred_region
    _
  $region9: #{glimpse_network_forward.11} parent=0 // pred_fallthru
    _
  // Predicated region
  $region10: #{glimpse_network_forward.11} parent=0 // pred_check
    _
  $region11: #{glimpse_network_forward.11} parent=0 // pred_check_branch
    %13 = sbr.rel (0) target = $region13
  $region12: #{glimpse_network_forward.11} parent=0 // pred_region
    _
  $region13: #{glimpse_network_forward.11} parent=0 // pred_fallthru
    _
  %v14 = vld [vmem:[%s0] sm:$0xff]
  %v15 = vld [vmem:[%s0 + $0x8] sm:$0xff]
  %v16 = vld [vmem:[%s0 + $0x10] sm:$0xff]
  %v17 = vld [vmem:[%s0 + $0x18] sm:$0xff]
  %v18 = vld [vmem:[%s0 + $0x20] sm:$0xff]
  %v19 = vld [vmem:[%s0 + $0x28] sm:$0xff]
  %v20 = vld [vmem:[%s0 + $0x30] sm:$0xff]
  %v21 = vld [vmem:[%s0 + $0x38] sm:$0xff]
  %v22 = vld [vmem:[%s0 + $0x40] sm:$0xff]
  %v23 = vld [vmem:[%s1] sm:$0xf]
  %v24 = vld [vmem:[%s1 + $0x4] sm:$0xf]
  %v25 = vld [vmem:[%s1 + $0x8] sm:$0xf]
  %v26 = vld [vmem:[%s1 + $0xc] sm:$0xf]
  %v27 = vld [vmem:[%s1 + $0x10] sm:$0xf]
  %v28 = vld [vmem:[%s1 + $0x14] sm:$0xf]
  %v29 = vld [vmem:[%s1 + $0x18] sm:$0xf]
  %v30 = vld [vmem:[%s1 + $0x1c] sm:$0xf]
  %v31 = vld [vmem:[%s1 + $0x20] sm:$0xf]
  %v32 = vld [vmem:[%s1 + $0x24] sm:$0xf]
  %v33 = vld [vmem:[%s1 + $0x28] sm:$0xf]
  %v34 = vld [vmem:[%s1 + $0x2c] sm:$0xf]
  %v35 = vld [vmem:[%s1 + $0x30] sm:$0xf]
  %v36 = vld [vmem:[%s1 + $0x34] sm:$0xf]
  %v37 = vld [vmem:[%s1 + $0x38] sm:$0xf]
  %v38 = vld [vmem:[%s1 + $0x3c] sm:$0xf]
  %v39 = vld [vmem:[%s1 + $0x40] sm:$0xf]
  %v40 = vld [vmem:[%s1 + $0x44] sm:$0xf]
  %v41 = vld [vmem:[%s1 + $0x48] sm:$0xf]
  %v42 = vld [vmem:[%s1 + $0x4c] sm:$0xf]
  %v43 = vld [vmem:[%s1 + $0x50] sm:$0xf]
  %v44 = vld [vmem:[%s1 + $0x54] sm:$0xf]
  %v45 = vld [vmem:[%s1 + $0x58] sm:$0xf]
  %v46 = vld [vmem:[%s1 + $0x5c] sm:$0xf]
  %v47 = vld [vmem:[%s1 + $0x60] sm:$0xf]
  %v48 = vld [vmem:[%s1 + $0x64] sm:$0xf]
  %v49 = vld [vmem:[%s1 + $0x68] sm:$0xf]
  %v50 = vld [vmem:[%s1 + $0x6c] sm:$0xf]
  %v51 = vld [vmem:[%s1 + $0x70] sm:$0xf]
  %v52 = vld [vmem:[%s1 + $0x74] sm:$0xf]
  %v53 = vld [vmem:[%s1 + $0x78] sm:$0xf]
  %v54 = vld [vmem:[%s1 + $0x7c] sm:$0xf]
  %v55 = vld [vmem:[%s2] sm:$0x1]
  %v57 = vperm.slane %v55, 0
  %v68 = vunpack.c.l.b16 %v14
  %v69 = vunpack.c.h.b16 %v14
  %v70 = vunpack.c.l.b16 %v15
  %v71 = vunpack.c.h.b16 %v15
  %v72 = vunpack.c.l.b16 %v16
  %v73 = vunpack.c.h.b16 %v16
  %v74 = vunpack.c.l.b16 %v17
  %v75 = vunpack.c.h.b16 %v17
  %v76 = vunpack.c.l.b16 %v18
  %v77 = vunpack.c.h.b16 %v18
  %v78 = vunpack.c.l.b16 %v19
  %v79 = vunpack.c.h.b16 %v19
  %v80 = vunpack.c.l.b16 %v20
  %v81 = vunpack.c.h.b16 %v20
  %v82 = vunpack.c.l.b16 %v21
  %v83 = vunpack.c.h.b16 %v21
  %v84 = vunpack.c.l.b16 %v22
  %v85 = vunpack.c.h.b16 %v22
  %v86 = vpack.c.b16 %v70, %v68
  %v87 = vpack.c.b16 %v71, %v69
  %v88 = vpack.c.b16 %v74, %v72
  %v89 = vpack.c.b16 %v75, %v73
  %v90 = vpack.c.b16 %v78, %v76
  %v91 = vpack.c.b16 %v79, %v77
  %v92 = vpack.c.b16 %v82, %v80
  %v93 = vpack.c.b16 %v83, %v81
  %v94 = vpack.c.b16 %v84, %v84
  %v95 = vpack.c.b16 %v85, %v85
  %v138 = vunpack.c.l.b16 %v23
  %v139 = vunpack.c.l.b16 %v24
  %v140 = vunpack.c.l.b16 %v25
  %v141 = vunpack.c.l.b16 %v26
  %v142 = vunpack.c.l.b16 %v27
  %v143 = vunpack.c.l.b16 %v28
  %v144 = vunpack.c.l.b16 %v29
  %v145 = vunpack.c.l.b16 %v30
  %v146 = vunpack.c.l.b16 %v31
  %v147 = vunpack.c.l.b16 %v32
  %v148 = vunpack.c.l.b16 %v33
  %v149 = vunpack.c.l.b16 %v34
  %v150 = vunpack.c.l.b16 %v35
  %v151 = vunpack.c.l.b16 %v36
  %v152 = vunpack.c.l.b16 %v37
  %v153 = vunpack.c.l.b16 %v38
  %v154 = vunpack.c.l.b16 %v39
  %v155 = vunpack.c.l.b16 %v40
  %v156 = vunpack.c.l.b16 %v41
  %v157 = vunpack.c.l.b16 %v42
  %v158 = vunpack.c.l.b16 %v43
  %v159 = vunpack.c.l.b16 %v44
  %v160 = vunpack.c.l.b16 %v45
  %v161 = vunpack.c.l.b16 %v46
  %v162 = vunpack.c.l.b16 %v47
  %v163 = vunpack.c.l.b16 %v48
  %v164 = vunpack.c.l.b16 %v49
  %v165 = vunpack.c.l.b16 %v50
  %v166 = vunpack.c.l.b16 %v51
  %v167 = vunpack.c.l.b16 %v52
  %v168 = vunpack.c.l.b16 %v53
  %v169 = vunpack.c.l.b16 %v54
  %v170 = vpack.c.b16 %v139, %v138
  %v171 = vpack.c.b16 %v141, %v140
  %v172 = vpack.c.b16 %v143, %v142
  %v173 = vpack.c.b16 %v145, %v144
  %v174 = vpack.c.b16 %v147, %v146
  %v175 = vpack.c.b16 %v149, %v148
  %v176 = vpack.c.b16 %v151, %v150
  %v177 = vpack.c.b16 %v153, %v152
  %v178 = vpack.c.b16 %v155, %v154
  %v179 = vpack.c.b16 %v157, %v156
  %v180 = vpack.c.b16 %v159, %v158
  %v181 = vpack.c.b16 %v161, %v160
  %v182 = vpack.c.b16 %v163, %v162
  %v183 = vpack.c.b16 %v165, %v164
  %v184 = vpack.c.b16 %v167, %v166
  %v185 = vpack.c.b16 %v169, %v168
  %202 = vmatpush.bf16.msra.mxu0 %v177
  %203 = vmatpush.bf16.msra.mxu0 %v176
  %204 = vmatpush.bf16.msra.mxu0 %v175
  %205 = vmatpush.bf16.msra.mxu0 %v174
  %206 = vmatpush.bf16.msra.mxu0 %v173
  %207 = vmatpush.bf16.msra.mxu0 %v172
  %208 = vmatpush.bf16.msra.mxu0 %v171
  %209 = vmatpush.bf16.msra.mxu0 %v170
  %210 = vmatmul.bf16.gmra.mxu0 %v86
  %v211 = vpop.f32.mrf.mxu0
  %v212 = vadd.f32 %v57, %v211
  %v213 = vpop.f32.mrf.mxu0
  %v214 = vadd.f32 %v57, %v213
  %215 = vmatmul.bf16.gmra.mxu0 %v88
  %v216 = vpop.f32.mrf.mxu0
  %v217 = vadd.f32 %v57, %v216
  %v218 = vpop.f32.mrf.mxu0
  %v219 = vadd.f32 %v57, %v218
  %220 = vmatmul.bf16.gmra.mxu0 %v90
  %v221 = vpop.f32.mrf.mxu0
  %v222 = vadd.f32 %v57, %v221
  %v223 = vpop.f32.mrf.mxu0
  %v224 = vadd.f32 %v57, %v223
  %225 = vmatmul.bf16.gmra.mxu0 %v92
  %v226 = vpop.f32.mrf.mxu0
  %v227 = vadd.f32 %v57, %v226
  %v228 = vpop.f32.mrf.mxu0
  %v229 = vadd.f32 %v57, %v228
  %230 = vmatmul.bf16.gmra.mxu0 %v94
  %v231 = vpop.f32.mrf.mxu0
  %v232 = vadd.f32 %v57, %v231
  %v233 = vpop.f32.mrf.mxu0
  %234 = vdwg.mxu0
  %235 = vmatpush.bf16.msra.mxu0 %v185
  %236 = vmatpush.bf16.msra.mxu0 %v184
  %237 = vmatpush.bf16.msra.mxu0 %v183
  %238 = vmatpush.bf16.msra.mxu0 %v182
  %239 = vmatpush.bf16.msra.mxu0 %v181
  %240 = vmatpush.bf16.msra.mxu0 %v180
  %241 = vmatpush.bf16.msra.mxu0 %v179
  %242 = vmatpush.bf16.msra.mxu0 %v178
  %243 = vmatmul.bf16.gmra.mxu0 %v87
  %v244 = vpop.f32.mrf.mxu0
  %v245 = vadd.f32 %v212, %v244
  %v246 = vpop.f32.mrf.mxu0
  %v247 = vadd.f32 %v214, %v246
  %248 = vmatmul.bf16.gmra.mxu0 %v89
  %v249 = vpop.f32.mrf.mxu0
  %v250 = vadd.f32 %v217, %v249
  %v251 = vpop.f32.mrf.mxu0
  %v252 = vadd.f32 %v219, %v251
  %253 = vmatmul.bf16.gmra.mxu0 %v91
  %v254 = vpop.f32.mrf.mxu0
  %v255 = vadd.f32 %v222, %v254
  %v256 = vpop.f32.mrf.mxu0
  %v257 = vadd.f32 %v224, %v256
  %258 = vmatmul.bf16.gmra.mxu0 %v93
  %v259 = vpop.f32.mrf.mxu0
  %v260 = vadd.f32 %v227, %v259
  %v261 = vpop.f32.mrf.mxu0
  %v262 = vadd.f32 %v229, %v261
  %263 = vmatmul.bf16.gmra.mxu0 %v95
  %v264 = vpop.f32.mrf.mxu0
  %v265 = vadd.f32 %v232, %v264
  %v266 = vpop.f32.mrf.mxu0
  %267 = vdwg.mxu0
  %v268 = vmax.f32 %v245, 0.0
  %v269 = vmax.f32 %v247, 0.0
  %v270 = vmax.f32 %v250, 0.0
  %v271 = vmax.f32 %v252, 0.0
  %v272 = vmax.f32 %v255, 0.0
  %v273 = vmax.f32 %v257, 0.0
  %v274 = vmax.f32 %v260, 0.0
  %v275 = vmax.f32 %v262, 0.0
  %v276 = vmax.f32 %v265, 0.0
  %v277 = vpack.c.bf16 %v268, %v268
  %v278 = vpack.c.bf16 %v269, %v269
  %v279 = vpack.c.bf16 %v270, %v270
  %v280 = vpack.c.bf16 %v271, %v271
  %v281 = vpack.c.bf16 %v272, %v272
  %v282 = vpack.c.bf16 %v273, %v273
  %v283 = vpack.c.bf16 %v274, %v274
  %v284 = vpack.c.bf16 %v275, %v275
  %v285 = vpack.c.bf16 %v276, %v276
  %286 = vst [vmem:[%s3] sm:$0xf] %v277
  %287 = vst [vmem:[%s3 + $0x4] sm:$0xf] %v278
  %288 = vst [vmem:[%s3 + $0x8] sm:$0xf] %v279
  %289 = vst [vmem:[%s3 + $0xc] sm:$0xf] %v280
  %290 = vst [vmem:[%s3 + $0x10] sm:$0xf] %v281
  %291 = vst [vmem:[%s3 + $0x14] sm:$0xf] %v282
  %292 = vst [vmem:[%s3 + $0x18] sm:$0xf] %v283
  %293 = vst [vmem:[%s3 + $0x1c] sm:$0xf] %v284
  %294 = vst [vmem:[%s3 + $0x20] sm:$0xf] %v285
  // Predicated region
  $region14: #{glimpse_network_forward.11} parent=0 // pred_check
    _
  $region15: #{glimpse_network_forward.11} parent=0 // pred_check_branch
    %296 = sbr.rel (0) target = $region17
  $region16: #{glimpse_network_forward.11} parent=0 // pred_region
    _
  $region17: #{glimpse_network_forward.11} parent=0 // pred_fallthru
    _
  // Predicated region
  $region18: #{glimpse_network_forward.11} parent=0 // pred_check
    _
  $region19: #{glimpse_network_forward.11} parent=0 // pred_check_branch
    %298 = sbr.rel (0) target = $region21
  $region20: #{glimpse_network_forward.11} parent=0 // pred_region
    _
  $region21: #{glimpse_network_forward.11} parent=0 // pred_fallthru
    _

// kernel: glimpse_network_forward.12
$region0: #{glimpse_network_forward.12}
  #allocation0 [shape = 'u32[]', space=smem, size = 0x4, offset = 0x4, fixed_abs, tag = 'smem constant byte address 0x4 - core index']
  #allocation1 [shape = 'u32[72,128]{1,0:T(1,128)}', space=vmem, size = 0x9000, scoped, tag = 'internal scratch']
  %s0 = inlined_call_operand.vmem [shape: bf16[9,24,128], index: 0, kind: input, shape index: {}]
  %s1 = inlined_call_operand.vmem [shape: bf16[24,128], index: 1, kind: output, shape index: {}]
  %s2 = sld [smem:[#allocation0]]
  $region14: #{glimpse_network_forward.12} parent=0
    _
  %s4 = ssub.s32 1, %s2
  %s5 = scalar_select 0, %s4, %s2
  // Predicated region
  $region2: #{glimpse_network_forward.12} parent=0 // pred_check
    _
  $region3: #{glimpse_network_forward.12} parent=0 // pred_check_branch
    %7 = sbr.rel (0) target = $region5
  $region4: #{glimpse_network_forward.12} parent=0 // pred_region
    _
  $region5: #{glimpse_network_forward.12} parent=0 // pred_fallthru
    _
  %v8 = vld [vmem:[%s0] sm:$0xf]
  %v9 = vld [vmem:[%s0 + $0x4] sm:$0xf]
  %v10 = vld [vmem:[%s0 + $0x8] sm:$0xf]
  %s11 = scalar_lea.vmem %s0, 12
  %v12 = vld [vmem:[%s11] sm:$0xf]
  %v13 = vld [vmem:[%s11 + $0x4] sm:$0xf]
  %v14 = vld [vmem:[%s11 + $0x8] sm:$0xf]
  %v15 = vunpack.c.l.bf16 %v8
  %v16 = vunpack.c.l.bf16 %v9
  %v17 = vunpack.c.l.bf16 %v10
  %v18 = vunpack.c.l.bf16 %v12
  %v19 = vunpack.c.l.bf16 %v13
  %v20 = vunpack.c.l.bf16 %v14
  %v21 = vmax.f32 %v15, %v18
  %v22 = vmax.f32 %v16, %v19
  %v23 = vmax.f32 %v17, %v20
  %v24 = vpack.c.bf16 %v21, %v21
  %v25 = vpack.c.bf16 %v22, %v22
  %v26 = vpack.c.bf16 %v23, %v23
  %s27 = scalar_lea.vmem %s0, 24
  %v28 = vld [vmem:[%s27] sm:$0xf]
  %v29 = vld [vmem:[%s27 + $0x4] sm:$0xf]
  %v30 = vld [vmem:[%s27 + $0x8] sm:$0xf]
  %v31 = vunpack.c.l.bf16 %v24
  %v32 = vunpack.c.l.bf16 %v25
  %v33 = vunpack.c.l.bf16 %v26
  %v34 = vunpack.c.l.bf16 %v28
  %v35 = vunpack.c.l.bf16 %v29
  %v36 = vunpack.c.l.bf16 %v30
  %v37 = vmax.f32 %v31, %v34
  %v38 = vmax.f32 %v32, %v35
  %v39 = vmax.f32 %v33, %v36
  %v40 = vpack.c.bf16 %v37, %v37
  %v41 = vpack.c.bf16 %v38, %v38
  %v42 = vpack.c.bf16 %v39, %v39
  %s43 = scalar_lea.vmem %s0, 36
  %v44 = vld [vmem:[%s43] sm:$0xf]
  %v45 = vld [vmem:[%s43 + $0x4] sm:$0xf]
  %v46 = vld [vmem:[%s43 + $0x8] sm:$0xf]
  %v47 = vunpack.c.l.bf16 %v40
  %v48 = vunpack.c.l.bf16 %v41
  %v49 = vunpack.c.l.bf16 %v42
  %v50 = vunpack.c.l.bf16 %v44
  %v51 = vunpack.c.l.bf16 %v45
  %v52 = vunpack.c.l.bf16 %v46
  %v53 = vmax.f32 %v47, %v50
  %v54 = vmax.f32 %v48, %v51
  %v55 = vmax.f32 %v49, %v52
  %v56 = vpack.c.bf16 %v53, %v53
  %v57 = vpack.c.bf16 %v54, %v54
  %v58 = vpack.c.bf16 %v55, %v55
  %s59 = scalar_lea.vmem %s0, 48
  %v60 = vld [vmem:[%s59] sm:$0xf]
  %v61 = vld [vmem:[%s59 + $0x4] sm:$0xf]
  %v62 = vld [vmem:[%s59 + $0x8] sm:$0xf]
  %v63 = vunpack.c.l.bf16 %v56
  %v64 = vunpack.c.l.bf16 %v57
  %v65 = vunpack.c.l.bf16 %v58
  %v66 = vunpack.c.l.bf16 %v60
  %v67 = vunpack.c.l.bf16 %v61
  %v68 = vunpack.c.l.bf16 %v62
  %v69 = vmax.f32 %v63, %v66
  %v70 = vmax.f32 %v64, %v67
  %v71 = vmax.f32 %v65, %v68
  %v72 = vpack.c.bf16 %v69, %v69
  %v73 = vpack.c.bf16 %v70, %v70
  %v74 = vpack.c.bf16 %v71, %v71
  %s75 = scalar_lea.vmem %s0, 60
  %v76 = vld [vmem:[%s75] sm:$0xf]
  %v77 = vld [vmem:[%s75 + $0x4] sm:$0xf]
  %v78 = vld [vmem:[%s75 + $0x8] sm:$0xf]
  %v79 = vunpack.c.l.bf16 %v72
  %v80 = vunpack.c.l.bf16 %v73
  %v81 = vunpack.c.l.bf16 %v74
  %v82 = vunpack.c.l.bf16 %v76
  %v83 = vunpack.c.l.bf16 %v77
  %v84 = vunpack.c.l.bf16 %v78
  %v85 = vmax.f32 %v79, %v82
  %v86 = vmax.f32 %v80, %v83
  %v87 = vmax.f32 %v81, %v84
  %v88 = vpack.c.bf16 %v85, %v85
  %v89 = vpack.c.bf16 %v86, %v86
  %v90 = vpack.c.bf16 %v87, %v87
  %s91 = scalar_lea.vmem %s0, 72
  %v92 = vld [vmem:[%s91] sm:$0xf]
  %v93 = vld [vmem:[%s91 + $0x4] sm:$0xf]
  %v94 = vld [vmem:[%s91 + $0x8] sm:$0xf]
  %v95 = vunpack.c.l.bf16 %v88
  %v96 = vunpack.c.l.bf16 %v89
  %v97 = vunpack.c.l.bf16 %v90
  %v98 = vunpack.c.l.bf16 %v92
  %v99 = vunpack.c.l.bf16 %v93
  %v100 = vunpack.c.l.bf16 %v94
  %v101 = vmax.f32 %v95, %v98
  %v102 = vmax.f32 %v96, %v99
  %v103 = vmax.f32 %v97, %v100
  %v104 = vpack.c.bf16 %v101, %v101
  %v105 = vpack.c.bf16 %v102, %v102
  %v106 = vpack.c.bf16 %v103, %v103
  %s107 = scalar_lea.vmem %s0, 84
  %v108 = vld [vmem:[%s107] sm:$0xf]
  %v109 = vld [vmem:[%s107 + $0x4] sm:$0xf]
  %v110 = vld [vmem:[%s107 + $0x8] sm:$0xf]
  %v111 = vunpack.c.l.bf16 %v104
  %v112 = vunpack.c.l.bf16 %v105
  %v113 = vunpack.c.l.bf16 %v106
  %v114 = vunpack.c.l.bf16 %v108
  %v115 = vunpack.c.l.bf16 %v109
  %v116 = vunpack.c.l.bf16 %v110
  %v117 = vmax.f32 %v111, %v114
  %v118 = vmax.f32 %v112, %v115
  %v119 = vmax.f32 %v113, %v116
  %v120 = vpack.c.bf16 %v117, %v117
  %v121 = vpack.c.bf16 %v118, %v118
  %v122 = vpack.c.bf16 %v119, %v119
  %s123 = scalar_lea.vmem %s0, 96
  %v124 = vld [vmem:[%s123] sm:$0xf]
  %v125 = vld [vmem:[%s123 + $0x4] sm:$0xf]
  %v126 = vld [vmem:[%s123 + $0x8] sm:$0xf]
  %v127 = vunpack.c.l.bf16 %v120
  %v128 = vunpack.c.l.bf16 %v121
  %v129 = vunpack.c.l.bf16 %v122
  %v130 = vunpack.c.l.bf16 %v124
  %v131 = vunpack.c.l.bf16 %v125
  %v132 = vunpack.c.l.bf16 %v126
  %v133 = vmax.f32 %v127, %v130
  %v134 = vmax.f32 %v128, %v131
  %v135 = vmax.f32 %v129, %v132
  %v136 = vpack.c.bf16 %v133, %v133
  %v137 = vpack.c.bf16 %v134, %v134
  %v138 = vpack.c.bf16 %v135, %v135
  %139 = vst [vmem:[%s1] sm:$0xf] %v136
  %140 = vst [vmem:[%s1 + $0x4] sm:$0xf] %v137
  %141 = vst [vmem:[%s1 + $0x8] sm:$0xf] %v138
  // Predicated region
  $region6: #{glimpse_network_forward.12} parent=0 // pred_check
    _
  $region7: #{glimpse_network_forward.12} parent=0 // pred_check_branch
    %143 = sbr.rel (0) target = $region9
  $region8: #{glimpse_network_forward.12} parent=0 // pred_region
    _
  $region9: #{glimpse_network_forward.12} parent=0 // pred_fallthru
    _
  // Predicated region
  $region10: #{glimpse_network_forward.12} parent=0 // pred_check
    _
  $region11: #{glimpse_network_forward.12} parent=0 // pred_check_branch
    %145 = sbr.rel (0) target = $region13
  $region12: #{glimpse_network_forward.12} parent=0 // pred_region
    _
  $region13: #{glimpse_network_forward.12} parent=0 // pred_fallthru
    _

// kernel: glimpse_network_forward.13
$region0: #{glimpse_network_forward.13}
  #allocation0 [shape = 'u32[]', space=smem, size = 0x4, offset = 0x4, fixed_abs, tag = 'smem constant byte address 0x4 - core index']
  #allocation1 [shape = 'u32[72,128]{1,0:T(1,128)}', space=vmem, size = 0x9000, scoped, tag = 'internal scratch']
  %s0 = inlined_call_operand.vmem [shape: bf16[24,1152], index: 0, kind: input, shape index: {}]
  %s1 = inlined_call_operand.vmem [shape: bf16[1152,128], index: 1, kind: input, shape index: {}]
  %s2 = inlined_call_operand.vmem [shape: f32[1,128], index: 2, kind: input, shape index: {}]
  %s3 = inlined_call_operand.vmem [shape: bf16[24,128], index: 3, kind: output, shape index: {}]
  %s4 = sld [smem:[#allocation0]]
  $region22: #{glimpse_network_forward.13} parent=0
    _
  %s6 = ssub.s32 1, %s4
  %s7 = scalar_select 0, %s6, %s4
  // Predicated region
  $region2: #{glimpse_network_forward.13} parent=0 // pred_check
    _
  $region3: #{glimpse_network_forward.13} parent=0 // pred_check_branch
    %9 = sbr.rel (0) target = $region5
  $region4: #{glimpse_network_forward.13} parent=0 // pred_region
    _
  $region5: #{glimpse_network_forward.13} parent=0 // pred_fallthru
    _
  // Predicated region
  $region6: #{glimpse_network_forward.13} parent=0 // pred_check
    _
  $region7: #{glimpse_network_forward.13} parent=0 // pred_check_branch
    %11 = sbr.rel (0) target = $region9
  $region8: #{glimpse_network_forward.13} parent=0 // pred_region
    _
  $region9: #{glimpse_network_forward.13} parent=0 // pred_fallthru
    _
  // Predicated region
  $region10: #{glimpse_network_forward.13} parent=0 // pred_check
    _
  $region11: #{glimpse_network_forward.13} parent=0 // pred_check_branch
    %13 = sbr.rel (0) target = $region13
  $region12: #{glimpse_network_forward.13} parent=0 // pred_region
    _
  $region13: #{glimpse_network_forward.13} parent=0 // pred_fallthru
    _
  %v14 = vld [vmem:[%s0] sm:$0xff]
  %v15 = vld [vmem:[%s0 + $0x8] sm:$0xff]
  %v16 = vld [vmem:[%s0 + $0x10] sm:$0xff]
  %v17 = vld [vmem:[%s0 + $0x18] sm:$0xff]
  %v18 = vld [vmem:[%s0 + $0x20] sm:$0xf]
  %v19 = vld [vmem:[%s0 + $0x24] sm:$0xff]
  %v20 = vld [vmem:[%s0 + $0x2c] sm:$0xff]
  %v21 = vld [vmem:[%s0 + $0x34] sm:$0xff]
  %v22 = vld [vmem:[%s0 + $0x3c] sm:$0xff]
  %v23 = vld [vmem:[%s0 + $0x44] sm:$0xf]
  %v24 = vld [vmem:[%s0 + $0x48] sm:$0xff]
  %v25 = vld [vmem:[%s0 + $0x50] sm:$0xff]
  %v26 = vld [vmem:[%s0 + $0x58] sm:$0xff]
  %v27 = vld [vmem:[%s0 + $0x60] sm:$0xff]
  %v28 = vld [vmem:[%s0 + $0x68] sm:$0xf]
  %v29 = vld [vmem:[%s1] sm:$0xf]
  %v30 = vld [vmem:[%s1 + $0x4] sm:$0xf]
  %v31 = vld [vmem:[%s1 + $0x8] sm:$0xf]
  %v32 = vld [vmem:[%s1 + $0xc] sm:$0xf]
  %v33 = vld [vmem:[%s1 + $0x10] sm:$0xf]
  %v34 = vld [vmem:[%s1 + $0x14] sm:$0xf]
  %v35 = vld [vmem:[%s1 + $0x18] sm:$0xf]
  %v36 = vld [vmem:[%s1 + $0x1c] sm:$0xf]
  %v37 = vld [vmem:[%s1 + $0x20] sm:$0xf]
  %v38 = vld [vmem:[%s1 + $0x24] sm:$0xf]
  %v39 = vld [vmem:[%s1 + $0x28] sm:$0xf]
  %v40 = vld [vmem:[%s1 + $0x2c] sm:$0xf]
  %v41 = vld [vmem:[%s1 + $0x30] sm:$0xf]
  %v42 = vld [vmem:[%s1 + $0x34] sm:$0xf]
  %v43 = vld [vmem:[%s1 + $0x38] sm:$0xf]
  %v44 = vld [vmem:[%s1 + $0x3c] sm:$0xf]
  %v45 = vld [vmem:[%s1 + $0x40] sm:$0xf]
  %v46 = vld [vmem:[%s1 + $0x44] sm:$0xf]
  %v47 = vld [vmem:[%s1 + $0x48] sm:$0xf]
  %v48 = vld [vmem:[%s1 + $0x4c] sm:$0xf]
  %v49 = vld [vmem:[%s1 + $0x50] sm:$0xf]
  %v50 = vld [vmem:[%s1 + $0x54] sm:$0xf]
  %v51 = vld [vmem:[%s1 + $0x58] sm:$0xf]
  %v52 = vld [vmem:[%s1 + $0x5c] sm:$0xf]
  %v53 = vld [vmem:[%s1 + $0x60] sm:$0xf]
  %v54 = vld [vmem:[%s1 + $0x64] sm:$0xf]
  %v55 = vld [vmem:[%s1 + $0x68] sm:$0xf]
  %v56 = vld [vmem:[%s1 + $0x6c] sm:$0xf]
  %v57 = vld [vmem:[%s1 + $0x70] sm:$0xf]
  %v58 = vld [vmem:[%s1 + $0x74] sm:$0xf]
  %v59 = vld [vmem:[%s1 + $0x78] sm:$0xf]
  %v60 = vld [vmem:[%s1 + $0x7c] sm:$0xf]
  %v61 = vld [vmem:[%s1 + $0x80] sm:$0xf]
  %v62 = vld [vmem:[%s1 + $0x84] sm:$0xf]
  %v63 = vld [vmem:[%s1 + $0x88] sm:$0xf]
  %v64 = vld [vmem:[%s1 + $0x8c] sm:$0xf]
  %v65 = vld [vmem:[%s1 + $0x90] sm:$0xf]
  %v66 = vld [vmem:[%s1 + $0x94] sm:$0xf]
  %v67 = vld [vmem:[%s1 + $0x98] sm:$0xf]
  %v68 = vld [vmem:[%s1 + $0x9c] sm:$0xf]
  %v69 = vld [vmem:[%s1 + $0xa0] sm:$0xf]
  %v70 = vld [vmem:[%s1 + $0xa4] sm:$0xf]
  %v71 = vld [vmem:[%s1 + $0xa8] sm:$0xf]
  %v72 = vld [vmem:[%s1 + $0xac] sm:$0xf]
  %v73 = vld [vmem:[%s1 + $0xb0] sm:$0xf]
  %v74 = vld [vmem:[%s1 + $0xb4] sm:$0xf]
  %v75 = vld [vmem:[%s1 + $0xb8] sm:$0xf]
  %v76 = vld [vmem:[%s1 + $0xbc] sm:$0xf]
  %v77 = vld [vmem:[%s1 + $0xc0] sm:$0xf]
  %v78 = vld [vmem:[%s1 + $0xc4] sm:$0xf]
  %v79 = vld [vmem:[%s1 + $0xc8] sm:$0xf]
  %v80 = vld [vmem:[%s1 + $0xcc] sm:$0xf]
  %v81 = vld [vmem:[%s1 + $0xd0] sm:$0xf]
  %v82 = vld [vmem:[%s1 + $0xd4] sm:$0xf]
  %v83 = vld [vmem:[%s1 + $0xd8] sm:$0xf]
  %v84 = vld [vmem:[%s1 + $0xdc] sm:$0xf]
  %v85 = vld [vmem:[%s1 + $0xe0] sm:$0xf]
  %v86 = vld [vmem:[%s1 + $0xe4] sm:$0xf]
  %v87 = vld [vmem:[%s1 + $0xe8] sm:$0xf]
  %v88 = vld [vmem:[%s1 + $0xec] sm:$0xf]
  %v89 = vld [vmem:[%s1 + $0xf0] sm:$0xf]
  %v90 = vld [vmem:[%s1 + $0xf4] sm:$0xf]
  %v91 = vld [vmem:[%s1 + $0xf8] sm:$0xf]
  %v92 = vld [vmem:[%s1 + $0xfc] sm:$0xf]
  %v93 = vld [vmem:[%s1 + $0x100] sm:$0xf]
  %v94 = vld [vmem:[%s1 + $0x104] sm:$0xf]
  %v95 = vld [vmem:[%s1 + $0x108] sm:$0xf]
  %v96 = vld [vmem:[%s1 + $0x10c] sm:$0xf]
  %v97 = vld [vmem:[%s1 + $0x110] sm:$0xf]
  %v98 = vld [vmem:[%s1 + $0x114] sm:$0xf]
  %v99 = vld [vmem:[%s1 + $0x118] sm:$0xf]
  %v100 = vld [vmem:[%s1 + $0x11c] sm:$0xf]
  %v101 = vld [vmem:[%s1 + $0x120] sm:$0xf]
  %v102 = vld [vmem:[%s1 + $0x124] sm:$0xf]
  %v103 = vld [vmem:[%s1 + $0x128] sm:$0xf]
  %v104 = vld [vmem:[%s1 + $0x12c] sm:$0xf]
  %v105 = vld [vmem:[%s1 + $0x130] sm:$0xf]
  %v106 = vld [vmem:[%s1 + $0x134] sm:$0xf]
  %v107 = vld [vmem:[%s1 + $0x138] sm:$0xf]
  %v108 = vld [vmem:[%s1 + $0x13c] sm:$0xf]
  %v109 = vld [vmem:[%s1 + $0x140] sm:$0xf]
  %v110 = vld [vmem:[%s1 + $0x144] sm:$0xf]
  %v111 = vld [vmem:[%s1 + $0x148] sm:$0xf]
  %v112 = vld [vmem:[%s1 + $0x14c] sm:$0xf]
  %v113 = vld [vmem:[%s1 + $0x150] sm:$0xf]
  %v114 = vld [vmem:[%s1 + $0x154] sm:$0xf]
  %v115 = vld [vmem:[%s1 + $0x158] sm:$0xf]
  %v116 = vld [vmem:[%s1 + $0x15c] sm:$0xf]
  %v117 = vld [vmem:[%s1 + $0x160] sm:$0xf]
  %v118 = vld [vmem:[%s1 + $0x164] sm:$0xf]
  %v119 = vld [vmem:[%s1 + $0x168] sm:$0xf]
  %v120 = vld [vmem:[%s1 + $0x16c] sm:$0xf]
  %v121 = vld [vmem:[%s1 + $0x170] sm:$0xf]
  %v122 = vld [vmem:[%s1 + $0x174] sm:$0xf]
  %v123 = vld [vmem:[%s1 + $0x178] sm:$0xf]
  %v124 = vld [vmem:[%s1 + $0x17c] sm:$0xf]
  %v125 = vld [vmem:[%s1 + $0x180] sm:$0xf]
  %v126 = vld [vmem:[%s1 + $0x184] sm:$0xf]
  %v127 = vld [vmem:[%s1 + $0x188] sm:$0xf]
  %v128 = vld [vmem:[%s1 + $0x18c] sm:$0xf]
  %v129 = vld [vmem:[%s1 + $0x190] sm:$0xf]
  %v130 = vld [vmem:[%s1 + $0x194] sm:$0xf]
  %v131 = vld [vmem:[%s1 + $0x198] sm:$0xf]
  %v132 = vld [vmem:[%s1 + $0x19c] sm:$0xf]
  %v133 = vld [vmem:[%s1 + $0x1a0] sm:$0xf]
  %v134 = vld [vmem:[%s1 + $0x1a4] sm:$0xf]
  %v135 = vld [vmem:[%s1 + $0x1a8] sm:$0xf]
  %v136 = vld [vmem:[%s1 + $0x1ac] sm:$0xf]
  %v137 = vld [vmem:[%s1 + $0x1b0] sm:$0xf]
  %v138 = vld [vmem:[%s1 + $0x1b4] sm:$0xf]
  %v139 = vld [vmem:[%s1 + $0x1b8] sm:$0xf]
  %v140 = vld [vmem:[%s1 + $0x1bc] sm:$0xf]
  %v141 = vld [vmem:[%s1 + $0x1c0] sm:$0xf]
  %v142 = vld [vmem:[%s1 + $0x1c4] sm:$0xf]
  %v143 = vld [vmem:[%s1 + $0x1c8] sm:$0xf]
  %v144 = vld [vmem:[%s1 + $0x1cc] sm:$0xf]
  %v145 = vld [vmem:[%s1 + $0x1d0] sm:$0xf]
  %v146 = vld [vmem:[%s1 + $0x1d4] sm:$0xf]
  %v147 = vld [vmem:[%s1 + $0x1d8] sm:$0xf]
  %v148 = vld [vmem:[%s1 + $0x1dc] sm:$0xf]
  %v149 = vld [vmem:[%s1 + $0x1e0] sm:$0xf]
  %v150 = vld [vmem:[%s1 + $0x1e4] sm:$0xf]
  %v151 = vld [vmem:[%s1 + $0x1e8] sm:$0xf]
  %v152 = vld [vmem:[%s1 + $0x1ec] sm:$0xf]
  %v153 = vld [vmem:[%s1 + $0x1f0] sm:$0xf]
  %v154 = vld [vmem:[%s1 + $0x1f4] sm:$0xf]
  %v155 = vld [vmem:[%s1 + $0x1f8] sm:$0xf]
  %v156 = vld [vmem:[%s1 + $0x1fc] sm:$0xf]
  %v157 = vld [vmem:[%s1 + $0x200] sm:$0xf]
  %v158 = vld [vmem:[%s1 + $0x204] sm:$0xf]
  %v159 = vld [vmem:[%s1 + $0x208] sm:$0xf]
  %v160 = vld [vmem:[%s1 + $0x20c] sm:$0xf]
  %v161 = vld [vmem:[%s1 + $0x210] sm:$0xf]
  %v162 = vld [vmem:[%s1 + $0x214] sm:$0xf]
  %v163 = vld [vmem:[%s1 + $0x218] sm:$0xf]
  %v164 = vld [vmem:[%s1 + $0x21c] sm:$0xf]
  %v165 = vld [vmem:[%s1 + $0x220] sm:$0xf]
  %v166 = vld [vmem:[%s1 + $0x224] sm:$0xf]
  %v167 = vld [vmem:[%s1 + $0x228] sm:$0xf]
  %v168 = vld [vmem:[%s1 + $0x22c] sm:$0xf]
  %v169 = vld [vmem:[%s1 + $0x230] sm:$0xf]
  %v170 = vld [vmem:[%s1 + $0x234] sm:$0xf]
  %v171 = vld [vmem:[%s1 + $0x238] sm:$0xf]
  %v172 = vld [vmem:[%s1 + $0x23c] sm:$0xf]
  %v173 = vld [vmem:[%s2] sm:$0x1]
  %v175 = vperm.slane %v173, 0
  %v192 = vunpack.c.l.b16 %v14
  %v193 = vunpack.c.h.b16 %v14
  %v194 = vunpack.c.l.b16 %v15
  %v195 = vunpack.c.h.b16 %v15
  %v196 = vunpack.c.l.b16 %v16
  %v197 = vunpack.c.h.b16 %v16
  %v198 = vunpack.c.l.b16 %v17
  %v199 = vunpack.c.h.b16 %v17
  %v200 = vunpack.c.l.b16 %v18
  %v201 = vunpack.c.l.b16 %v19
  %v202 = vunpack.c.h.b16 %v19
  %v203 = vunpack.c.l.b16 %v20
  %v204 = vunpack.c.h.b16 %v20
  %v205 = vunpack.c.l.b16 %v21
  %v206 = vunpack.c.h.b16 %v21
  %v207 = vunpack.c.l.b16 %v22
  %v208 = vunpack.c.h.b16 %v22
  %v209 = vunpack.c.l.b16 %v23
  %v210 = vunpack.c.l.b16 %v24
  %v211 = vunpack.c.h.b16 %v24
  %v212 = vunpack.c.l.b16 %v25
  %v213 = vunpack.c.h.b16 %v25
  %v214 = vunpack.c.l.b16 %v26
  %v215 = vunpack.c.h.b16 %v26
  %v216 = vunpack.c.l.b16 %v27
  %v217 = vunpack.c.h.b16 %v27
  %v218 = vunpack.c.l.b16 %v28
  %v219 = vpack.c.b16 %v201, %v192
  %v220 = vpack.c.b16 %v202, %v193
  %v221 = vpack.c.b16 %v203, %v194
  %v222 = vpack.c.b16 %v204, %v195
  %v223 = vpack.c.b16 %v205, %v196
  %v224 = vpack.c.b16 %v206, %v197
  %v225 = vpack.c.b16 %v207, %v198
  %v226 = vpack.c.b16 %v208, %v199
  %v227 = vpack.c.b16 %v209, %v200
  %v228 = vpack.c.b16 %v210, %v210
  %v229 = vpack.c.b16 %v211, %v211
  %v230 = vpack.c.b16 %v212, %v212
  %v231 = vpack.c.b16 %v213, %v213
  %v232 = vpack.c.b16 %v214, %v214
  %v233 = vpack.c.b16 %v215, %v215
  %v234 = vpack.c.b16 %v216, %v216
  %v235 = vpack.c.b16 %v217, %v217
  %v236 = vpack.c.b16 %v218, %v218
  %v399 = vunpack.c.l.b16 %v29
  %v400 = vunpack.c.l.b16 %v30
  %v401 = vunpack.c.l.b16 %v31
  %v402 = vunpack.c.l.b16 %v32
  %v403 = vunpack.c.l.b16 %v33
  %v404 = vunpack.c.l.b16 %v34
  %v405 = vunpack.c.l.b16 %v35
  %v406 = vunpack.c.l.b16 %v36
  %v407 = vunpack.c.l.b16 %v37
  %v408 = vunpack.c.l.b16 %v38
  %v409 = vunpack.c.l.b16 %v39
  %v410 = vunpack.c.l.b16 %v40
  %v411 = vunpack.c.l.b16 %v41
  %v412 = vunpack.c.l.b16 %v42
  %v413 = vunpack.c.l.b16 %v43
  %v414 = vunpack.c.l.b16 %v44
  %v415 = vunpack.c.l.b16 %v45
  %v416 = vunpack.c.l.b16 %v46
  %v417 = vunpack.c.l.b16 %v47
  %v418 = vunpack.c.l.b16 %v48
  %v419 = vunpack.c.l.b16 %v49
  %v420 = vunpack.c.l.b16 %v50
  %v421 = vunpack.c.l.b16 %v51
  %v422 = vunpack.c.l.b16 %v52
  %v423 = vunpack.c.l.b16 %v53
  %v424 = vunpack.c.l.b16 %v54
  %v425 = vunpack.c.l.b16 %v55
  %v426 = vunpack.c.l.b16 %v56
  %v427 = vunpack.c.l.b16 %v57
  %v428 = vunpack.c.l.b16 %v58
  %v429 = vunpack.c.l.b16 %v59
  %v430 = vunpack.c.l.b16 %v60
  %v431 = vunpack.c.l.b16 %v61
  %v432 = vunpack.c.l.b16 %v62
  %v433 = vunpack.c.l.b16 %v63
  %v434 = vunpack.c.l.b16 %v64
  %v435 = vunpack.c.l.b16 %v65
  %v436 = vunpack.c.l.b16 %v66
  %v437 = vunpack.c.l.b16 %v67
  %v438 = vunpack.c.l.b16 %v68
  %v439 = vunpack.c.l.b16 %v69
  %v440 = vunpack.c.l.b16 %v70
  %v441 = vunpack.c.l.b16 %v71
  %v442 = vunpack.c.l.b16 %v72
  %v443 = vunpack.c.l.b16 %v73
  %v444 = vunpack.c.l.b16 %v74
  %v445 = vunpack.c.l.b16 %v75
  %v446 = vunpack.c.l.b16 %v76
  %v447 = vunpack.c.l.b16 %v77
  %v448 = vunpack.c.l.b16 %v78
  %v449 = vunpack.c.l.b16 %v79
  %v450 = vunpack.c.l.b16 %v80
  %v451 = vunpack.c.l.b16 %v81
  %v452 = vunpack.c.l.b16 %v82
  %v453 = vunpack.c.l.b16 %v83
  %v454 = vunpack.c.l.b16 %v84
  %v455 = vunpack.c.l.b16 %v85
  %v456 = vunpack.c.l.b16 %v86
  %v457 = vunpack.c.l.b16 %v87
  %v458 = vunpack.c.l.b16 %v88
  %v459 = vunpack.c.l.b16 %v89
  %v460 = vunpack.c.l.b16 %v90
  %v461 = vunpack.c.l.b16 %v91
  %v462 = vunpack.c.l.b16 %v92
  %v463 = vunpack.c.l.b16 %v93
  %v464 = vunpack.c.l.b16 %v94
  %v465 = vunpack.c.l.b16 %v95
  %v466 = vunpack.c.l.b16 %v96
  %v467 = vunpack.c.l.b16 %v97
  %v468 = vunpack.c.l.b16 %v98
  %v469 = vunpack.c.l.b16 %v99
  %v470 = vunpack.c.l.b16 %v100
  %v471 = vunpack.c.l.b16 %v101
  %v472 = vunpack.c.l.b16 %v102
  %v473 = vunpack.c.l.b16 %v103
  %v474 = vunpack.c.l.b16 %v104
  %v475 = vunpack.c.l.b16 %v105
  %v476 = vunpack.c.l.b16 %v106
  %v477 = vunpack.c.l.b16 %v107
  %v478 = vunpack.c.l.b16 %v108
  %v479 = vunpack.c.l.b16 %v109
  %v480 = vunpack.c.l.b16 %v110
  %v481 = vunpack.c.l.b16 %v111
  %v482 = vunpack.c.l.b16 %v112
  %v483 = vunpack.c.l.b16 %v113
  %v484 = vunpack.c.l.b16 %v114
  %v485 = vunpack.c.l.b16 %v115
  %v486 = vunpack.c.l.b16 %v116
  %v487 = vunpack.c.l.b16 %v117
  %v488 = vunpack.c.l.b16 %v118
  %v489 = vunpack.c.l.b16 %v119
  %v490 = vunpack.c.l.b16 %v120
  %v491 = vunpack.c.l.b16 %v121
  %v492 = vunpack.c.l.b16 %v122
  %v493 = vunpack.c.l.b16 %v123
  %v494 = vunpack.c.l.b16 %v124
  %v495 = vunpack.c.l.b16 %v125
  %v496 = vunpack.c.l.b16 %v126
  %v497 = vunpack.c.l.b16 %v127
  %v498 = vunpack.c.l.b16 %v128
  %v499 = vunpack.c.l.b16 %v129
  %v500 = vunpack.c.l.b16 %v130
  %v501 = vunpack.c.l.b16 %v131
  %v502 = vunpack.c.l.b16 %v132
  %v503 = vunpack.c.l.b16 %v133
  %v504 = vunpack.c.l.b16 %v134
  %v505 = vunpack.c.l.b16 %v135
  %v506 = vunpack.c.l.b16 %v136
  %v507 = vunpack.c.l.b16 %v137
  %v508 = vunpack.c.l.b16 %v138
  %v509 = vunpack.c.l.b16 %v139
  %v510 = vunpack.c.l.b16 %v140
  %v511 = vunpack.c.l.b16 %v141
  %v512 = vunpack.c.l.b16 %v142
  %v513 = vunpack.c.l.b16 %v143
  %v514 = vunpack.c.l.b16 %v144
  %v515 = vunpack.c.l.b16 %v145
  %v516 = vunpack.c.l.b16 %v146
  %v517 = vunpack.c.l.b16 %v147
  %v518 = vunpack.c.l.b16 %v148
  %v519 = vunpack.c.l.b16 %v149
  %v520 = vunpack.c.l.b16 %v150
  %v521 = vunpack.c.l.b16 %v151
  %v522 = vunpack.c.l.b16 %v152
  %v523 = vunpack.c.l.b16 %v153
  %v524 = vunpack.c.l.b16 %v154
  %v525 = vunpack.c.l.b16 %v155
  %v526 = vunpack.c.l.b16 %v156
  %v527 = vunpack.c.l.b16 %v157
  %v528 = vunpack.c.l.b16 %v158
  %v529 = vunpack.c.l.b16 %v159
  %v530 = vunpack.c.l.b16 %v160
  %v531 = vunpack.c.l.b16 %v161
  %v532 = vunpack.c.l.b16 %v162
  %v533 = vunpack.c.l.b16 %v163
  %v534 = vunpack.c.l.b16 %v164
  %v535 = vunpack.c.l.b16 %v165
  %v536 = vunpack.c.l.b16 %v166
  %v537 = vunpack.c.l.b16 %v167
  %v538 = vunpack.c.l.b16 %v168
  %v539 = vunpack.c.l.b16 %v169
  %v540 = vunpack.c.l.b16 %v170
  %v541 = vunpack.c.l.b16 %v171
  %v542 = vunpack.c.l.b16 %v172
  %v543 = vpack.c.b16 %v400, %v399
  %v544 = vpack.c.b16 %v402, %v401
  %v545 = vpack.c.b16 %v404, %v403
  %v546 = vpack.c.b16 %v406, %v405
  %v547 = vpack.c.b16 %v408, %v407
  %v548 = vpack.c.b16 %v410, %v409
  %v549 = vpack.c.b16 %v412, %v411
  %v550 = vpack.c.b16 %v414, %v413
  %v551 = vpack.c.b16 %v416, %v415
  %v552 = vpack.c.b16 %v418, %v417
  %v553 = vpack.c.b16 %v420, %v419
  %v554 = vpack.c.b16 %v422, %v421
  %v555 = vpack.c.b16 %v424, %v423
  %v556 = vpack.c.b16 %v426, %v425
  %v557 = vpack.c.b16 %v428, %v427
  %v558 = vpack.c.b16 %v430, %v429
  %v559 = vpack.c.b16 %v432, %v431
  %v560 = vpack.c.b16 %v434, %v433
  %v561 = vpack.c.b16 %v436, %v435
  %v562 = vpack.c.b16 %v438, %v437
  %v563 = vpack.c.b16 %v440, %v439
  %v564 = vpack.c.b16 %v442, %v441
  %v565 = vpack.c.b16 %v444, %v443
  %v566 = vpack.c.b16 %v446, %v445
  %v567 = vpack.c.b16 %v448, %v447
  %v568 = vpack.c.b16 %v450, %v449
  %v569 = vpack.c.b16 %v452, %v451
  %v570 = vpack.c.b16 %v454, %v453
  %v571 = vpack.c.b16 %v456, %v455
  %v572 = vpack.c.b16 %v458, %v457
  %v573 = vpack.c.b16 %v460, %v459
  %v574 = vpack.c.b16 %v462, %v461
  %v575 = vpack.c.b16 %v464, %v463
  %v576 = vpack.c.b16 %v466, %v465
  %v577 = vpack.c.b16 %v468, %v467
  %v578 = vpack.c.b16 %v470, %v469
  %v579 = vpack.c.b16 %v472, %v471
  %v580 = vpack.c.b16 %v474, %v473
  %v581 = vpack.c.b16 %v476, %v475
  %v582 = vpack.c.b16 %v478, %v477
  %v583 = vpack.c.b16 %v480, %v479
  %v584 = vpack.c.b16 %v482, %v481
  %v585 = vpack.c.b16 %v484, %v483
  %v586 = vpack.c.b16 %v486, %v485
  %v587 = vpack.c.b16 %v488, %v487
  %v588 = vpack.c.b16 %v490, %v489
  %v589 = vpack.c.b16 %v492, %v491
  %v590 = vpack.c.b16 %v494, %v493
  %v591 = vpack.c.b16 %v496, %v495
  %v592 = vpack.c.b16 %v498, %v497
  %v593 = vpack.c.b16 %v500, %v499
  %v594 = vpack.c.b16 %v502, %v501
  %v595 = vpack.c.b16 %v504, %v503
  %v596 = vpack.c.b16 %v506, %v505
  %v597 = vpack.c.b16 %v508, %v507
  %v598 = vpack.c.b16 %v510, %v509
  %v599 = vpack.c.b16 %v512, %v511
  %v600 = vpack.c.b16 %v514, %v513
  %v601 = vpack.c.b16 %v516, %v515
  %v602 = vpack.c.b16 %v518, %v517
  %v603 = vpack.c.b16 %v520, %v519
  %v604 = vpack.c.b16 %v522, %v521
  %v605 = vpack.c.b16 %v524, %v523
  %v606 = vpack.c.b16 %v526, %v525
  %v607 = vpack.c.b16 %v528, %v527
  %v608 = vpack.c.b16 %v530, %v529
  %v609 = vpack.c.b16 %v532, %v531
  %v610 = vpack.c.b16 %v534, %v533
  %v611 = vpack.c.b16 %v536, %v535
  %v612 = vpack.c.b16 %v538, %v537
  %v613 = vpack.c.b16 %v540, %v539
  %v614 = vpack.c.b16 %v542, %v541
  %687 = vmatpush.bf16.msra.mxu0 %v550
  %688 = vmatpush.bf16.msra.mxu0 %v549
  %689 = vmatpush.bf16.msra.mxu0 %v548
  %690 = vmatpush.bf16.msra.mxu0 %v547
  %691 = vmatpush.bf16.msra.mxu0 %v546
  %692 = vmatpush.bf16.msra.mxu0 %v545
  %693 = vmatpush.bf16.msra.mxu0 %v544
  %694 = vmatpush.bf16.msra.mxu0 %v543
  %695 = vmatmul.bf16.gmra.mxu0 %v219
  %v696 = vpop.f32.mrf.mxu0
  %v697 = vadd.f32 %v175, %v696
  %v698 = vpop.f32.mrf.mxu0
  %v699 = vadd.f32 %v175, %v698
  %700 = vmatmul.bf16.gmra.mxu0 %v228
  %v701 = vpop.f32.mrf.mxu0
  %v702 = vadd.f32 %v175, %v701
  %v703 = vpop.f32.mrf.mxu0
  %704 = vdwg.mxu0
  %705 = vmatpush.bf16.msra.mxu0 %v558
  %706 = vmatpush.bf16.msra.mxu0 %v557
  %707 = vmatpush.bf16.msra.mxu0 %v556
  %708 = vmatpush.bf16.msra.mxu0 %v555
  %709 = vmatpush.bf16.msra.mxu0 %v554
  %710 = vmatpush.bf16.msra.mxu0 %v553
  %711 = vmatpush.bf16.msra.mxu0 %v552
  %712 = vmatpush.bf16.msra.mxu0 %v551
  %713 = vmatmul.bf16.gmra.mxu0 %v220
  %v714 = vpop.f32.mrf.mxu0
  %v715 = vadd.f32 %v697, %v714
  %v716 = vpop.f32.mrf.mxu0
  %v717 = vadd.f32 %v699, %v716
  %718 = vmatmul.bf16.gmra.mxu0 %v229
  %v719 = vpop.f32.mrf.mxu0
  %v720 = vadd.f32 %v702, %v719
  %v721 = vpop.f32.mrf.mxu0
  %722 = vdwg.mxu0
  %723 = vmatpush.bf16.msra.mxu0 %v566
  %724 = vmatpush.bf16.msra.mxu0 %v565
  %725 = vmatpush.bf16.msra.mxu0 %v564
  %726 = vmatpush.bf16.msra.mxu0 %v563
  %727 = vmatpush.bf16.msra.mxu0 %v562
  %728 = vmatpush.bf16.msra.mxu0 %v561
  %729 = vmatpush.bf16.msra.mxu0 %v560
  %730 = vmatpush.bf16.msra.mxu0 %v559
  %731 = vmatmul.bf16.gmra.mxu0 %v221
  %v732 = vpop.f32.mrf.mxu0
  %v733 = vadd.f32 %v715, %v732
  %v734 = vpop.f32.mrf.mxu0
  %v735 = vadd.f32 %v717, %v734
  %736 = vmatmul.bf16.gmra.mxu0 %v230
  %v737 = vpop.f32.mrf.mxu0
  %v738 = vadd.f32 %v720, %v737
  %v739 = vpop.f32.mrf.mxu0
  %740 = vdwg.mxu0
  %741 = vmatpush.bf16.msra.mxu0 %v574
  %742 = vmatpush.bf16.msra.mxu0 %v573
  %743 = vmatpush.bf16.msra.mxu0 %v572
  %744 = vmatpush.bf16.msra.mxu0 %v571
  %745 = vmatpush.bf16.msra.mxu0 %v570
  %746 = vmatpush.bf16.msra.mxu0 %v569
  %747 = vmatpush.bf16.msra.mxu0 %v568
  %748 = vmatpush.bf16.msra.mxu0 %v567
  %749 = vmatmul.bf16.gmra.mxu0 %v222
  %v750 = vpop.f32.mrf.mxu0
  %v751 = vadd.f32 %v733, %v750
  %v752 = vpop.f32.mrf.mxu0
  %v753 = vadd.f32 %v735, %v752
  %754 = vmatmul.bf16.gmra.mxu0 %v231
  %v755 = vpop.f32.mrf.mxu0
  %v756 = vadd.f32 %v738, %v755
  %v757 = vpop.f32.mrf.mxu0
  %758 = vdwg.mxu0
  %759 = vmatpush.bf16.msra.mxu0 %v582
  %760 = vmatpush.bf16.msra.mxu0 %v581
  %761 = vmatpush.bf16.msra.mxu0 %v580
  %762 = vmatpush.bf16.msra.mxu0 %v579
  %763 = vmatpush.bf16.msra.mxu0 %v578
  %764 = vmatpush.bf16.msra.mxu0 %v577
  %765 = vmatpush.bf16.msra.mxu0 %v576
  %766 = vmatpush.bf16.msra.mxu0 %v575
  %767 = vmatmul.bf16.gmra.mxu0 %v223
  %v768 = vpop.f32.mrf.mxu0
  %v769 = vadd.f32 %v751, %v768
  %v770 = vpop.f32.mrf.mxu0
  %v771 = vadd.f32 %v753, %v770
  %772 = vmatmul.bf16.gmra.mxu0 %v232
  %v773 = vpop.f32.mrf.mxu0
  %v774 = vadd.f32 %v756, %v773
  %v775 = vpop.f32.mrf.mxu0
  %776 = vdwg.mxu0
  %777 = vmatpush.bf16.msra.mxu0 %v590
  %778 = vmatpush.bf16.msra.mxu0 %v589
  %779 = vmatpush.bf16.msra.mxu0 %v588
  %780 = vmatpush.bf16.msra.mxu0 %v587
  %781 = vmatpush.bf16.msra.mxu0 %v586
  %782 = vmatpush.bf16.msra.mxu0 %v585
  %783 = vmatpush.bf16.msra.mxu0 %v584
  %784 = vmatpush.bf16.msra.mxu0 %v583
  %785 = vmatmul.bf16.gmra.mxu0 %v224
  %v786 = vpop.f32.mrf.mxu0
  %v787 = vadd.f32 %v769, %v786
  %v788 = vpop.f32.mrf.mxu0
  %v789 = vadd.f32 %v771, %v788
  %790 = vmatmul.bf16.gmra.mxu0 %v233
  %v791 = vpop.f32.mrf.mxu0
  %v792 = vadd.f32 %v774, %v791
  %v793 = vpop.f32.mrf.mxu0
  %794 = vdwg.mxu0
  %795 = vmatpush.bf16.msra.mxu0 %v598
  %796 = vmatpush.bf16.msra.mxu0 %v597
  %797 = vmatpush.bf16.msra.mxu0 %v596
  %798 = vmatpush.bf16.msra.mxu0 %v595
  %799 = vmatpush.bf16.msra.mxu0 %v594
  %800 = vmatpush.bf16.msra.mxu0 %v593
  %801 = vmatpush.bf16.msra.mxu0 %v592
  %802 = vmatpush.bf16.msra.mxu0 %v591
  %803 = vmatmul.bf16.gmra.mxu0 %v225
  %v804 = vpop.f32.mrf.mxu0
  %v805 = vadd.f32 %v787, %v804
  %v806 = vpop.f32.mrf.mxu0
  %v807 = vadd.f32 %v789, %v806
  %808 = vmatmul.bf16.gmra.mxu0 %v234
  %v809 = vpop.f32.mrf.mxu0
  %v810 = vadd.f32 %v792, %v809
  %v811 = vpop.f32.mrf.mxu0
  %812 = vdwg.mxu0
  %813 = vmatpush.bf16.msra.mxu0 %v606
  %814 = vmatpush.bf16.msra.mxu0 %v605
  %815 = vmatpush.bf16.msra.mxu0 %v604
  %816 = vmatpush.bf16.msra.mxu0 %v603
  %817 = vmatpush.bf16.msra.mxu0 %v602
  %818 = vmatpush.bf16.msra.mxu0 %v601
  %819 = vmatpush.bf16.msra.mxu0 %v600
  %820 = vmatpush.bf16.msra.mxu0 %v599
  %821 = vmatmul.bf16.gmra.mxu0 %v226
  %v822 = vpop.f32.mrf.mxu0
  %v823 = vadd.f32 %v805, %v822
  %v824 = vpop.f32.mrf.mxu0
  %v825 = vadd.f32 %v807, %v824
  %826 = vmatmul.bf16.gmra.mxu0 %v235
  %v827 = vpop.f32.mrf.mxu0
  %v828 = vadd.f32 %v810, %v827
  %v829 = vpop.f32.mrf.mxu0
  %830 = vdwg.mxu0
  %831 = vmatpush.bf16.msra.mxu0 %v614
  %832 = vmatpush.bf16.msra.mxu0 %v613
  %833 = vmatpush.bf16.msra.mxu0 %v612
  %834 = vmatpush.bf16.msra.mxu0 %v611
  %835 = vmatpush.bf16.msra.mxu0 %v610
  %836 = vmatpush.bf16.msra.mxu0 %v609
  %837 = vmatpush.bf16.msra.mxu0 %v608
  %838 = vmatpush.bf16.msra.mxu0 %v607
  %839 = vmatmul.bf16.gmra.mxu0 %v227
  %v840 = vpop.f32.mrf.mxu0
  %v841 = vadd.f32 %v823, %v840
  %v842 = vpop.f32.mrf.mxu0
  %v843 = vadd.f32 %v825, %v842
  %844 = vmatmul.bf16.gmra.mxu0 %v236
  %v845 = vpop.f32.mrf.mxu0
  %v846 = vadd.f32 %v828, %v845
  %v847 = vpop.f32.mrf.mxu0
  %848 = vdwg.mxu0
  %v849 = vmax.f32 %v841, 0.0
  %v850 = vmax.f32 %v843, 0.0
  %v851 = vmax.f32 %v846, 0.0
  %v852 = vpack.c.bf16 %v849, %v849
  %v853 = vpack.c.bf16 %v850, %v850
  %v854 = vpack.c.bf16 %v851, %v851
  %855 = vst [vmem:[%s3] sm:$0xf] %v852
  %856 = vst [vmem:[%s3 + $0x4] sm:$0xf] %v853
  %857 = vst [vmem:[%s3 + $0x8] sm:$0xf] %v854
  // Predicated region
  $region14: #{glimpse_network_forward.13} parent=0 // pred_check
    _
  $region15: #{glimpse_network_forward.13} parent=0 // pred_check_branch
    %859 = sbr.rel (0) target = $region17
  $region16: #{glimpse_network_forward.13} parent=0 // pred_region
    _
  $region17: #{glimpse_network_forward.13} parent=0 // pred_fallthru
    _
  // Predicated region
  $region18: #{glimpse_network_forward.13} parent=0 // pred_check
    _
  $region19: #{glimpse_network_forward.13} parent=0 // pred_check_branch
    %861 = sbr.rel (0) target = $region21
  $region20: #{glimpse_network_forward.13} parent=0 // pred_region
    _
  $region21: #{glimpse_network_forward.13} parent=0 // pred_fallthru
    _

// kernel: glimpse_network_forward.14
$region0: #{glimpse_network_forward.14}
  #allocation0 [shape = 'u32[]', space=smem, size = 0x4, offset = 0x4, fixed_abs, tag = 'smem constant byte address 0x4 - core index']
  #allocation1 [shape = 'u32[72,128]{1,0:T(1,128)}', space=vmem, size = 0x9000, scoped, tag = 'internal scratch']
  %s0 = inlined_call_operand.vmem [shape: bf16[24,1152], index: 0, kind: input, shape index: {}]
  %s1 = inlined_call_operand.vmem [shape: bf16[1152,128], index: 1, kind: input, shape index: {}]
  %s2 = inlined_call_operand.vmem [shape: f32[1,128], index: 2, kind: input, shape index: {}]
  %s3 = inlined_call_operand.vmem [shape: bf16[24,128], index: 3, kind: input, shape index: {}]
  %s4 = inlined_call_operand.vmem [shape: bf16[24,128], index: 4, kind: output, shape index: {}]
  %s5 = sld [smem:[#allocation0]]
  $region26: #{glimpse_network_forward.14} parent=0
    _
  %s7 = ssub.s32 1, %s5
  %s8 = scalar_select 0, %s7, %s5
  // Predicated region
  $region2: #{glimpse_network_forward.14} parent=0 // pred_check
    _
  $region3: #{glimpse_network_forward.14} parent=0 // pred_check_branch
    %10 = sbr.rel (0) target = $region5
  $region4: #{glimpse_network_forward.14} parent=0 // pred_region
    _
  $region5: #{glimpse_network_forward.14} parent=0 // pred_fallthru
    _
  // Predicated region
  $region6: #{glimpse_network_forward.14} parent=0 // pred_check
    _
  $region7: #{glimpse_network_forward.14} parent=0 // pred_check_branch
    %12 = sbr.rel (0) target = $region9
  $region8: #{glimpse_network_forward.14} parent=0 // pred_region
    _
  $region9: #{glimpse_network_forward.14} parent=0 // pred_fallthru
    _
  // Predicated region
  $region10: #{glimpse_network_forward.14} parent=0 // pred_check
    _
  $region11: #{glimpse_network_forward.14} parent=0 // pred_check_branch
    %14 = sbr.rel (0) target = $region13
  $region12: #{glimpse_network_forward.14} parent=0 // pred_region
    _
  $region13: #{glimpse_network_forward.14} parent=0 // pred_fallthru
    _
  // Predicated region
  $region14: #{glimpse_network_forward.14} parent=0 // pred_check
    _
  $region15: #{glimpse_network_forward.14} parent=0 // pred_check_branch
    %16 = sbr.rel (0) target = $region17
  $region16: #{glimpse_network_forward.14} parent=0 // pred_region
    _
  $region17: #{glimpse_network_forward.14} parent=0 // pred_fallthru
    _
  %v17 = vld [vmem:[%s0] sm:$0xff]
  %v18 = vld [vmem:[%s0 + $0x8] sm:$0xff]
  %v19 = vld [vmem:[%s0 + $0x10] sm:$0xff]
  %v20 = vld [vmem:[%s0 + $0x18] sm:$0xff]
  %v21 = vld [vmem:[%s0 + $0x20] sm:$0xf]
  %v22 = vld [vmem:[%s0 + $0x24] sm:$0xff]
  %v23 = vld [vmem:[%s0 + $0x2c] sm:$0xff]
  %v24 = vld [vmem:[%s0 + $0x34] sm:$0xff]
  %v25 = vld [vmem:[%s0 + $0x3c] sm:$0xff]
  %v26 = vld [vmem:[%s0 + $0x44] sm:$0xf]
  %v27 = vld [vmem:[%s0 + $0x48] sm:$0xff]
  %v28 = vld [vmem:[%s0 + $0x50] sm:$0xff]
  %v29 = vld [vmem:[%s0 + $0x58] sm:$0xff]
  %v30 = vld [vmem:[%s0 + $0x60] sm:$0xff]
  %v31 = vld [vmem:[%s0 + $0x68] sm:$0xf]
  %v32 = vld [vmem:[%s1] sm:$0xf]
  %v33 = vld [vmem:[%s1 + $0x4] sm:$0xf]
  %v34 = vld [vmem:[%s1 + $0x8] sm:$0xf]
  %v35 = vld [vmem:[%s1 + $0xc] sm:$0xf]
  %v36 = vld [vmem:[%s1 + $0x10] sm:$0xf]
  %v37 = vld [vmem:[%s1 + $0x14] sm:$0xf]
  %v38 = vld [vmem:[%s1 + $0x18] sm:$0xf]
  %v39 = vld [vmem:[%s1 + $0x1c] sm:$0xf]
  %v40 = vld [vmem:[%s1 + $0x20] sm:$0xf]
  %v41 = vld [vmem:[%s1 + $0x24] sm:$0xf]
  %v42 = vld [vmem:[%s1 + $0x28] sm:$0xf]
  %v43 = vld [vmem:[%s1 + $0x2c] sm:$0xf]
  %v44 = vld [vmem:[%s1 + $0x30] sm:$0xf]
  %v45 = vld [vmem:[%s1 + $0x34] sm:$0xf]
  %v46 = vld [vmem:[%s1 + $0x38] sm:$0xf]
  %v47 = vld [vmem:[%s1 + $0x3c] sm:$0xf]
  %v48 = vld [vmem:[%s1 + $0x40] sm:$0xf]
  %v49 = vld [vmem:[%s1 + $0x44] sm:$0xf]
  %v50 = vld [vmem:[%s1 + $0x48] sm:$0xf]
  %v51 = vld [vmem:[%s1 + $0x4c] sm:$0xf]
  %v52 = vld [vmem:[%s1 + $0x50] sm:$0xf]
  %v53 = vld [vmem:[%s1 + $0x54] sm:$0xf]
  %v54 = vld [vmem:[%s1 + $0x58] sm:$0xf]
  %v55 = vld [vmem:[%s1 + $0x5c] sm:$0xf]
  %v56 = vld [vmem:[%s1 + $0x60] sm:$0xf]
  %v57 = vld [vmem:[%s1 + $0x64] sm:$0xf]
  %v58 = vld [vmem:[%s1 + $0x68] sm:$0xf]
  %v59 = vld [vmem:[%s1 + $0x6c] sm:$0xf]
  %v60 = vld [vmem:[%s1 + $0x70] sm:$0xf]
  %v61 = vld [vmem:[%s1 + $0x74] sm:$0xf]
  %v62 = vld [vmem:[%s1 + $0x78] sm:$0xf]
  %v63 = vld [vmem:[%s1 + $0x7c] sm:$0xf]
  %v64 = vld [vmem:[%s1 + $0x80] sm:$0xf]
  %v65 = vld [vmem:[%s1 + $0x84] sm:$0xf]
  %v66 = vld [vmem:[%s1 + $0x88] sm:$0xf]
  %v67 = vld [vmem:[%s1 + $0x8c] sm:$0xf]
  %v68 = vld [vmem:[%s1 + $0x90] sm:$0xf]
  %v69 = vld [vmem:[%s1 + $0x94] sm:$0xf]
  %v70 = vld [vmem:[%s1 + $0x98] sm:$0xf]
  %v71 = vld [vmem:[%s1 + $0x9c] sm:$0xf]
  %v72 = vld [vmem:[%s1 + $0xa0] sm:$0xf]
  %v73 = vld [vmem:[%s1 + $0xa4] sm:$0xf]
  %v74 = vld [vmem:[%s1 + $0xa8] sm:$0xf]
  %v75 = vld [vmem:[%s1 + $0xac] sm:$0xf]
  %v76 = vld [vmem:[%s1 + $0xb0] sm:$0xf]
  %v77 = vld [vmem:[%s1 + $0xb4] sm:$0xf]
  %v78 = vld [vmem:[%s1 + $0xb8] sm:$0xf]
  %v79 = vld [vmem:[%s1 + $0xbc] sm:$0xf]
  %v80 = vld [vmem:[%s1 + $0xc0] sm:$0xf]
  %v81 = vld [vmem:[%s1 + $0xc4] sm:$0xf]
  %v82 = vld [vmem:[%s1 + $0xc8] sm:$0xf]
  %v83 = vld [vmem:[%s1 + $0xcc] sm:$0xf]
  %v84 = vld [vmem:[%s1 + $0xd0] sm:$0xf]
  %v85 = vld [vmem:[%s1 + $0xd4] sm:$0xf]
  %v86 = vld [vmem:[%s1 + $0xd8] sm:$0xf]
  %v87 = vld [vmem:[%s1 + $0xdc] sm:$0xf]
  %v88 = vld [vmem:[%s1 + $0xe0] sm:$0xf]
  %v89 = vld [vmem:[%s1 + $0xe4] sm:$0xf]
  %v90 = vld [vmem:[%s1 + $0xe8] sm:$0xf]
  %v91 = vld [vmem:[%s1 + $0xec] sm:$0xf]
  %v92 = vld [vmem:[%s1 + $0xf0] sm:$0xf]
  %v93 = vld [vmem:[%s1 + $0xf4] sm:$0xf]
  %v94 = vld [vmem:[%s1 + $0xf8] sm:$0xf]
  %v95 = vld [vmem:[%s1 + $0xfc] sm:$0xf]
  %v96 = vld [vmem:[%s1 + $0x100] sm:$0xf]
  %v97 = vld [vmem:[%s1 + $0x104] sm:$0xf]
  %v98 = vld [vmem:[%s1 + $0x108] sm:$0xf]
  %v99 = vld [vmem:[%s1 + $0x10c] sm:$0xf]
  %v100 = vld [vmem:[%s1 + $0x110] sm:$0xf]
  %v101 = vld [vmem:[%s1 + $0x114] sm:$0xf]
  %v102 = vld [vmem:[%s1 + $0x118] sm:$0xf]
  %v103 = vld [vmem:[%s1 + $0x11c] sm:$0xf]
  %v104 = vld [vmem:[%s1 + $0x120] sm:$0xf]
  %v105 = vld [vmem:[%s1 + $0x124] sm:$0xf]
  %v106 = vld [vmem:[%s1 + $0x128] sm:$0xf]
  %v107 = vld [vmem:[%s1 + $0x12c] sm:$0xf]
  %v108 = vld [vmem:[%s1 + $0x130] sm:$0xf]
  %v109 = vld [vmem:[%s1 + $0x134] sm:$0xf]
  %v110 = vld [vmem:[%s1 + $0x138] sm:$0xf]
  %v111 = vld [vmem:[%s1 + $0x13c] sm:$0xf]
  %v112 = vld [vmem:[%s1 + $0x140] sm:$0xf]
  %v113 = vld [vmem:[%s1 + $0x144] sm:$0xf]
  %v114 = vld [vmem:[%s1 + $0x148] sm:$0xf]
  %v115 = vld [vmem:[%s1 + $0x14c] sm:$0xf]
  %v116 = vld [vmem:[%s1 + $0x150] sm:$0xf]
  %v117 = vld [vmem:[%s1 + $0x154] sm:$0xf]
  %v118 = vld [vmem:[%s1 + $0x158] sm:$0xf]
  %v119 = vld [vmem:[%s1 + $0x15c] sm:$0xf]
  %v120 = vld [vmem:[%s1 + $0x160] sm:$0xf]
  %v121 = vld [vmem:[%s1 + $0x164] sm:$0xf]
  %v122 = vld [vmem:[%s1 + $0x168] sm:$0xf]
  %v123 = vld [vmem:[%s1 + $0x16c] sm:$0xf]
  %v124 = vld [vmem:[%s1 + $0x170] sm:$0xf]
  %v125 = vld [vmem:[%s1 + $0x174] sm:$0xf]
  %v126 = vld [vmem:[%s1 + $0x178] sm:$0xf]
  %v127 = vld [vmem:[%s1 + $0x17c] sm:$0xf]
  %v128 = vld [vmem:[%s1 + $0x180] sm:$0xf]
  %v129 = vld [vmem:[%s1 + $0x184] sm:$0xf]
  %v130 = vld [vmem:[%s1 + $0x188] sm:$0xf]
  %v131 = vld [vmem:[%s1 + $0x18c] sm:$0xf]
  %v132 = vld [vmem:[%s1 + $0x190] sm:$0xf]
  %v133 = vld [vmem:[%s1 + $0x194] sm:$0xf]
  %v134 = vld [vmem:[%s1 + $0x198] sm:$0xf]
  %v135 = vld [vmem:[%s1 + $0x19c] sm:$0xf]
  %v136 = vld [vmem:[%s1 + $0x1a0] sm:$0xf]
  %v137 = vld [vmem:[%s1 + $0x1a4] sm:$0xf]
  %v138 = vld [vmem:[%s1 + $0x1a8] sm:$0xf]
  %v139 = vld [vmem:[%s1 + $0x1ac] sm:$0xf]
  %v140 = vld [vmem:[%s1 + $0x1b0] sm:$0xf]
  %v141 = vld [vmem:[%s1 + $0x1b4] sm:$0xf]
  %v142 = vld [vmem:[%s1 + $0x1b8] sm:$0xf]
  %v143 = vld [vmem:[%s1 + $0x1bc] sm:$0xf]
  %v144 = vld [vmem:[%s1 + $0x1c0] sm:$0xf]
  %v145 = vld [vmem:[%s1 + $0x1c4] sm:$0xf]
  %v146 = vld [vmem:[%s1 + $0x1c8] sm:$0xf]
  %v147 = vld [vmem:[%s1 + $0x1cc] sm:$0xf]
  %v148 = vld [vmem:[%s1 + $0x1d0] sm:$0xf]
  %v149 = vld [vmem:[%s1 + $0x1d4] sm:$0xf]
  %v150 = vld [vmem:[%s1 + $0x1d8] sm:$0xf]
  %v151 = vld [vmem:[%s1 + $0x1dc] sm:$0xf]
  %v152 = vld [vmem:[%s1 + $0x1e0] sm:$0xf]
  %v153 = vld [vmem:[%s1 + $0x1e4] sm:$0xf]
  %v154 = vld [vmem:[%s1 + $0x1e8] sm:$0xf]
  %v155 = vld [vmem:[%s1 + $0x1ec] sm:$0xf]
  %v156 = vld [vmem:[%s1 + $0x1f0] sm:$0xf]
  %v157 = vld [vmem:[%s1 + $0x1f4] sm:$0xf]
  %v158 = vld [vmem:[%s1 + $0x1f8] sm:$0xf]
  %v159 = vld [vmem:[%s1 + $0x1fc] sm:$0xf]
  %v160 = vld [vmem:[%s1 + $0x200] sm:$0xf]
  %v161 = vld [vmem:[%s1 + $0x204] sm:$0xf]
  %v162 = vld [vmem:[%s1 + $0x208] sm:$0xf]
  %v163 = vld [vmem:[%s1 + $0x20c] sm:$0xf]
  %v164 = vld [vmem:[%s1 + $0x210] sm:$0xf]
  %v165 = vld [vmem:[%s1 + $0x214] sm:$0xf]
  %v166 = vld [vmem:[%s1 + $0x218] sm:$0xf]
  %v167 = vld [vmem:[%s1 + $0x21c] sm:$0xf]
  %v168 = vld [vmem:[%s1 + $0x220] sm:$0xf]
  %v169 = vld [vmem:[%s1 + $0x224] sm:$0xf]
  %v170 = vld [vmem:[%s1 + $0x228] sm:$0xf]
  %v171 = vld [vmem:[%s1 + $0x22c] sm:$0xf]
  %v172 = vld [vmem:[%s1 + $0x230] sm:$0xf]
  %v173 = vld [vmem:[%s1 + $0x234] sm:$0xf]
  %v174 = vld [vmem:[%s1 + $0x238] sm:$0xf]
  %v175 = vld [vmem:[%s1 + $0x23c] sm:$0xf]
  %v176 = vld [vmem:[%s2] sm:$0x1]
  %v178 = vperm.slane %v176, 0
  %v195 = vunpack.c.l.b16 %v17
  %v196 = vunpack.c.h.b16 %v17
  %v197 = vunpack.c.l.b16 %v18
  %v198 = vunpack.c.h.b16 %v18
  %v199 = vunpack.c.l.b16 %v19
  %v200 = vunpack.c.h.b16 %v19
  %v201 = vunpack.c.l.b16 %v20
  %v202 = vunpack.c.h.b16 %v20
  %v203 = vunpack.c.l.b16 %v21
  %v204 = vunpack.c.l.b16 %v22
  %v205 = vunpack.c.h.b16 %v22
  %v206 = vunpack.c.l.b16 %v23
  %v207 = vunpack.c.h.b16 %v23
  %v208 = vunpack.c.l.b16 %v24
  %v209 = vunpack.c.h.b16 %v24
  %v210 = vunpack.c.l.b16 %v25
  %v211 = vunpack.c.h.b16 %v25
  %v212 = vunpack.c.l.b16 %v26
  %v213 = vunpack.c.l.b16 %v27
  %v214 = vunpack.c.h.b16 %v27
  %v215 = vunpack.c.l.b16 %v28
  %v216 = vunpack.c.h.b16 %v28
  %v217 = vunpack.c.l.b16 %v29
  %v218 = vunpack.c.h.b16 %v29
  %v219 = vunpack.c.l.b16 %v30
  %v220 = vunpack.c.h.b16 %v30
  %v221 = vunpack.c.l.b16 %v31
  %v222 = vpack.c.b16 %v204, %v195
  %v223 = vpack.c.b16 %v205, %v196
  %v224 = vpack.c.b16 %v206, %v197
  %v225 = vpack.c.b16 %v207, %v198
  %v226 = vpack.c.b16 %v208, %v199
  %v227 = vpack.c.b16 %v209, %v200
  %v228 = vpack.c.b16 %v210, %v201
  %v229 = vpack.c.b16 %v211, %v202
  %v230 = vpack.c.b16 %v212, %v203
  %v231 = vpack.c.b16 %v213, %v213
  %v232 = vpack.c.b16 %v214, %v214
  %v233 = vpack.c.b16 %v215, %v215
  %v234 = vpack.c.b16 %v216, %v216
  %v235 = vpack.c.b16 %v217, %v217
  %v236 = vpack.c.b16 %v218, %v218
  %v237 = vpack.c.b16 %v219, %v219
  %v238 = vpack.c.b16 %v220, %v220
  %v239 = vpack.c.b16 %v221, %v221
  %v402 = vunpack.c.l.b16 %v32
  %v403 = vunpack.c.l.b16 %v33
  %v404 = vunpack.c.l.b16 %v34
  %v405 = vunpack.c.l.b16 %v35
  %v406 = vunpack.c.l.b16 %v36
  %v407 = vunpack.c.l.b16 %v37
  %v408 = vunpack.c.l.b16 %v38
  %v409 = vunpack.c.l.b16 %v39
  %v410 = vunpack.c.l.b16 %v40
  %v411 = vunpack.c.l.b16 %v41
  %v412 = vunpack.c.l.b16 %v42
  %v413 = vunpack.c.l.b16 %v43
  %v414 = vunpack.c.l.b16 %v44
  %v415 = vunpack.c.l.b16 %v45
  %v416 = vunpack.c.l.b16 %v46
  %v417 = vunpack.c.l.b16 %v47
  %v418 = vunpack.c.l.b16 %v48
  %v419 = vunpack.c.l.b16 %v49
  %v420 = vunpack.c.l.b16 %v50
  %v421 = vunpack.c.l.b16 %v51
  %v422 = vunpack.c.l.b16 %v52
  %v423 = vunpack.c.l.b16 %v53
  %v424 = vunpack.c.l.b16 %v54
  %v425 = vunpack.c.l.b16 %v55
  %v426 = vunpack.c.l.b16 %v56
  %v427 = vunpack.c.l.b16 %v57
  %v428 = vunpack.c.l.b16 %v58
  %v429 = vunpack.c.l.b16 %v59
  %v430 = vunpack.c.l.b16 %v60
  %v431 = vunpack.c.l.b16 %v61
  %v432 = vunpack.c.l.b16 %v62
  %v433 = vunpack.c.l.b16 %v63
  %v434 = vunpack.c.l.b16 %v64
  %v435 = vunpack.c.l.b16 %v65
  %v436 = vunpack.c.l.b16 %v66
  %v437 = vunpack.c.l.b16 %v67
  %v438 = vunpack.c.l.b16 %v68
  %v439 = vunpack.c.l.b16 %v69
  %v440 = vunpack.c.l.b16 %v70
  %v441 = vunpack.c.l.b16 %v71
  %v442 = vunpack.c.l.b16 %v72
  %v443 = vunpack.c.l.b16 %v73
  %v444 = vunpack.c.l.b16 %v74
  %v445 = vunpack.c.l.b16 %v75
  %v446 = vunpack.c.l.b16 %v76
  %v447 = vunpack.c.l.b16 %v77
  %v448 = vunpack.c.l.b16 %v78
  %v449 = vunpack.c.l.b16 %v79
  %v450 = vunpack.c.l.b16 %v80
  %v451 = vunpack.c.l.b16 %v81
  %v452 = vunpack.c.l.b16 %v82
  %v453 = vunpack.c.l.b16 %v83
  %v454 = vunpack.c.l.b16 %v84
  %v455 = vunpack.c.l.b16 %v85
  %v456 = vunpack.c.l.b16 %v86
  %v457 = vunpack.c.l.b16 %v87
  %v458 = vunpack.c.l.b16 %v88
  %v459 = vunpack.c.l.b16 %v89
  %v460 = vunpack.c.l.b16 %v90
  %v461 = vunpack.c.l.b16 %v91
  %v462 = vunpack.c.l.b16 %v92
  %v463 = vunpack.c.l.b16 %v93
  %v464 = vunpack.c.l.b16 %v94
  %v465 = vunpack.c.l.b16 %v95
  %v466 = vunpack.c.l.b16 %v96
  %v467 = vunpack.c.l.b16 %v97
  %v468 = vunpack.c.l.b16 %v98
  %v469 = vunpack.c.l.b16 %v99
  %v470 = vunpack.c.l.b16 %v100
  %v471 = vunpack.c.l.b16 %v101
  %v472 = vunpack.c.l.b16 %v102
  %v473 = vunpack.c.l.b16 %v103
  %v474 = vunpack.c.l.b16 %v104
  %v475 = vunpack.c.l.b16 %v105
  %v476 = vunpack.c.l.b16 %v106
  %v477 = vunpack.c.l.b16 %v107
  %v478 = vunpack.c.l.b16 %v108
  %v479 = vunpack.c.l.b16 %v109
  %v480 = vunpack.c.l.b16 %v110
  %v481 = vunpack.c.l.b16 %v111
  %v482 = vunpack.c.l.b16 %v112
  %v483 = vunpack.c.l.b16 %v113
  %v484 = vunpack.c.l.b16 %v114
  %v485 = vunpack.c.l.b16 %v115
  %v486 = vunpack.c.l.b16 %v116
  %v487 = vunpack.c.l.b16 %v117
  %v488 = vunpack.c.l.b16 %v118
  %v489 = vunpack.c.l.b16 %v119
  %v490 = vunpack.c.l.b16 %v120
  %v491 = vunpack.c.l.b16 %v121
  %v492 = vunpack.c.l.b16 %v122
  %v493 = vunpack.c.l.b16 %v123
  %v494 = vunpack.c.l.b16 %v124
  %v495 = vunpack.c.l.b16 %v125
  %v496 = vunpack.c.l.b16 %v126
  %v497 = vunpack.c.l.b16 %v127
  %v498 = vunpack.c.l.b16 %v128
  %v499 = vunpack.c.l.b16 %v129
  %v500 = vunpack.c.l.b16 %v130
  %v501 = vunpack.c.l.b16 %v131
  %v502 = vunpack.c.l.b16 %v132
  %v503 = vunpack.c.l.b16 %v133
  %v504 = vunpack.c.l.b16 %v134
  %v505 = vunpack.c.l.b16 %v135
  %v506 = vunpack.c.l.b16 %v136
  %v507 = vunpack.c.l.b16 %v137
  %v508 = vunpack.c.l.b16 %v138
  %v509 = vunpack.c.l.b16 %v139
  %v510 = vunpack.c.l.b16 %v140
  %v511 = vunpack.c.l.b16 %v141
  %v512 = vunpack.c.l.b16 %v142
  %v513 = vunpack.c.l.b16 %v143
  %v514 = vunpack.c.l.b16 %v144
  %v515 = vunpack.c.l.b16 %v145
  %v516 = vunpack.c.l.b16 %v146
  %v517 = vunpack.c.l.b16 %v147
  %v518 = vunpack.c.l.b16 %v148
  %v519 = vunpack.c.l.b16 %v149
  %v520 = vunpack.c.l.b16 %v150
  %v521 = vunpack.c.l.b16 %v151
  %v522 = vunpack.c.l.b16 %v152
  %v523 = vunpack.c.l.b16 %v153
  %v524 = vunpack.c.l.b16 %v154
  %v525 = vunpack.c.l.b16 %v155
  %v526 = vunpack.c.l.b16 %v156
  %v527 = vunpack.c.l.b16 %v157
  %v528 = vunpack.c.l.b16 %v158
  %v529 = vunpack.c.l.b16 %v159
  %v530 = vunpack.c.l.b16 %v160
  %v531 = vunpack.c.l.b16 %v161
  %v532 = vunpack.c.l.b16 %v162
  %v533 = vunpack.c.l.b16 %v163
  %v534 = vunpack.c.l.b16 %v164
  %v535 = vunpack.c.l.b16 %v165
  %v536 = vunpack.c.l.b16 %v166
  %v537 = vunpack.c.l.b16 %v167
  %v538 = vunpack.c.l.b16 %v168
  %v539 = vunpack.c.l.b16 %v169
  %v540 = vunpack.c.l.b16 %v170
  %v541 = vunpack.c.l.b16 %v171
  %v542 = vunpack.c.l.b16 %v172
  %v543 = vunpack.c.l.b16 %v173
  %v544 = vunpack.c.l.b16 %v174
  %v545 = vunpack.c.l.b16 %v175
  %v546 = vpack.c.b16 %v403, %v402
  %v547 = vpack.c.b16 %v405, %v404
  %v548 = vpack.c.b16 %v407, %v406
  %v549 = vpack.c.b16 %v409, %v408
  %v550 = vpack.c.b16 %v411, %v410
  %v551 = vpack.c.b16 %v413, %v412
  %v552 = vpack.c.b16 %v415, %v414
  %v553 = vpack.c.b16 %v417, %v416
  %v554 = vpack.c.b16 %v419, %v418
  %v555 = vpack.c.b16 %v421, %v420
  %v556 = vpack.c.b16 %v423, %v422
  %v557 = vpack.c.b16 %v425, %v424
  %v558 = vpack.c.b16 %v427, %v426
  %v559 = vpack.c.b16 %v429, %v428
  %v560 = vpack.c.b16 %v431, %v430
  %v561 = vpack.c.b16 %v433, %v432
  %v562 = vpack.c.b16 %v435, %v434
  %v563 = vpack.c.b16 %v437, %v436
  %v564 = vpack.c.b16 %v439, %v438
  %v565 = vpack.c.b16 %v441, %v440
  %v566 = vpack.c.b16 %v443, %v442
  %v567 = vpack.c.b16 %v445, %v444
  %v568 = vpack.c.b16 %v447, %v446
  %v569 = vpack.c.b16 %v449, %v448
  %v570 = vpack.c.b16 %v451, %v450
  %v571 = vpack.c.b16 %v453, %v452
  %v572 = vpack.c.b16 %v455, %v454
  %v573 = vpack.c.b16 %v457, %v456
  %v574 = vpack.c.b16 %v459, %v458
  %v575 = vpack.c.b16 %v461, %v460
  %v576 = vpack.c.b16 %v463, %v462
  %v577 = vpack.c.b16 %v465, %v464
  %v578 = vpack.c.b16 %v467, %v466
  %v579 = vpack.c.b16 %v469, %v468
  %v580 = vpack.c.b16 %v471, %v470
  %v581 = vpack.c.b16 %v473, %v472
  %v582 = vpack.c.b16 %v475, %v474
  %v583 = vpack.c.b16 %v477, %v476
  %v584 = vpack.c.b16 %v479, %v478
  %v585 = vpack.c.b16 %v481, %v480
  %v586 = vpack.c.b16 %v483, %v482
  %v587 = vpack.c.b16 %v485, %v484
  %v588 = vpack.c.b16 %v487, %v486
  %v589 = vpack.c.b16 %v489, %v488
  %v590 = vpack.c.b16 %v491, %v490
  %v591 = vpack.c.b16 %v493, %v492
  %v592 = vpack.c.b16 %v495, %v494
  %v593 = vpack.c.b16 %v497, %v496
  %v594 = vpack.c.b16 %v499, %v498
  %v595 = vpack.c.b16 %v501, %v500
  %v596 = vpack.c.b16 %v503, %v502
  %v597 = vpack.c.b16 %v505, %v504
  %v598 = vpack.c.b16 %v507, %v506
  %v599 = vpack.c.b16 %v509, %v508
  %v600 = vpack.c.b16 %v511, %v510
  %v601 = vpack.c.b16 %v513, %v512
  %v602 = vpack.c.b16 %v515, %v514
  %v603 = vpack.c.b16 %v517, %v516
  %v604 = vpack.c.b16 %v519, %v518
  %v605 = vpack.c.b16 %v521, %v520
  %v606 = vpack.c.b16 %v523, %v522
  %v607 = vpack.c.b16 %v525, %v524
  %v608 = vpack.c.b16 %v527, %v526
  %v609 = vpack.c.b16 %v529, %v528
  %v610 = vpack.c.b16 %v531, %v530
  %v611 = vpack.c.b16 %v533, %v532
  %v612 = vpack.c.b16 %v535, %v534
  %v613 = vpack.c.b16 %v537, %v536
  %v614 = vpack.c.b16 %v539, %v538
  %v615 = vpack.c.b16 %v541, %v540
  %v616 = vpack.c.b16 %v543, %v542
  %v617 = vpack.c.b16 %v545, %v544
  %690 = vmatpush.bf16.msra.mxu0 %v553
  %691 = vmatpush.bf16.msra.mxu0 %v552
  %692 = vmatpush.bf16.msra.mxu0 %v551
  %693 = vmatpush.bf16.msra.mxu0 %v550
  %694 = vmatpush.bf16.msra.mxu0 %v549
  %695 = vmatpush.bf16.msra.mxu0 %v548
  %696 = vmatpush.bf16.msra.mxu0 %v547
  %697 = vmatpush.bf16.msra.mxu0 %v546
  %698 = vmatmul.bf16.gmra.mxu0 %v222
  %v699 = vpop.f32.mrf.mxu0
  %v700 = vadd.f32 %v178, %v699
  %v701 = vpop.f32.mrf.mxu0
  %v702 = vadd.f32 %v178, %v701
  %703 = vmatmul.bf16.gmra.mxu0 %v231
  %v704 = vpop.f32.mrf.mxu0
  %v705 = vadd.f32 %v178, %v704
  %v706 = vpop.f32.mrf.mxu0
  %707 = vdwg.mxu0
  %708 = vmatpush.bf16.msra.mxu0 %v561
  %709 = vmatpush.bf16.msra.mxu0 %v560
  %710 = vmatpush.bf16.msra.mxu0 %v559
  %711 = vmatpush.bf16.msra.mxu0 %v558
  %712 = vmatpush.bf16.msra.mxu0 %v557
  %713 = vmatpush.bf16.msra.mxu0 %v556
  %714 = vmatpush.bf16.msra.mxu0 %v555
  %715 = vmatpush.bf16.msra.mxu0 %v554
  %716 = vmatmul.bf16.gmra.mxu0 %v223
  %v717 = vpop.f32.mrf.mxu0
  %v718 = vadd.f32 %v700, %v717
  %v719 = vpop.f32.mrf.mxu0
  %v720 = vadd.f32 %v702, %v719
  %721 = vmatmul.bf16.gmra.mxu0 %v232
  %v722 = vpop.f32.mrf.mxu0
  %v723 = vadd.f32 %v705, %v722
  %v724 = vpop.f32.mrf.mxu0
  %725 = vdwg.mxu0
  %726 = vmatpush.bf16.msra.mxu0 %v569
  %727 = vmatpush.bf16.msra.mxu0 %v568
  %728 = vmatpush.bf16.msra.mxu0 %v567
  %729 = vmatpush.bf16.msra.mxu0 %v566
  %730 = vmatpush.bf16.msra.mxu0 %v565
  %731 = vmatpush.bf16.msra.mxu0 %v564
  %732 = vmatpush.bf16.msra.mxu0 %v563
  %733 = vmatpush.bf16.msra.mxu0 %v562
  %734 = vmatmul.bf16.gmra.mxu0 %v224
  %v735 = vpop.f32.mrf.mxu0
  %v736 = vadd.f32 %v718, %v735
  %v737 = vpop.f32.mrf.mxu0
  %v738 = vadd.f32 %v720, %v737
  %739 = vmatmul.bf16.gmra.mxu0 %v233
  %v740 = vpop.f32.mrf.mxu0
  %v741 = vadd.f32 %v723, %v740
  %v742 = vpop.f32.mrf.mxu0
  %743 = vdwg.mxu0
  %744 = vmatpush.bf16.msra.mxu0 %v577
  %745 = vmatpush.bf16.msra.mxu0 %v576
  %746 = vmatpush.bf16.msra.mxu0 %v575
  %747 = vmatpush.bf16.msra.mxu0 %v574
  %748 = vmatpush.bf16.msra.mxu0 %v573
  %749 = vmatpush.bf16.msra.mxu0 %v572
  %750 = vmatpush.bf16.msra.mxu0 %v571
  %751 = vmatpush.bf16.msra.mxu0 %v570
  %752 = vmatmul.bf16.gmra.mxu0 %v225
  %v753 = vpop.f32.mrf.mxu0
  %v754 = vadd.f32 %v736, %v753
  %v755 = vpop.f32.mrf.mxu0
  %v756 = vadd.f32 %v738, %v755
  %757 = vmatmul.bf16.gmra.mxu0 %v234
  %v758 = vpop.f32.mrf.mxu0
  %v759 = vadd.f32 %v741, %v758
  %v760 = vpop.f32.mrf.mxu0
  %761 = vdwg.mxu0
  %762 = vmatpush.bf16.msra.mxu0 %v585
  %763 = vmatpush.bf16.msra.mxu0 %v584
  %764 = vmatpush.bf16.msra.mxu0 %v583
  %765 = vmatpush.bf16.msra.mxu0 %v582
  %766 = vmatpush.bf16.msra.mxu0 %v581
  %767 = vmatpush.bf16.msra.mxu0 %v580
  %768 = vmatpush.bf16.msra.mxu0 %v579
  %769 = vmatpush.bf16.msra.mxu0 %v578
  %770 = vmatmul.bf16.gmra.mxu0 %v226
  %v771 = vpop.f32.mrf.mxu0
  %v772 = vadd.f32 %v754, %v771
  %v773 = vpop.f32.mrf.mxu0
  %v774 = vadd.f32 %v756, %v773
  %775 = vmatmul.bf16.gmra.mxu0 %v235
  %v776 = vpop.f32.mrf.mxu0
  %v777 = vadd.f32 %v759, %v776
  %v778 = vpop.f32.mrf.mxu0
  %779 = vdwg.mxu0
  %780 = vmatpush.bf16.msra.mxu0 %v593
  %781 = vmatpush.bf16.msra.mxu0 %v592
  %782 = vmatpush.bf16.msra.mxu0 %v591
  %783 = vmatpush.bf16.msra.mxu0 %v590
  %784 = vmatpush.bf16.msra.mxu0 %v589
  %785 = vmatpush.bf16.msra.mxu0 %v588
  %786 = vmatpush.bf16.msra.mxu0 %v587
  %787 = vmatpush.bf16.msra.mxu0 %v586
  %788 = vmatmul.bf16.gmra.mxu0 %v227
  %v789 = vpop.f32.mrf.mxu0
  %v790 = vadd.f32 %v772, %v789
  %v791 = vpop.f32.mrf.mxu0
  %v792 = vadd.f32 %v774, %v791
  %793 = vmatmul.bf16.gmra.mxu0 %v236
  %v794 = vpop.f32.mrf.mxu0
  %v795 = vadd.f32 %v777, %v794
  %v796 = vpop.f32.mrf.mxu0
  %797 = vdwg.mxu0
  %798 = vmatpush.bf16.msra.mxu0 %v601
  %799 = vmatpush.bf16.msra.mxu0 %v600
  %800 = vmatpush.bf16.msra.mxu0 %v599
  %801 = vmatpush.bf16.msra.mxu0 %v598
  %802 = vmatpush.bf16.msra.mxu0 %v597
  %803 = vmatpush.bf16.msra.mxu0 %v596
  %804 = vmatpush.bf16.msra.mxu0 %v595
  %805 = vmatpush.bf16.msra.mxu0 %v594
  %806 = vmatmul.bf16.gmra.mxu0 %v228
  %v807 = vpop.f32.mrf.mxu0
  %v808 = vadd.f32 %v790, %v807
  %v809 = vpop.f32.mrf.mxu0
  %v810 = vadd.f32 %v792, %v809
  %811 = vmatmul.bf16.gmra.mxu0 %v237
  %v812 = vpop.f32.mrf.mxu0
  %v813 = vadd.f32 %v795, %v812
  %v814 = vpop.f32.mrf.mxu0
  %815 = vdwg.mxu0
  %816 = vmatpush.bf16.msra.mxu0 %v609
  %817 = vmatpush.bf16.msra.mxu0 %v608
  %818 = vmatpush.bf16.msra.mxu0 %v607
  %819 = vmatpush.bf16.msra.mxu0 %v606
  %820 = vmatpush.bf16.msra.mxu0 %v605
  %821 = vmatpush.bf16.msra.mxu0 %v604
  %822 = vmatpush.bf16.msra.mxu0 %v603
  %823 = vmatpush.bf16.msra.mxu0 %v602
  %824 = vmatmul.bf16.gmra.mxu0 %v229
  %v825 = vpop.f32.mrf.mxu0
  %v826 = vadd.f32 %v808, %v825
  %v827 = vpop.f32.mrf.mxu0
  %v828 = vadd.f32 %v810, %v827
  %829 = vmatmul.bf16.gmra.mxu0 %v238
  %v830 = vpop.f32.mrf.mxu0
  %v831 = vadd.f32 %v813, %v830
  %v832 = vpop.f32.mrf.mxu0
  %833 = vdwg.mxu0
  %834 = vmatpush.bf16.msra.mxu0 %v617
  %835 = vmatpush.bf16.msra.mxu0 %v616
  %836 = vmatpush.bf16.msra.mxu0 %v615
  %837 = vmatpush.bf16.msra.mxu0 %v614
  %838 = vmatpush.bf16.msra.mxu0 %v613
  %839 = vmatpush.bf16.msra.mxu0 %v612
  %840 = vmatpush.bf16.msra.mxu0 %v611
  %841 = vmatpush.bf16.msra.mxu0 %v610
  %842 = vmatmul.bf16.gmra.mxu0 %v230
  %v843 = vpop.f32.mrf.mxu0
  %v844 = vadd.f32 %v826, %v843
  %v845 = vpop.f32.mrf.mxu0
  %v846 = vadd.f32 %v828, %v845
  %847 = vmatmul.bf16.gmra.mxu0 %v239
  %v848 = vpop.f32.mrf.mxu0
  %v849 = vadd.f32 %v831, %v848
  %v850 = vpop.f32.mrf.mxu0
  %851 = vdwg.mxu0
  %v852 = vld [vmem:[%s3] sm:$0xf]
  %v853 = vld [vmem:[%s3 + $0x4] sm:$0xf]
  %v854 = vld [vmem:[%s3 + $0x8] sm:$0xf]
  %v855 = vunpack.c.l.bf16 %v852
  %v856 = vunpack.c.l.bf16 %v853
  %v857 = vunpack.c.l.bf16 %v854
  %v858 = vadd.f32 %v844, %v855
  %v859 = vadd.f32 %v846, %v856
  %v860 = vadd.f32 %v849, %v857
  %v861 = vmax.f32 %v858, 0.0
  %v862 = vmax.f32 %v859, 0.0
  %v863 = vmax.f32 %v860, 0.0
  %v864 = vpack.c.bf16 %v861, %v861
  %v865 = vpack.c.bf16 %v862, %v862
  %v866 = vpack.c.bf16 %v863, %v863
  %867 = vst [vmem:[%s4] sm:$0xf] %v864
  %868 = vst [vmem:[%s4 + $0x4] sm:$0xf] %v865
  %869 = vst [vmem:[%s4 + $0x8] sm:$0xf] %v866
  // Predicated region
  $region18: #{glimpse_network_forward.14} parent=0 // pred_check
    _
  $region19: #{glimpse_network_forward.14} parent=0 // pred_check_branch
    %871 = sbr.rel (0) target = $region21
  $region20: #{glimpse_network_forward.14} parent=0 // pred_region
    _
  $region21: #{glimpse_network_forward.14} parent=0 // pred_fallthru
    _
  // Predicated region
  $region22: #{glimpse_network_forward.14} parent=0 // pred_check
    _
  $region23: #{glimpse_network_forward.14} parent=0 // pred_check_branch
    %873 = sbr.rel (0) target = $region25
  $region24: #{glimpse_network_forward.14} parent=0 // pred_region
    _
  $region25: #{glimpse_network_forward.14} parent=0 // pred_fallthru
    _

// kernel: glimpse_network_forward.18
$region0: #{glimpse_network_forward.18}
  #allocation0 [shape = 'u32[]', space=smem, size = 0x4, offset = 0x4, fixed_abs, tag = 'smem constant byte address 0x4 - core index']
  #allocation1 [shape = 'u32[72,128]{1,0:T(1,128)}', space=vmem, size = 0x9000, scoped, tag = 'internal scratch']
  %s0 = inlined_call_operand.vmem [shape: bf16[8,1152], index: 0, kind: input, shape index: {}]
  %s1 = inlined_call_operand.vmem [shape: bf16[1152,128], index: 1, kind: input, shape index: {}]
  %s2 = inlined_call_operand.vmem [shape: f32[1,128], index: 2, kind: input, shape index: {}]
  %s3 = inlined_call_operand.vmem [shape: bf16[8,128], index: 3, kind: input, shape index: {}]
  %s4 = inlined_call_operand.vmem [shape: bf16[8,128], index: 4, kind: output, shape index: {}]
  %s5 = sld [smem:[#allocation0]]
  $region26: #{glimpse_network_forward.18} parent=0
    _
  %s7 = ssub.s32 1, %s5
  %s8 = scalar_select 0, %s7, %s5
  // Predicated region
  $region2: #{glimpse_network_forward.18} parent=0 // pred_check
    _
  $region3: #{glimpse_network_forward.18} parent=0 // pred_check_branch
    %10 = sbr.rel (0) target = $region5
  $region4: #{glimpse_network_forward.18} parent=0 // pred_region
    _
  $region5: #{glimpse_network_forward.18} parent=0 // pred_fallthru
    _
  // Predicated region
  $region6: #{glimpse_network_forward.18} parent=0 // pred_check
    _
  $region7: #{glimpse_network_forward.18} parent=0 // pred_check_branch
    %12 = sbr.rel (0) target = $region9
  $region8: #{glimpse_network_forward.18} parent=0 // pred_region
    _
  $region9: #{glimpse_network_forward.18} parent=0 // pred_fallthru
    _
  // Predicated region
  $region10: #{glimpse_network_forward.18} parent=0 // pred_check
    _
  $region11: #{glimpse_network_forward.18} parent=0 // pred_check_branch
    %14 = sbr.rel (0) target = $region13
  $region12: #{glimpse_network_forward.18} parent=0 // pred_region
    _
  $region13: #{glimpse_network_forward.18} parent=0 // pred_fallthru
    _
  // Predicated region
  $region14: #{glimpse_network_forward.18} parent=0 // pred_check
    _
  $region15: #{glimpse_network_forward.18} parent=0 // pred_check_branch
    %16 = sbr.rel (0) target = $region17
  $region16: #{glimpse_network_forward.18} parent=0 // pred_region
    _
  $region17: #{glimpse_network_forward.18} parent=0 // pred_fallthru
    _
  %v17 = vld [vmem:[%s0] sm:$0xff]
  %v18 = vld [vmem:[%s0 + $0x8] sm:$0xff]
  %v19 = vld [vmem:[%s0 + $0x10] sm:$0xff]
  %v20 = vld [vmem:[%s0 + $0x18] sm:$0xff]
  %v21 = vld [vmem:[%s0 + $0x20] sm:$0xf]
  %v22 = vld [vmem:[%s1] sm:$0xf]
  %v23 = vld [vmem:[%s1 + $0x4] sm:$0xf]
  %v24 = vld [vmem:[%s1 + $0x8] sm:$0xf]
  %v25 = vld [vmem:[%s1 + $0xc] sm:$0xf]
  %v26 = vld [vmem:[%s1 + $0x10] sm:$0xf]
  %v27 = vld [vmem:[%s1 + $0x14] sm:$0xf]
  %v28 = vld [vmem:[%s1 + $0x18] sm:$0xf]
  %v29 = vld [vmem:[%s1 + $0x1c] sm:$0xf]
  %v30 = vld [vmem:[%s1 + $0x20] sm:$0xf]
  %v31 = vld [vmem:[%s1 + $0x24] sm:$0xf]
  %v32 = vld [vmem:[%s1 + $0x28] sm:$0xf]
  %v33 = vld [vmem:[%s1 + $0x2c] sm:$0xf]
  %v34 = vld [vmem:[%s1 + $0x30] sm:$0xf]
  %v35 = vld [vmem:[%s1 + $0x34] sm:$0xf]
  %v36 = vld [vmem:[%s1 + $0x38] sm:$0xf]
  %v37 = vld [vmem:[%s1 + $0x3c] sm:$0xf]
  %v38 = vld [vmem:[%s1 + $0x40] sm:$0xf]
  %v39 = vld [vmem:[%s1 + $0x44] sm:$0xf]
  %v40 = vld [vmem:[%s1 + $0x48] sm:$0xf]
  %v41 = vld [vmem:[%s1 + $0x4c] sm:$0xf]
  %v42 = vld [vmem:[%s1 + $0x50] sm:$0xf]
  %v43 = vld [vmem:[%s1 + $0x54] sm:$0xf]
  %v44 = vld [vmem:[%s1 + $0x58] sm:$0xf]
  %v45 = vld [vmem:[%s1 + $0x5c] sm:$0xf]
  %v46 = vld [vmem:[%s1 + $0x60] sm:$0xf]
  %v47 = vld [vmem:[%s1 + $0x64] sm:$0xf]
  %v48 = vld [vmem:[%s1 + $0x68] sm:$0xf]
  %v49 = vld [vmem:[%s1 + $0x6c] sm:$0xf]
  %v50 = vld [vmem:[%s1 + $0x70] sm:$0xf]
  %v51 = vld [vmem:[%s1 + $0x74] sm:$0xf]
  %v52 = vld [vmem:[%s1 + $0x78] sm:$0xf]
  %v53 = vld [vmem:[%s1 + $0x7c] sm:$0xf]
  %v54 = vld [vmem:[%s1 + $0x80] sm:$0xf]
  %v55 = vld [vmem:[%s1 + $0x84] sm:$0xf]
  %v56 = vld [vmem:[%s1 + $0x88] sm:$0xf]
  %v57 = vld [vmem:[%s1 + $0x8c] sm:$0xf]
  %v58 = vld [vmem:[%s1 + $0x90] sm:$0xf]
  %v59 = vld [vmem:[%s1 + $0x94] sm:$0xf]
  %v60 = vld [vmem:[%s1 + $0x98] sm:$0xf]
  %v61 = vld [vmem:[%s1 + $0x9c] sm:$0xf]
  %v62 = vld [vmem:[%s1 + $0xa0] sm:$0xf]
  %v63 = vld [vmem:[%s1 + $0xa4] sm:$0xf]
  %v64 = vld [vmem:[%s1 + $0xa8] sm:$0xf]
  %v65 = vld [vmem:[%s1 + $0xac] sm:$0xf]
  %v66 = vld [vmem:[%s1 + $0xb0] sm:$0xf]
  %v67 = vld [vmem:[%s1 + $0xb4] sm:$0xf]
  %v68 = vld [vmem:[%s1 + $0xb8] sm:$0xf]
  %v69 = vld [vmem:[%s1 + $0xbc] sm:$0xf]
  %v70 = vld [vmem:[%s1 + $0xc0] sm:$0xf]
  %v71 = vld [vmem:[%s1 + $0xc4] sm:$0xf]
  %v72 = vld [vmem:[%s1 + $0xc8] sm:$0xf]
  %v73 = vld [vmem:[%s1 + $0xcc] sm:$0xf]
  %v74 = vld [vmem:[%s1 + $0xd0] sm:$0xf]
  %v75 = vld [vmem:[%s1 + $0xd4] sm:$0xf]
  %v76 = vld [vmem:[%s1 + $0xd8] sm:$0xf]
  %v77 = vld [vmem:[%s1 + $0xdc] sm:$0xf]
  %v78 = vld [vmem:[%s1 + $0xe0] sm:$0xf]
  %v79 = vld [vmem:[%s1 + $0xe4] sm:$0xf]
  %v80 = vld [vmem:[%s1 + $0xe8] sm:$0xf]
  %v81 = vld [vmem:[%s1 + $0xec] sm:$0xf]
  %v82 = vld [vmem:[%s1 + $0xf0] sm:$0xf]
  %v83 = vld [vmem:[%s1 + $0xf4] sm:$0xf]
  %v84 = vld [vmem:[%s1 + $0xf8] sm:$0xf]
  %v85 = vld [vmem:[%s1 + $0xfc] sm:$0xf]
  %v86 = vld [vmem:[%s1 + $0x100] sm:$0xf]
  %v87 = vld [vmem:[%s1 + $0x104] sm:$0xf]
  %v88 = vld [vmem:[%s1 + $0x108] sm:$0xf]
  %v89 = vld [vmem:[%s1 + $0x10c] sm:$0xf]
  %v90 = vld [vmem:[%s1 + $0x110] sm:$0xf]
  %v91 = vld [vmem:[%s1 + $0x114] sm:$0xf]
  %v92 = vld [vmem:[%s1 + $0x118] sm:$0xf]
  %v93 = vld [vmem:[%s1 + $0x11c] sm:$0xf]
  %v94 = vld [vmem:[%s1 + $0x120] sm:$0xf]
  %v95 = vld [vmem:[%s1 + $0x124] sm:$0xf]
  %v96 = vld [vmem:[%s1 + $0x128] sm:$0xf]
  %v97 = vld [vmem:[%s1 + $0x12c] sm:$0xf]
  %v98 = vld [vmem:[%s1 + $0x130] sm:$0xf]
  %v99 = vld [vmem:[%s1 + $0x134] sm:$0xf]
  %v100 = vld [vmem:[%s1 + $0x138] sm:$0xf]
  %v101 = vld [vmem:[%s1 + $0x13c] sm:$0xf]
  %v102 = vld [vmem:[%s1 + $0x140] sm:$0xf]
  %v103 = vld [vmem:[%s1 + $0x144] sm:$0xf]
  %v104 = vld [vmem:[%s1 + $0x148] sm:$0xf]
  %v105 = vld [vmem:[%s1 + $0x14c] sm:$0xf]
  %v106 = vld [vmem:[%s1 + $0x150] sm:$0xf]
  %v107 = vld [vmem:[%s1 + $0x154] sm:$0xf]
  %v108 = vld [vmem:[%s1 + $0x158] sm:$0xf]
  %v109 = vld [vmem:[%s1 + $0x15c] sm:$0xf]
  %v110 = vld [vmem:[%s1 + $0x160] sm:$0xf]
  %v111 = vld [vmem:[%s1 + $0x164] sm:$0xf]
  %v112 = vld [vmem:[%s1 + $0x168] sm:$0xf]
  %v113 = vld [vmem:[%s1 + $0x16c] sm:$0xf]
  %v114 = vld [vmem:[%s1 + $0x170] sm:$0xf]
  %v115 = vld [vmem:[%s1 + $0x174] sm:$0xf]
  %v116 = vld [vmem:[%s1 + $0x178] sm:$0xf]
  %v117 = vld [vmem:[%s1 + $0x17c] sm:$0xf]
  %v118 = vld [vmem:[%s1 + $0x180] sm:$0xf]
  %v119 = vld [vmem:[%s1 + $0x184] sm:$0xf]
  %v120 = vld [vmem:[%s1 + $0x188] sm:$0xf]
  %v121 = vld [vmem:[%s1 + $0x18c] sm:$0xf]
  %v122 = vld [vmem:[%s1 + $0x190] sm:$0xf]
  %v123 = vld [vmem:[%s1 + $0x194] sm:$0xf]
  %v124 = vld [vmem:[%s1 + $0x198] sm:$0xf]
  %v125 = vld [vmem:[%s1 + $0x19c] sm:$0xf]
  %v126 = vld [vmem:[%s1 + $0x1a0] sm:$0xf]
  %v127 = vld [vmem:[%s1 + $0x1a4] sm:$0xf]
  %v128 = vld [vmem:[%s1 + $0x1a8] sm:$0xf]
  %v129 = vld [vmem:[%s1 + $0x1ac] sm:$0xf]
  %v130 = vld [vmem:[%s1 + $0x1b0] sm:$0xf]
  %v131 = vld [vmem:[%s1 + $0x1b4] sm:$0xf]
  %v132 = vld [vmem:[%s1 + $0x1b8] sm:$0xf]
  %v133 = vld [vmem:[%s1 + $0x1bc] sm:$0xf]
  %v134 = vld [vmem:[%s1 + $0x1c0] sm:$0xf]
  %v135 = vld [vmem:[%s1 + $0x1c4] sm:$0xf]
  %v136 = vld [vmem:[%s1 + $0x1c8] sm:$0xf]
  %v137 = vld [vmem:[%s1 + $0x1cc] sm:$0xf]
  %v138 = vld [vmem:[%s1 + $0x1d0] sm:$0xf]
  %v139 = vld [vmem:[%s1 + $0x1d4] sm:$0xf]
  %v140 = vld [vmem:[%s1 + $0x1d8] sm:$0xf]
  %v141 = vld [vmem:[%s1 + $0x1dc] sm:$0xf]
  %v142 = vld [vmem:[%s1 + $0x1e0] sm:$0xf]
  %v143 = vld [vmem:[%s1 + $0x1e4] sm:$0xf]
  %v144 = vld [vmem:[%s1 + $0x1e8] sm:$0xf]
  %v145 = vld [vmem:[%s1 + $0x1ec] sm:$0xf]
  %v146 = vld [vmem:[%s1 + $0x1f0] sm:$0xf]
  %v147 = vld [vmem:[%s1 + $0x1f4] sm:$0xf]
  %v148 = vld [vmem:[%s1 + $0x1f8] sm:$0xf]
  %v149 = vld [vmem:[%s1 + $0x1fc] sm:$0xf]
  %v150 = vld [vmem:[%s1 + $0x200] sm:$0xf]
  %v151 = vld [vmem:[%s1 + $0x204] sm:$0xf]
  %v152 = vld [vmem:[%s1 + $0x208] sm:$0xf]
  %v153 = vld [vmem:[%s1 + $0x20c] sm:$0xf]
  %v154 = vld [vmem:[%s1 + $0x210] sm:$0xf]
  %v155 = vld [vmem:[%s1 + $0x214] sm:$0xf]
  %v156 = vld [vmem:[%s1 + $0x218] sm:$0xf]
  %v157 = vld [vmem:[%s1 + $0x21c] sm:$0xf]
  %v158 = vld [vmem:[%s1 + $0x220] sm:$0xf]
  %v159 = vld [vmem:[%s1 + $0x224] sm:$0xf]
  %v160 = vld [vmem:[%s1 + $0x228] sm:$0xf]
  %v161 = vld [vmem:[%s1 + $0x22c] sm:$0xf]
  %v162 = vld [vmem:[%s1 + $0x230] sm:$0xf]
  %v163 = vld [vmem:[%s1 + $0x234] sm:$0xf]
  %v164 = vld [vmem:[%s1 + $0x238] sm:$0xf]
  %v165 = vld [vmem:[%s1 + $0x23c] sm:$0xf]
  %v166 = vld [vmem:[%s2] sm:$0x1]
  %v168 = vperm.slane %v166, 0
  %v175 = vunpack.c.l.b16 %v17
  %v176 = vunpack.c.h.b16 %v17
  %v177 = vunpack.c.l.b16 %v18
  %v178 = vunpack.c.h.b16 %v18
  %v179 = vunpack.c.l.b16 %v19
  %v180 = vunpack.c.h.b16 %v19
  %v181 = vunpack.c.l.b16 %v20
  %v182 = vunpack.c.h.b16 %v20
  %v183 = vunpack.c.l.b16 %v21
  %v184 = vpack.c.b16 %v175, %v175
  %v185 = vpack.c.b16 %v176, %v176
  %v186 = vpack.c.b16 %v177, %v177
  %v187 = vpack.c.b16 %v178, %v178
  %v188 = vpack.c.b16 %v179, %v179
  %v189 = vpack.c.b16 %v180, %v180
  %v190 = vpack.c.b16 %v181, %v181
  %v191 = vpack.c.b16 %v182, %v182
  %v192 = vpack.c.b16 %v183, %v183
  %v346 = vunpack.c.l.b16 %v22
  %v347 = vunpack.c.l.b16 %v23
  %v348 = vunpack.c.l.b16 %v24
  %v349 = vunpack.c.l.b16 %v25
  %v350 = vunpack.c.l.b16 %v26
  %v351 = vunpack.c.l.b16 %v27
  %v352 = vunpack.c.l.b16 %v28
  %v353 = vunpack.c.l.b16 %v29
  %v354 = vunpack.c.l.b16 %v30
  %v355 = vunpack.c.l.b16 %v31
  %v356 = vunpack.c.l.b16 %v32
  %v357 = vunpack.c.l.b16 %v33
  %v358 = vunpack.c.l.b16 %v34
  %v359 = vunpack.c.l.b16 %v35
  %v360 = vunpack.c.l.b16 %v36
  %v361 = vunpack.c.l.b16 %v37
  %v362 = vunpack.c.l.b16 %v38
  %v363 = vunpack.c.l.b16 %v39
  %v364 = vunpack.c.l.b16 %v40
  %v365 = vunpack.c.l.b16 %v41
  %v366 = vunpack.c.l.b16 %v42
  %v367 = vunpack.c.l.b16 %v43
  %v368 = vunpack.c.l.b16 %v44
  %v369 = vunpack.c.l.b16 %v45
  %v370 = vunpack.c.l.b16 %v46
  %v371 = vunpack.c.l.b16 %v47
  %v372 = vunpack.c.l.b16 %v48
  %v373 = vunpack.c.l.b16 %v49
  %v374 = vunpack.c.l.b16 %v50
  %v375 = vunpack.c.l.b16 %v51
  %v376 = vunpack.c.l.b16 %v52
  %v377 = vunpack.c.l.b16 %v53
  %v378 = vunpack.c.l.b16 %v54
  %v379 = vunpack.c.l.b16 %v55
  %v380 = vunpack.c.l.b16 %v56
  %v381 = vunpack.c.l.b16 %v57
  %v382 = vunpack.c.l.b16 %v58
  %v383 = vunpack.c.l.b16 %v59
  %v384 = vunpack.c.l.b16 %v60
  %v385 = vunpack.c.l.b16 %v61
  %v386 = vunpack.c.l.b16 %v62
  %v387 = vunpack.c.l.b16 %v63
  %v388 = vunpack.c.l.b16 %v64
  %v389 = vunpack.c.l.b16 %v65
  %v390 = vunpack.c.l.b16 %v66
  %v391 = vunpack.c.l.b16 %v67
  %v392 = vunpack.c.l.b16 %v68
  %v393 = vunpack.c.l.b16 %v69
  %v394 = vunpack.c.l.b16 %v70
  %v395 = vunpack.c.l.b16 %v71
  %v396 = vunpack.c.l.b16 %v72
  %v397 = vunpack.c.l.b16 %v73
  %v398 = vunpack.c.l.b16 %v74
  %v399 = vunpack.c.l.b16 %v75
  %v400 = vunpack.c.l.b16 %v76
  %v401 = vunpack.c.l.b16 %v77
  %v402 = vunpack.c.l.b16 %v78
  %v403 = vunpack.c.l.b16 %v79
  %v404 = vunpack.c.l.b16 %v80
  %v405 = vunpack.c.l.b16 %v81
  %v406 = vunpack.c.l.b16 %v82
  %v407 = vunpack.c.l.b16 %v83
  %v408 = vunpack.c.l.b16 %v84
  %v409 = vunpack.c.l.b16 %v85
  %v410 = vunpack.c.l.b16 %v86
  %v411 = vunpack.c.l.b16 %v87
  %v412 = vunpack.c.l.b16 %v88
  %v413 = vunpack.c.l.b16 %v89
  %v414 = vunpack.c.l.b16 %v90
  %v415 = vunpack.c.l.b16 %v91
  %v416 = vunpack.c.l.b16 %v92
  %v417 = vunpack.c.l.b16 %v93
  %v418 = vunpack.c.l.b16 %v94
  %v419 = vunpack.c.l.b16 %v95
  %v420 = vunpack.c.l.b16 %v96
  %v421 = vunpack.c.l.b16 %v97
  %v422 = vunpack.c.l.b16 %v98
  %v423 = vunpack.c.l.b16 %v99
  %v424 = vunpack.c.l.b16 %v100
  %v425 = vunpack.c.l.b16 %v101
  %v426 = vunpack.c.l.b16 %v102
  %v427 = vunpack.c.l.b16 %v103
  %v428 = vunpack.c.l.b16 %v104
  %v429 = vunpack.c.l.b16 %v105
  %v430 = vunpack.c.l.b16 %v106
  %v431 = vunpack.c.l.b16 %v107
  %v432 = vunpack.c.l.b16 %v108
  %v433 = vunpack.c.l.b16 %v109
  %v434 = vunpack.c.l.b16 %v110
  %v435 = vunpack.c.l.b16 %v111
  %v436 = vunpack.c.l.b16 %v112
  %v437 = vunpack.c.l.b16 %v113
  %v438 = vunpack.c.l.b16 %v114
  %v439 = vunpack.c.l.b16 %v115
  %v440 = vunpack.c.l.b16 %v116
  %v441 = vunpack.c.l.b16 %v117
  %v442 = vunpack.c.l.b16 %v118
  %v443 = vunpack.c.l.b16 %v119
  %v444 = vunpack.c.l.b16 %v120
  %v445 = vunpack.c.l.b16 %v121
  %v446 = vunpack.c.l.b16 %v122
  %v447 = vunpack.c.l.b16 %v123
  %v448 = vunpack.c.l.b16 %v124
  %v449 = vunpack.c.l.b16 %v125
  %v450 = vunpack.c.l.b16 %v126
  %v451 = vunpack.c.l.b16 %v127
  %v452 = vunpack.c.l.b16 %v128
  %v453 = vunpack.c.l.b16 %v129
  %v454 = vunpack.c.l.b16 %v130
  %v455 = vunpack.c.l.b16 %v131
  %v456 = vunpack.c.l.b16 %v132
  %v457 = vunpack.c.l.b16 %v133
  %v458 = vunpack.c.l.b16 %v134
  %v459 = vunpack.c.l.b16 %v135
  %v460 = vunpack.c.l.b16 %v136
  %v461 = vunpack.c.l.b16 %v137
  %v462 = vunpack.c.l.b16 %v138
  %v463 = vunpack.c.l.b16 %v139
  %v464 = vunpack.c.l.b16 %v140
  %v465 = vunpack.c.l.b16 %v141
  %v466 = vunpack.c.l.b16 %v142
  %v467 = vunpack.c.l.b16 %v143
  %v468 = vunpack.c.l.b16 %v144
  %v469 = vunpack.c.l.b16 %v145
  %v470 = vunpack.c.l.b16 %v146
  %v471 = vunpack.c.l.b16 %v147
  %v472 = vunpack.c.l.b16 %v148
  %v473 = vunpack.c.l.b16 %v149
  %v474 = vunpack.c.l.b16 %v150
  %v475 = vunpack.c.l.b16 %v151
  %v476 = vunpack.c.l.b16 %v152
  %v477 = vunpack.c.l.b16 %v153
  %v478 = vunpack.c.l.b16 %v154
  %v479 = vunpack.c.l.b16 %v155
  %v480 = vunpack.c.l.b16 %v156
  %v481 = vunpack.c.l.b16 %v157
  %v482 = vunpack.c.l.b16 %v158
  %v483 = vunpack.c.l.b16 %v159
  %v484 = vunpack.c.l.b16 %v160
  %v485 = vunpack.c.l.b16 %v161
  %v486 = vunpack.c.l.b16 %v162
  %v487 = vunpack.c.l.b16 %v163
  %v488 = vunpack.c.l.b16 %v164
  %v489 = vunpack.c.l.b16 %v165
  %v490 = vpack.c.b16 %v347, %v346
  %v491 = vpack.c.b16 %v349, %v348
  %v492 = vpack.c.b16 %v351, %v350
  %v493 = vpack.c.b16 %v353, %v352
  %v494 = vpack.c.b16 %v355, %v354
  %v495 = vpack.c.b16 %v357, %v356
  %v496 = vpack.c.b16 %v359, %v358
  %v497 = vpack.c.b16 %v361, %v360
  %v498 = vpack.c.b16 %v363, %v362
  %v499 = vpack.c.b16 %v365, %v364
  %v500 = vpack.c.b16 %v367, %v366
  %v501 = vpack.c.b16 %v369, %v368
  %v502 = vpack.c.b16 %v371, %v370
  %v503 = vpack.c.b16 %v373, %v372
  %v504 = vpack.c.b16 %v375, %v374
  %v505 = vpack.c.b16 %v377, %v376
  %v506 = vpack.c.b16 %v379, %v378
  %v507 = vpack.c.b16 %v381, %v380
  %v508 = vpack.c.b16 %v383, %v382
  %v509 = vpack.c.b16 %v385, %v384
  %v510 = vpack.c.b16 %v387, %v386
  %v511 = vpack.c.b16 %v389, %v388
  %v512 = vpack.c.b16 %v391, %v390
  %v513 = vpack.c.b16 %v393, %v392
  %v514 = vpack.c.b16 %v395, %v394
  %v515 = vpack.c.b16 %v397, %v396
  %v516 = vpack.c.b16 %v399, %v398
  %v517 = vpack.c.b16 %v401, %v400
  %v518 = vpack.c.b16 %v403, %v402
  %v519 = vpack.c.b16 %v405, %v404
  %v520 = vpack.c.b16 %v407, %v406
  %v521 = vpack.c.b16 %v409, %v408
  %v522 = vpack.c.b16 %v411, %v410
  %v523 = vpack.c.b16 %v413, %v412
  %v524 = vpack.c.b16 %v415, %v414
  %v525 = vpack.c.b16 %v417, %v416
  %v526 = vpack.c.b16 %v419, %v418
  %v527 = vpack.c.b16 %v421, %v420
  %v528 = vpack.c.b16 %v423, %v422
  %v529 = vpack.c.b16 %v425, %v424
  %v530 = vpack.c.b16 %v427, %v426
  %v531 = vpack.c.b16 %v429, %v428
  %v532 = vpack.c.b16 %v431, %v430
  %v533 = vpack.c.b16 %v433, %v432
  %v534 = vpack.c.b16 %v435, %v434
  %v535 = vpack.c.b16 %v437, %v436
  %v536 = vpack.c.b16 %v439, %v438
  %v537 = vpack.c.b16 %v441, %v440
  %v538 = vpack.c.b16 %v443, %v442
  %v539 = vpack.c.b16 %v445, %v444
  %v540 = vpack.c.b16 %v447, %v446
  %v541 = vpack.c.b16 %v449, %v448
  %v542 = vpack.c.b16 %v451, %v450
  %v543 = vpack.c.b16 %v453, %v452
  %v544 = vpack.c.b16 %v455, %v454
  %v545 = vpack.c.b16 %v457, %v456
  %v546 = vpack.c.b16 %v459, %v458
  %v547 = vpack.c.b16 %v461, %v460
  %v548 = vpack.c.b16 %v463, %v462
  %v549 = vpack.c.b16 %v465, %v464
  %v550 = vpack.c.b16 %v467, %v466
  %v551 = vpack.c.b16 %v469, %v468
  %v552 = vpack.c.b16 %v471, %v470
  %v553 = vpack.c.b16 %v473, %v472
  %v554 = vpack.c.b16 %v475, %v474
  %v555 = vpack.c.b16 %v477, %v476
  %v556 = vpack.c.b16 %v479, %v478
  %v557 = vpack.c.b16 %v481, %v480
  %v558 = vpack.c.b16 %v483, %v482
  %v559 = vpack.c.b16 %v485, %v484
  %v560 = vpack.c.b16 %v487, %v486
  %v561 = vpack.c.b16 %v489, %v488
  %634 = vmatpush.bf16.msra.mxu0 %v497
  %635 = vmatpush.bf16.msra.mxu0 %v496
  %636 = vmatpush.bf16.msra.mxu0 %v495
  %637 = vmatpush.bf16.msra.mxu0 %v494
  %638 = vmatpush.bf16.msra.mxu0 %v493
  %639 = vmatpush.bf16.msra.mxu0 %v492
  %640 = vmatpush.bf16.msra.mxu0 %v491
  %641 = vmatpush.bf16.msra.mxu0 %v490
  %642 = vmatmul.bf16.gmra.mxu0 %v184
  %v643 = vpop.f32.mrf.mxu0
  %v644 = vadd.f32 %v168, %v643
  %v645 = vpop.f32.mrf.mxu0
  %646 = vdwg.mxu0
  %647 = vmatpush.bf16.msra.mxu0 %v505
  %648 = vmatpush.bf16.msra.mxu0 %v504
  %649 = vmatpush.bf16.msra.mxu0 %v503
  %650 = vmatpush.bf16.msra.mxu0 %v502
  %651 = vmatpush.bf16.msra.mxu0 %v501
  %652 = vmatpush.bf16.msra.mxu0 %v500
  %653 = vmatpush.bf16.msra.mxu0 %v499
  %654 = vmatpush.bf16.msra.mxu0 %v498
  %655 = vmatmul.bf16.gmra.mxu0 %v185
  %v656 = vpop.f32.mrf.mxu0
  %v657 = vadd.f32 %v644, %v656
  %v658 = vpop.f32.mrf.mxu0
  %659 = vdwg.mxu0
  %660 = vmatpush.bf16.msra.mxu0 %v513
  %661 = vmatpush.bf16.msra.mxu0 %v512
  %662 = vmatpush.bf16.msra.mxu0 %v511
  %663 = vmatpush.bf16.msra.mxu0 %v510
  %664 = vmatpush.bf16.msra.mxu0 %v509
  %665 = vmatpush.bf16.msra.mxu0 %v508
  %666 = vmatpush.bf16.msra.mxu0 %v507
  %667 = vmatpush.bf16.msra.mxu0 %v506
  %668 = vmatmul.bf16.gmra.mxu0 %v186
  %v669 = vpop.f32.mrf.mxu0
  %v670 = vadd.f32 %v657, %v669
  %v671 = vpop.f32.mrf.mxu0
  %672 = vdwg.mxu0
  %673 = vmatpush.bf16.msra.mxu0 %v521
  %674 = vmatpush.bf16.msra.mxu0 %v520
  %675 = vmatpush.bf16.msra.mxu0 %v519
  %676 = vmatpush.bf16.msra.mxu0 %v518
  %677 = vmatpush.bf16.msra.mxu0 %v517
  %678 = vmatpush.bf16.msra.mxu0 %v516
  %679 = vmatpush.bf16.msra.mxu0 %v515
  %680 = vmatpush.bf16.msra.mxu0 %v514
  %681 = vmatmul.bf16.gmra.mxu0 %v187
  %v682 = vpop.f32.mrf.mxu0
  %v683 = vadd.f32 %v670, %v682
  %v684 = vpop.f32.mrf.mxu0
  %685 = vdwg.mxu0
  %686 = vmatpush.bf16.msra.mxu0 %v529
  %687 = vmatpush.bf16.msra.mxu0 %v528
  %688 = vmatpush.bf16.msra.mxu0 %v527
  %689 = vmatpush.bf16.msra.mxu0 %v526
  %690 = vmatpush.bf16.msra.mxu0 %v525
  %691 = vmatpush.bf16.msra.mxu0 %v524
  %692 = vmatpush.bf16.msra.mxu0 %v523
  %693 = vmatpush.bf16.msra.mxu0 %v522
  %694 = vmatmul.bf16.gmra.mxu0 %v188
  %v695 = vpop.f32.mrf.mxu0
  %v696 = vadd.f32 %v683, %v695
  %v697 = vpop.f32.mrf.mxu0
  %698 = vdwg.mxu0
  %699 = vmatpush.bf16.msra.mxu0 %v537
  %700 = vmatpush.bf16.msra.mxu0 %v536
  %701 = vmatpush.bf16.msra.mxu0 %v535
  %702 = vmatpush.bf16.msra.mxu0 %v534
  %703 = vmatpush.bf16.msra.mxu0 %v533
  %704 = vmatpush.bf16.msra.mxu0 %v532
  %705 = vmatpush.bf16.msra.mxu0 %v531
  %706 = vmatpush.bf16.msra.mxu0 %v530
  %707 = vmatmul.bf16.gmra.mxu0 %v189
  %v708 = vpop.f32.mrf.mxu0
  %v709 = vadd.f32 %v696, %v708
  %v710 = vpop.f32.mrf.mxu0
  %711 = vdwg.mxu0
  %712 = vmatpush.bf16.msra.mxu0 %v545
  %713 = vmatpush.bf16.msra.mxu0 %v544
  %714 = vmatpush.bf16.msra.mxu0 %v543
  %715 = vmatpush.bf16.msra.mxu0 %v542
  %716 = vmatpush.bf16.msra.mxu0 %v541
  %717 = vmatpush.bf16.msra.mxu0 %v540
  %718 = vmatpush.bf16.msra.mxu0 %v539
  %719 = vmatpush.bf16.msra.mxu0 %v538
  %720 = vmatmul.bf16.gmra.mxu0 %v190
  %v721 = vpop.f32.mrf.mxu0
  %v722 = vadd.f32 %v709, %v721
  %v723 = vpop.f32.mrf.mxu0
  %724 = vdwg.mxu0
  %725 = vmatpush.bf16.msra.mxu0 %v553
  %726 = vmatpush.bf16.msra.mxu0 %v552
  %727 = vmatpush.bf16.msra.mxu0 %v551
  %728 = vmatpush.bf16.msra.mxu0 %v550
  %729 = vmatpush.bf16.msra.mxu0 %v549
  %730 = vmatpush.bf16.msra.mxu0 %v548
  %731 = vmatpush.bf16.msra.mxu0 %v547
  %732 = vmatpush.bf16.msra.mxu0 %v546
  %733 = vmatmul.bf16.gmra.mxu0 %v191
  %v734 = vpop.f32.mrf.mxu0
  %v735 = vadd.f32 %v722, %v734
  %v736 = vpop.f32.mrf.mxu0
  %737 = vdwg.mxu0
  %738 = vmatpush.bf16.msra.mxu0 %v561
  %739 = vmatpush.bf16.msra.mxu0 %v560
  %740 = vmatpush.bf16.msra.mxu0 %v559
  %741 = vmatpush.bf16.msra.mxu0 %v558
  %742 = vmatpush.bf16.msra.mxu0 %v557
  %743 = vmatpush.bf16.msra.mxu0 %v556
  %744 = vmatpush.bf16.msra.mxu0 %v555
  %745 = vmatpush.bf16.msra.mxu0 %v554
  %746 = vmatmul.bf16.gmra.mxu0 %v192
  %v747 = vpop.f32.mrf.mxu0
  %v748 = vadd.f32 %v735, %v747
  %v749 = vpop.f32.mrf.mxu0
  %750 = vdwg.mxu0
  %v751 = vld [vmem:[%s3] sm:$0xf]
  %v752 = vunpack.c.l.bf16 %v751
  %v753 = vadd.f32 %v748, %v752
  %v754 = vmax.f32 %v753, 0.0
  %v755 = vpack.c.bf16 %v754, %v754
  %756 = vst [vmem:[%s4] sm:$0xf] %v755
  // Predicated region
  $region18: #{glimpse_network_forward.18} parent=0 // pred_check
    _
  $region19: #{glimpse_network_forward.18} parent=0 // pred_check_branch
    %758 = sbr.rel (0) target = $region21
  $region20: #{glimpse_network_forward.18} parent=0 // pred_region
    _
  $region21: #{glimpse_network_forward.18} parent=0 // pred_fallthru
    _
  // Predicated region
  $region22: #{glimpse_network_forward.18} parent=0 // pred_check
    _
  $region23: #{glimpse_network_forward.18} parent=0 // pred_check_branch
    %760 = sbr.rel (0) target = $region25
  $region24: #{glimpse_network_forward.18} parent=0 // pred_region
    _
  $region25: #{glimpse_network_forward.18} parent=0 // pred_fallthru
    _

// kernel: glimpse_network_forward.17
$region0: #{glimpse_network_forward.17}
  #allocation0 [shape = 'u32[]', space=smem, size = 0x4, offset = 0x4, fixed_abs, tag = 'smem constant byte address 0x4 - core index']
  #allocation1 [shape = 'u32[72,128]{1,0:T(1,128)}', space=vmem, size = 0x9000, scoped, tag = 'internal scratch']
  %s0 = inlined_call_operand.vmem [shape: bf16[8,1152], index: 0, kind: input, shape index: {}]
  %s1 = inlined_call_operand.vmem [shape: bf16[1152,128], index: 1, kind: input, shape index: {}]
  %s2 = inlined_call_operand.vmem [shape: f32[1,128], index: 2, kind: input, shape index: {}]
  %s3 = inlined_call_operand.vmem [shape: bf16[128,128], index: 3, kind: input, shape index: {}]
  %s4 = inlined_call_operand.vmem [shape: f32[1,128], index: 4, kind: input, shape index: {}]
  %s5 = inlined_call_operand.vmem [shape: bf16[8,128], index: 5, kind: output, shape index: {0}]
  %s6 = inlined_call_operand.vmem [shape: bf16[8,128], index: 6, kind: output, shape index: {1}]
  %7 = xla_tuple %s5, %s6
  %s8 = sld [smem:[#allocation0]]
  $region38: #{glimpse_network_forward.17} parent=0
    _
  %s10 = ssub.s32 1, %s8
  %s11 = scalar_select 0, %s10, %s8
  // Predicated region
  $region2: #{glimpse_network_forward.17} parent=0 // pred_check
    _
  $region3: #{glimpse_network_forward.17} parent=0 // pred_check_branch
    %13 = sbr.rel (0) target = $region5
  $region4: #{glimpse_network_forward.17} parent=0 // pred_region
    _
  $region5: #{glimpse_network_forward.17} parent=0 // pred_fallthru
    _
  // Predicated region
  $region6: #{glimpse_network_forward.17} parent=0 // pred_check
    _
  $region7: #{glimpse_network_forward.17} parent=0 // pred_check_branch
    %15 = sbr.rel (0) target = $region9
  $region8: #{glimpse_network_forward.17} parent=0 // pred_region
    _
  $region9: #{glimpse_network_forward.17} parent=0 // pred_fallthru
    _
  // Predicated region
  $region10: #{glimpse_network_forward.17} parent=0 // pred_check
    _
  $region11: #{glimpse_network_forward.17} parent=0 // pred_check_branch
    %17 = sbr.rel (0) target = $region13
  $region12: #{glimpse_network_forward.17} parent=0 // pred_region
    _
  $region13: #{glimpse_network_forward.17} parent=0 // pred_fallthru
    _
  // Predicated region
  $region14: #{glimpse_network_forward.17} parent=0 // pred_check
    _
  $region15: #{glimpse_network_forward.17} parent=0 // pred_check_branch
    %19 = sbr.rel (0) target = $region17
  $region16: #{glimpse_network_forward.17} parent=0 // pred_region
    _
  $region17: #{glimpse_network_forward.17} parent=0 // pred_fallthru
    _
  // Predicated region
  $region18: #{glimpse_network_forward.17} parent=0 // pred_check
    _
  $region19: #{glimpse_network_forward.17} parent=0 // pred_check_branch
    %21 = sbr.rel (0) target = $region21
  $region20: #{glimpse_network_forward.17} parent=0 // pred_region
    _
  $region21: #{glimpse_network_forward.17} parent=0 // pred_fallthru
    _
  %v22 = vld [vmem:[%s0] sm:$0xff]
  %v23 = vld [vmem:[%s0 + $0x8] sm:$0xff]
  %v24 = vld [vmem:[%s0 + $0x10] sm:$0xff]
  %v25 = vld [vmem:[%s0 + $0x18] sm:$0xff]
  %v26 = vld [vmem:[%s0 + $0x20] sm:$0xf]
  %v27 = vld [vmem:[%s1] sm:$0xf]
  %v28 = vld [vmem:[%s1 + $0x4] sm:$0xf]
  %v29 = vld [vmem:[%s1 + $0x8] sm:$0xf]
  %v30 = vld [vmem:[%s1 + $0xc] sm:$0xf]
  %v31 = vld [vmem:[%s1 + $0x10] sm:$0xf]
  %v32 = vld [vmem:[%s1 + $0x14] sm:$0xf]
  %v33 = vld [vmem:[%s1 + $0x18] sm:$0xf]
  %v34 = vld [vmem:[%s1 + $0x1c] sm:$0xf]
  %v35 = vld [vmem:[%s1 + $0x20] sm:$0xf]
  %v36 = vld [vmem:[%s1 + $0x24] sm:$0xf]
  %v37 = vld [vmem:[%s1 + $0x28] sm:$0xf]
  %v38 = vld [vmem:[%s1 + $0x2c] sm:$0xf]
  %v39 = vld [vmem:[%s1 + $0x30] sm:$0xf]
  %v40 = vld [vmem:[%s1 + $0x34] sm:$0xf]
  %v41 = vld [vmem:[%s1 + $0x38] sm:$0xf]
  %v42 = vld [vmem:[%s1 + $0x3c] sm:$0xf]
  %v43 = vld [vmem:[%s1 + $0x40] sm:$0xf]
  %v44 = vld [vmem:[%s1 + $0x44] sm:$0xf]
  %v45 = vld [vmem:[%s1 + $0x48] sm:$0xf]
  %v46 = vld [vmem:[%s1 + $0x4c] sm:$0xf]
  %v47 = vld [vmem:[%s1 + $0x50] sm:$0xf]
  %v48 = vld [vmem:[%s1 + $0x54] sm:$0xf]
  %v49 = vld [vmem:[%s1 + $0x58] sm:$0xf]
  %v50 = vld [vmem:[%s1 + $0x5c] sm:$0xf]
  %v51 = vld [vmem:[%s1 + $0x60] sm:$0xf]
  %v52 = vld [vmem:[%s1 + $0x64] sm:$0xf]
  %v53 = vld [vmem:[%s1 + $0x68] sm:$0xf]
  %v54 = vld [vmem:[%s1 + $0x6c] sm:$0xf]
  %v55 = vld [vmem:[%s1 + $0x70] sm:$0xf]
  %v56 = vld [vmem:[%s1 + $0x74] sm:$0xf]
  %v57 = vld [vmem:[%s1 + $0x78] sm:$0xf]
  %v58 = vld [vmem:[%s1 + $0x7c] sm:$0xf]
  %v59 = vld [vmem:[%s1 + $0x80] sm:$0xf]
  %v60 = vld [vmem:[%s1 + $0x84] sm:$0xf]
  %v61 = vld [vmem:[%s1 + $0x88] sm:$0xf]
  %v62 = vld [vmem:[%s1 + $0x8c] sm:$0xf]
  %v63 = vld [vmem:[%s1 + $0x90] sm:$0xf]
  %v64 = vld [vmem:[%s1 + $0x94] sm:$0xf]
  %v65 = vld [vmem:[%s1 + $0x98] sm:$0xf]
  %v66 = vld [vmem:[%s1 + $0x9c] sm:$0xf]
  %v67 = vld [vmem:[%s1 + $0xa0] sm:$0xf]
  %v68 = vld [vmem:[%s1 + $0xa4] sm:$0xf]
  %v69 = vld [vmem:[%s1 + $0xa8] sm:$0xf]
  %v70 = vld [vmem:[%s1 + $0xac] sm:$0xf]
  %v71 = vld [vmem:[%s1 + $0xb0] sm:$0xf]
  %v72 = vld [vmem:[%s1 + $0xb4] sm:$0xf]
  %v73 = vld [vmem:[%s1 + $0xb8] sm:$0xf]
  %v74 = vld [vmem:[%s1 + $0xbc] sm:$0xf]
  %v75 = vld [vmem:[%s1 + $0xc0] sm:$0xf]
  %v76 = vld [vmem:[%s1 + $0xc4] sm:$0xf]
  %v77 = vld [vmem:[%s1 + $0xc8] sm:$0xf]
  %v78 = vld [vmem:[%s1 + $0xcc] sm:$0xf]
  %v79 = vld [vmem:[%s1 + $0xd0] sm:$0xf]
  %v80 = vld [vmem:[%s1 + $0xd4] sm:$0xf]
  %v81 = vld [vmem:[%s1 + $0xd8] sm:$0xf]
  %v82 = vld [vmem:[%s1 + $0xdc] sm:$0xf]
  %v83 = vld [vmem:[%s1 + $0xe0] sm:$0xf]
  %v84 = vld [vmem:[%s1 + $0xe4] sm:$0xf]
  %v85 = vld [vmem:[%s1 + $0xe8] sm:$0xf]
  %v86 = vld [vmem:[%s1 + $0xec] sm:$0xf]
  %v87 = vld [vmem:[%s1 + $0xf0] sm:$0xf]
  %v88 = vld [vmem:[%s1 + $0xf4] sm:$0xf]
  %v89 = vld [vmem:[%s1 + $0xf8] sm:$0xf]
  %v90 = vld [vmem:[%s1 + $0xfc] sm:$0xf]
  %v91 = vld [vmem:[%s1 + $0x100] sm:$0xf]
  %v92 = vld [vmem:[%s1 + $0x104] sm:$0xf]
  %v93 = vld [vmem:[%s1 + $0x108] sm:$0xf]
  %v94 = vld [vmem:[%s1 + $0x10c] sm:$0xf]
  %v95 = vld [vmem:[%s1 + $0x110] sm:$0xf]
  %v96 = vld [vmem:[%s1 + $0x114] sm:$0xf]
  %v97 = vld [vmem:[%s1 + $0x118] sm:$0xf]
  %v98 = vld [vmem:[%s1 + $0x11c] sm:$0xf]
  %v99 = vld [vmem:[%s1 + $0x120] sm:$0xf]
  %v100 = vld [vmem:[%s1 + $0x124] sm:$0xf]
  %v101 = vld [vmem:[%s1 + $0x128] sm:$0xf]
  %v102 = vld [vmem:[%s1 + $0x12c] sm:$0xf]
  %v103 = vld [vmem:[%s1 + $0x130] sm:$0xf]
  %v104 = vld [vmem:[%s1 + $0x134] sm:$0xf]
  %v105 = vld [vmem:[%s1 + $0x138] sm:$0xf]
  %v106 = vld [vmem:[%s1 + $0x13c] sm:$0xf]
  %v107 = vld [vmem:[%s1 + $0x140] sm:$0xf]
  %v108 = vld [vmem:[%s1 + $0x144] sm:$0xf]
  %v109 = vld [vmem:[%s1 + $0x148] sm:$0xf]
  %v110 = vld [vmem:[%s1 + $0x14c] sm:$0xf]
  %v111 = vld [vmem:[%s1 + $0x150] sm:$0xf]
  %v112 = vld [vmem:[%s1 + $0x154] sm:$0xf]
  %v113 = vld [vmem:[%s1 + $0x158] sm:$0xf]
  %v114 = vld [vmem:[%s1 + $0x15c] sm:$0xf]
  %v115 = vld [vmem:[%s1 + $0x160] sm:$0xf]
  %v116 = vld [vmem:[%s1 + $0x164] sm:$0xf]
  %v117 = vld [vmem:[%s1 + $0x168] sm:$0xf]
  %v118 = vld [vmem:[%s1 + $0x16c] sm:$0xf]
  %v119 = vld [vmem:[%s1 + $0x170] sm:$0xf]
  %v120 = vld [vmem:[%s1 + $0x174] sm:$0xf]
  %v121 = vld [vmem:[%s1 + $0x178] sm:$0xf]
  %v122 = vld [vmem:[%s1 + $0x17c] sm:$0xf]
  %v123 = vld [vmem:[%s1 + $0x180] sm:$0xf]
  %v124 = vld [vmem:[%s1 + $0x184] sm:$0xf]
  %v125 = vld [vmem:[%s1 + $0x188] sm:$0xf]
  %v126 = vld [vmem:[%s1 + $0x18c] sm:$0xf]
  %v127 = vld [vmem:[%s1 + $0x190] sm:$0xf]
  %v128 = vld [vmem:[%s1 + $0x194] sm:$0xf]
  %v129 = vld [vmem:[%s1 + $0x198] sm:$0xf]
  %v130 = vld [vmem:[%s1 + $0x19c] sm:$0xf]
  %v131 = vld [vmem:[%s1 + $0x1a0] sm:$0xf]
  %v132 = vld [vmem:[%s1 + $0x1a4] sm:$0xf]
  %v133 = vld [vmem:[%s1 + $0x1a8] sm:$0xf]
  %v134 = vld [vmem:[%s1 + $0x1ac] sm:$0xf]
  %v135 = vld [vmem:[%s1 + $0x1b0] sm:$0xf]
  %v136 = vld [vmem:[%s1 + $0x1b4] sm:$0xf]
  %v137 = vld [vmem:[%s1 + $0x1b8] sm:$0xf]
  %v138 = vld [vmem:[%s1 + $0x1bc] sm:$0xf]
  %v139 = vld [vmem:[%s1 + $0x1c0] sm:$0xf]
  %v140 = vld [vmem:[%s1 + $0x1c4] sm:$0xf]
  %v141 = vld [vmem:[%s1 + $0x1c8] sm:$0xf]
  %v142 = vld [vmem:[%s1 + $0x1cc] sm:$0xf]
  %v143 = vld [vmem:[%s1 + $0x1d0] sm:$0xf]
  %v144 = vld [vmem:[%s1 + $0x1d4] sm:$0xf]
  %v145 = vld [vmem:[%s1 + $0x1d8] sm:$0xf]
  %v146 = vld [vmem:[%s1 + $0x1dc] sm:$0xf]
  %v147 = vld [vmem:[%s1 + $0x1e0] sm:$0xf]
  %v148 = vld [vmem:[%s1 + $0x1e4] sm:$0xf]
  %v149 = vld [vmem:[%s1 + $0x1e8] sm:$0xf]
  %v150 = vld [vmem:[%s1 + $0x1ec] sm:$0xf]
  %v151 = vld [vmem:[%s1 + $0x1f0] sm:$0xf]
  %v152 = vld [vmem:[%s1 + $0x1f4] sm:$0xf]
  %v153 = vld [vmem:[%s1 + $0x1f8] sm:$0xf]
  %v154 = vld [vmem:[%s1 + $0x1fc] sm:$0xf]
  %v155 = vld [vmem:[%s1 + $0x200] sm:$0xf]
  %v156 = vld [vmem:[%s1 + $0x204] sm:$0xf]
  %v157 = vld [vmem:[%s1 + $0x208] sm:$0xf]
  %v158 = vld [vmem:[%s1 + $0x20c] sm:$0xf]
  %v159 = vld [vmem:[%s1 + $0x210] sm:$0xf]
  %v160 = vld [vmem:[%s1 + $0x214] sm:$0xf]
  %v161 = vld [vmem:[%s1 + $0x218] sm:$0xf]
  %v162 = vld [vmem:[%s1 + $0x21c] sm:$0xf]
  %v163 = vld [vmem:[%s1 + $0x220] sm:$0xf]
  %v164 = vld [vmem:[%s1 + $0x224] sm:$0xf]
  %v165 = vld [vmem:[%s1 + $0x228] sm:$0xf]
  %v166 = vld [vmem:[%s1 + $0x22c] sm:$0xf]
  %v167 = vld [vmem:[%s1 + $0x230] sm:$0xf]
  %v168 = vld [vmem:[%s1 + $0x234] sm:$0xf]
  %v169 = vld [vmem:[%s1 + $0x238] sm:$0xf]
  %v170 = vld [vmem:[%s1 + $0x23c] sm:$0xf]
  %v171 = vld [vmem:[%s2] sm:$0x1]
  %v173 = vperm.slane %v171, 0
  %v180 = vunpack.c.l.b16 %v22
  %v181 = vunpack.c.h.b16 %v22
  %v182 = vunpack.c.l.b16 %v23
  %v183 = vunpack.c.h.b16 %v23
  %v184 = vunpack.c.l.b16 %v24
  %v185 = vunpack.c.h.b16 %v24
  %v186 = vunpack.c.l.b16 %v25
  %v187 = vunpack.c.h.b16 %v25
  %v188 = vunpack.c.l.b16 %v26
  %v189 = vpack.c.b16 %v180, %v180
  %v190 = vpack.c.b16 %v181, %v181
  %v191 = vpack.c.b16 %v182, %v182
  %v192 = vpack.c.b16 %v183, %v183
  %v193 = vpack.c.b16 %v184, %v184
  %v194 = vpack.c.b16 %v185, %v185
  %v195 = vpack.c.b16 %v186, %v186
  %v196 = vpack.c.b16 %v187, %v187
  %v197 = vpack.c.b16 %v188, %v188
  %v351 = vunpack.c.l.b16 %v27
  %v352 = vunpack.c.l.b16 %v28
  %v353 = vunpack.c.l.b16 %v29
  %v354 = vunpack.c.l.b16 %v30
  %v355 = vunpack.c.l.b16 %v31
  %v356 = vunpack.c.l.b16 %v32
  %v357 = vunpack.c.l.b16 %v33
  %v358 = vunpack.c.l.b16 %v34
  %v359 = vunpack.c.l.b16 %v35
  %v360 = vunpack.c.l.b16 %v36
  %v361 = vunpack.c.l.b16 %v37
  %v362 = vunpack.c.l.b16 %v38
  %v363 = vunpack.c.l.b16 %v39
  %v364 = vunpack.c.l.b16 %v40
  %v365 = vunpack.c.l.b16 %v41
  %v366 = vunpack.c.l.b16 %v42
  %v367 = vunpack.c.l.b16 %v43
  %v368 = vunpack.c.l.b16 %v44
  %v369 = vunpack.c.l.b16 %v45
  %v370 = vunpack.c.l.b16 %v46
  %v371 = vunpack.c.l.b16 %v47
  %v372 = vunpack.c.l.b16 %v48
  %v373 = vunpack.c.l.b16 %v49
  %v374 = vunpack.c.l.b16 %v50
  %v375 = vunpack.c.l.b16 %v51
  %v376 = vunpack.c.l.b16 %v52
  %v377 = vunpack.c.l.b16 %v53
  %v378 = vunpack.c.l.b16 %v54
  %v379 = vunpack.c.l.b16 %v55
  %v380 = vunpack.c.l.b16 %v56
  %v381 = vunpack.c.l.b16 %v57
  %v382 = vunpack.c.l.b16 %v58
  %v383 = vunpack.c.l.b16 %v59
  %v384 = vunpack.c.l.b16 %v60
  %v385 = vunpack.c.l.b16 %v61
  %v386 = vunpack.c.l.b16 %v62
  %v387 = vunpack.c.l.b16 %v63
  %v388 = vunpack.c.l.b16 %v64
  %v389 = vunpack.c.l.b16 %v65
  %v390 = vunpack.c.l.b16 %v66
  %v391 = vunpack.c.l.b16 %v67
  %v392 = vunpack.c.l.b16 %v68
  %v393 = vunpack.c.l.b16 %v69
  %v394 = vunpack.c.l.b16 %v70
  %v395 = vunpack.c.l.b16 %v71
  %v396 = vunpack.c.l.b16 %v72
  %v397 = vunpack.c.l.b16 %v73
  %v398 = vunpack.c.l.b16 %v74
  %v399 = vunpack.c.l.b16 %v75
  %v400 = vunpack.c.l.b16 %v76
  %v401 = vunpack.c.l.b16 %v77
  %v402 = vunpack.c.l.b16 %v78
  %v403 = vunpack.c.l.b16 %v79
  %v404 = vunpack.c.l.b16 %v80
  %v405 = vunpack.c.l.b16 %v81
  %v406 = vunpack.c.l.b16 %v82
  %v407 = vunpack.c.l.b16 %v83
  %v408 = vunpack.c.l.b16 %v84
  %v409 = vunpack.c.l.b16 %v85
  %v410 = vunpack.c.l.b16 %v86
  %v411 = vunpack.c.l.b16 %v87
  %v412 = vunpack.c.l.b16 %v88
  %v413 = vunpack.c.l.b16 %v89
  %v414 = vunpack.c.l.b16 %v90
  %v415 = vunpack.c.l.b16 %v91
  %v416 = vunpack.c.l.b16 %v92
  %v417 = vunpack.c.l.b16 %v93
  %v418 = vunpack.c.l.b16 %v94
  %v419 = vunpack.c.l.b16 %v95
  %v420 = vunpack.c.l.b16 %v96
  %v421 = vunpack.c.l.b16 %v97
  %v422 = vunpack.c.l.b16 %v98
  %v423 = vunpack.c.l.b16 %v99
  %v424 = vunpack.c.l.b16 %v100
  %v425 = vunpack.c.l.b16 %v101
  %v426 = vunpack.c.l.b16 %v102
  %v427 = vunpack.c.l.b16 %v103
  %v428 = vunpack.c.l.b16 %v104
  %v429 = vunpack.c.l.b16 %v105
  %v430 = vunpack.c.l.b16 %v106
  %v431 = vunpack.c.l.b16 %v107
  %v432 = vunpack.c.l.b16 %v108
  %v433 = vunpack.c.l.b16 %v109
  %v434 = vunpack.c.l.b16 %v110
  %v435 = vunpack.c.l.b16 %v111
  %v436 = vunpack.c.l.b16 %v112
  %v437 = vunpack.c.l.b16 %v113
  %v438 = vunpack.c.l.b16 %v114
  %v439 = vunpack.c.l.b16 %v115
  %v440 = vunpack.c.l.b16 %v116
  %v441 = vunpack.c.l.b16 %v117
  %v442 = vunpack.c.l.b16 %v118
  %v443 = vunpack.c.l.b16 %v119
  %v444 = vunpack.c.l.b16 %v120
  %v445 = vunpack.c.l.b16 %v121
  %v446 = vunpack.c.l.b16 %v122
  %v447 = vunpack.c.l.b16 %v123
  %v448 = vunpack.c.l.b16 %v124
  %v449 = vunpack.c.l.b16 %v125
  %v450 = vunpack.c.l.b16 %v126
  %v451 = vunpack.c.l.b16 %v127
  %v452 = vunpack.c.l.b16 %v128
  %v453 = vunpack.c.l.b16 %v129
  %v454 = vunpack.c.l.b16 %v130
  %v455 = vunpack.c.l.b16 %v131
  %v456 = vunpack.c.l.b16 %v132
  %v457 = vunpack.c.l.b16 %v133
  %v458 = vunpack.c.l.b16 %v134
  %v459 = vunpack.c.l.b16 %v135
  %v460 = vunpack.c.l.b16 %v136
  %v461 = vunpack.c.l.b16 %v137
  %v462 = vunpack.c.l.b16 %v138
  %v463 = vunpack.c.l.b16 %v139
  %v464 = vunpack.c.l.b16 %v140
  %v465 = vunpack.c.l.b16 %v141
  %v466 = vunpack.c.l.b16 %v142
  %v467 = vunpack.c.l.b16 %v143
  %v468 = vunpack.c.l.b16 %v144
  %v469 = vunpack.c.l.b16 %v145
  %v470 = vunpack.c.l.b16 %v146
  %v471 = vunpack.c.l.b16 %v147
  %v472 = vunpack.c.l.b16 %v148
  %v473 = vunpack.c.l.b16 %v149
  %v474 = vunpack.c.l.b16 %v150
  %v475 = vunpack.c.l.b16 %v151
  %v476 = vunpack.c.l.b16 %v152
  %v477 = vunpack.c.l.b16 %v153
  %v478 = vunpack.c.l.b16 %v154
  %v479 = vunpack.c.l.b16 %v155
  %v480 = vunpack.c.l.b16 %v156
  %v481 = vunpack.c.l.b16 %v157
  %v482 = vunpack.c.l.b16 %v158
  %v483 = vunpack.c.l.b16 %v159
  %v484 = vunpack.c.l.b16 %v160
  %v485 = vunpack.c.l.b16 %v161
  %v486 = vunpack.c.l.b16 %v162
  %v487 = vunpack.c.l.b16 %v163
  %v488 = vunpack.c.l.b16 %v164
  %v489 = vunpack.c.l.b16 %v165
  %v490 = vunpack.c.l.b16 %v166
  %v491 = vunpack.c.l.b16 %v167
  %v492 = vunpack.c.l.b16 %v168
  %v493 = vunpack.c.l.b16 %v169
  %v494 = vunpack.c.l.b16 %v170
  %v495 = vpack.c.b16 %v352, %v351
  %v496 = vpack.c.b16 %v354, %v353
  %v497 = vpack.c.b16 %v356, %v355
  %v498 = vpack.c.b16 %v358, %v357
  %v499 = vpack.c.b16 %v360, %v359
  %v500 = vpack.c.b16 %v362, %v361
  %v501 = vpack.c.b16 %v364, %v363
  %v502 = vpack.c.b16 %v366, %v365
  %v503 = vpack.c.b16 %v368, %v367
  %v504 = vpack.c.b16 %v370, %v369
  %v505 = vpack.c.b16 %v372, %v371
  %v506 = vpack.c.b16 %v374, %v373
  %v507 = vpack.c.b16 %v376, %v375
  %v508 = vpack.c.b16 %v378, %v377
  %v509 = vpack.c.b16 %v380, %v379
  %v510 = vpack.c.b16 %v382, %v381
  %v511 = vpack.c.b16 %v384, %v383
  %v512 = vpack.c.b16 %v386, %v385
  %v513 = vpack.c.b16 %v388, %v387
  %v514 = vpack.c.b16 %v390, %v389
  %v515 = vpack.c.b16 %v392, %v391
  %v516 = vpack.c.b16 %v394, %v393
  %v517 = vpack.c.b16 %v396, %v395
  %v518 = vpack.c.b16 %v398, %v397
  %v519 = vpack.c.b16 %v400, %v399
  %v520 = vpack.c.b16 %v402, %v401
  %v521 = vpack.c.b16 %v404, %v403
  %v522 = vpack.c.b16 %v406, %v405
  %v523 = vpack.c.b16 %v408, %v407
  %v524 = vpack.c.b16 %v410, %v409
  %v525 = vpack.c.b16 %v412, %v411
  %v526 = vpack.c.b16 %v414, %v413
  %v527 = vpack.c.b16 %v416, %v415
  %v528 = vpack.c.b16 %v418, %v417
  %v529 = vpack.c.b16 %v420, %v419
  %v530 = vpack.c.b16 %v422, %v421
  %v531 = vpack.c.b16 %v424, %v423
  %v532 = vpack.c.b16 %v426, %v425
  %v533 = vpack.c.b16 %v428, %v427
  %v534 = vpack.c.b16 %v430, %v429
  %v535 = vpack.c.b16 %v432, %v431
  %v536 = vpack.c.b16 %v434, %v433
  %v537 = vpack.c.b16 %v436, %v435
  %v538 = vpack.c.b16 %v438, %v437
  %v539 = vpack.c.b16 %v440, %v439
  %v540 = vpack.c.b16 %v442, %v441
  %v541 = vpack.c.b16 %v444, %v443
  %v542 = vpack.c.b16 %v446, %v445
  %v543 = vpack.c.b16 %v448, %v447
  %v544 = vpack.c.b16 %v450, %v449
  %v545 = vpack.c.b16 %v452, %v451
  %v546 = vpack.c.b16 %v454, %v453
  %v547 = vpack.c.b16 %v456, %v455
  %v548 = vpack.c.b16 %v458, %v457
  %v549 = vpack.c.b16 %v460, %v459
  %v550 = vpack.c.b16 %v462, %v461
  %v551 = vpack.c.b16 %v464, %v463
  %v552 = vpack.c.b16 %v466, %v465
  %v553 = vpack.c.b16 %v468, %v467
  %v554 = vpack.c.b16 %v470, %v469
  %v555 = vpack.c.b16 %v472, %v471
  %v556 = vpack.c.b16 %v474, %v473
  %v557 = vpack.c.b16 %v476, %v475
  %v558 = vpack.c.b16 %v478, %v477
  %v559 = vpack.c.b16 %v480, %v479
  %v560 = vpack.c.b16 %v482, %v481
  %v561 = vpack.c.b16 %v484, %v483
  %v562 = vpack.c.b16 %v486, %v485
  %v563 = vpack.c.b16 %v488, %v487
  %v564 = vpack.c.b16 %v490, %v489
  %v565 = vpack.c.b16 %v492, %v491
  %v566 = vpack.c.b16 %v494, %v493
  %639 = vmatpush.bf16.msra.mxu0 %v502
  %640 = vmatpush.bf16.msra.mxu0 %v501
  %641 = vmatpush.bf16.msra.mxu0 %v500
  %642 = vmatpush.bf16.msra.mxu0 %v499
  %643 = vmatpush.bf16.msra.mxu0 %v498
  %644 = vmatpush.bf16.msra.mxu0 %v497
  %645 = vmatpush.bf16.msra.mxu0 %v496
  %646 = vmatpush.bf16.msra.mxu0 %v495
  %647 = vmatmul.bf16.gmra.mxu0 %v189
  %v648 = vpop.f32.mrf.mxu0
  %v649 = vadd.f32 %v173, %v648
  %v650 = vpop.f32.mrf.mxu0
  %651 = vdwg.mxu0
  %652 = vmatpush.bf16.msra.mxu0 %v510
  %653 = vmatpush.bf16.msra.mxu0 %v509
  %654 = vmatpush.bf16.msra.mxu0 %v508
  %655 = vmatpush.bf16.msra.mxu0 %v507
  %656 = vmatpush.bf16.msra.mxu0 %v506
  %657 = vmatpush.bf16.msra.mxu0 %v505
  %658 = vmatpush.bf16.msra.mxu0 %v504
  %659 = vmatpush.bf16.msra.mxu0 %v503
  %660 = vmatmul.bf16.gmra.mxu0 %v190
  %v661 = vpop.f32.mrf.mxu0
  %v662 = vadd.f32 %v649, %v661
  %v663 = vpop.f32.mrf.mxu0
  %664 = vdwg.mxu0
  %665 = vmatpush.bf16.msra.mxu0 %v518
  %666 = vmatpush.bf16.msra.mxu0 %v517
  %667 = vmatpush.bf16.msra.mxu0 %v516
  %668 = vmatpush.bf16.msra.mxu0 %v515
  %669 = vmatpush.bf16.msra.mxu0 %v514
  %670 = vmatpush.bf16.msra.mxu0 %v513
  %671 = vmatpush.bf16.msra.mxu0 %v512
  %672 = vmatpush.bf16.msra.mxu0 %v511
  %673 = vmatmul.bf16.gmra.mxu0 %v191
  %v674 = vpop.f32.mrf.mxu0
  %v675 = vadd.f32 %v662, %v674
  %v676 = vpop.f32.mrf.mxu0
  %677 = vdwg.mxu0
  %678 = vmatpush.bf16.msra.mxu0 %v526
  %679 = vmatpush.bf16.msra.mxu0 %v525
  %680 = vmatpush.bf16.msra.mxu0 %v524
  %681 = vmatpush.bf16.msra.mxu0 %v523
  %682 = vmatpush.bf16.msra.mxu0 %v522
  %683 = vmatpush.bf16.msra.mxu0 %v521
  %684 = vmatpush.bf16.msra.mxu0 %v520
  %685 = vmatpush.bf16.msra.mxu0 %v519
  %686 = vmatmul.bf16.gmra.mxu0 %v192
  %v687 = vpop.f32.mrf.mxu0
  %v688 = vadd.f32 %v675, %v687
  %v689 = vpop.f32.mrf.mxu0
  %690 = vdwg.mxu0
  %691 = vmatpush.bf16.msra.mxu0 %v534
  %692 = vmatpush.bf16.msra.mxu0 %v533
  %693 = vmatpush.bf16.msra.mxu0 %v532
  %694 = vmatpush.bf16.msra.mxu0 %v531
  %695 = vmatpush.bf16.msra.mxu0 %v530
  %696 = vmatpush.bf16.msra.mxu0 %v529
  %697 = vmatpush.bf16.msra.mxu0 %v528
  %698 = vmatpush.bf16.msra.mxu0 %v527
  %699 = vmatmul.bf16.gmra.mxu0 %v193
  %v700 = vpop.f32.mrf.mxu0
  %v701 = vadd.f32 %v688, %v700
  %v702 = vpop.f32.mrf.mxu0
  %703 = vdwg.mxu0
  %704 = vmatpush.bf16.msra.mxu0 %v542
  %705 = vmatpush.bf16.msra.mxu0 %v541
  %706 = vmatpush.bf16.msra.mxu0 %v540
  %707 = vmatpush.bf16.msra.mxu0 %v539
  %708 = vmatpush.bf16.msra.mxu0 %v538
  %709 = vmatpush.bf16.msra.mxu0 %v537
  %710 = vmatpush.bf16.msra.mxu0 %v536
  %711 = vmatpush.bf16.msra.mxu0 %v535
  %712 = vmatmul.bf16.gmra.mxu0 %v194
  %v713 = vpop.f32.mrf.mxu0
  %v714 = vadd.f32 %v701, %v713
  %v715 = vpop.f32.mrf.mxu0
  %716 = vdwg.mxu0
  %717 = vmatpush.bf16.msra.mxu0 %v550
  %718 = vmatpush.bf16.msra.mxu0 %v549
  %719 = vmatpush.bf16.msra.mxu0 %v548
  %720 = vmatpush.bf16.msra.mxu0 %v547
  %721 = vmatpush.bf16.msra.mxu0 %v546
  %722 = vmatpush.bf16.msra.mxu0 %v545
  %723 = vmatpush.bf16.msra.mxu0 %v544
  %724 = vmatpush.bf16.msra.mxu0 %v543
  %725 = vmatmul.bf16.gmra.mxu0 %v195
  %v726 = vpop.f32.mrf.mxu0
  %v727 = vadd.f32 %v714, %v726
  %v728 = vpop.f32.mrf.mxu0
  %729 = vdwg.mxu0
  %730 = vmatpush.bf16.msra.mxu0 %v558
  %731 = vmatpush.bf16.msra.mxu0 %v557
  %732 = vmatpush.bf16.msra.mxu0 %v556
  %733 = vmatpush.bf16.msra.mxu0 %v555
  %734 = vmatpush.bf16.msra.mxu0 %v554
  %735 = vmatpush.bf16.msra.mxu0 %v553
  %736 = vmatpush.bf16.msra.mxu0 %v552
  %737 = vmatpush.bf16.msra.mxu0 %v551
  %738 = vmatmul.bf16.gmra.mxu0 %v196
  %v739 = vpop.f32.mrf.mxu0
  %v740 = vadd.f32 %v727, %v739
  %v741 = vpop.f32.mrf.mxu0
  %742 = vdwg.mxu0
  %743 = vmatpush.bf16.msra.mxu0 %v566
  %744 = vmatpush.bf16.msra.mxu0 %v565
  %745 = vmatpush.bf16.msra.mxu0 %v564
  %746 = vmatpush.bf16.msra.mxu0 %v563
  %747 = vmatpush.bf16.msra.mxu0 %v562
  %748 = vmatpush.bf16.msra.mxu0 %v561
  %749 = vmatpush.bf16.msra.mxu0 %v560
  %750 = vmatpush.bf16.msra.mxu0 %v559
  %751 = vmatmul.bf16.gmra.mxu0 %v197
  %v752 = vpop.f32.mrf.mxu0
  %v753 = vadd.f32 %v740, %v752
  %v754 = vpop.f32.mrf.mxu0
  %755 = vdwg.mxu0
  %v756 = vmax.f32 %v753, 0.0
  %v757 = vpack.c.bf16 %v756, %v756
  %758 = vst [vmem:[%s5] sm:$0xf] %v757
  %v759 = vld [vmem:[%s3] sm:$0xf]
  %v760 = vld [vmem:[%s3 + $0x4] sm:$0xf]
  %v761 = vld [vmem:[%s3 + $0x8] sm:$0xf]
  %v762 = vld [vmem:[%s3 + $0xc] sm:$0xf]
  %v763 = vld [vmem:[%s3 + $0x10] sm:$0xf]
  %v764 = vld [vmem:[%s3 + $0x14] sm:$0xf]
  %v765 = vld [vmem:[%s3 + $0x18] sm:$0xf]
  %v766 = vld [vmem:[%s3 + $0x1c] sm:$0xf]
  %v767 = vld [vmem:[%s3 + $0x20] sm:$0xf]
  %v768 = vld [vmem:[%s3 + $0x24] sm:$0xf]
  %v769 = vld [vmem:[%s3 + $0x28] sm:$0xf]
  %v770 = vld [vmem:[%s3 + $0x2c] sm:$0xf]
  %v771 = vld [vmem:[%s3 + $0x30] sm:$0xf]
  %v772 = vld [vmem:[%s3 + $0x34] sm:$0xf]
  %v773 = vld [vmem:[%s3 + $0x38] sm:$0xf]
  %v774 = vld [vmem:[%s3 + $0x3c] sm:$0xf]
  %v775 = vld [vmem:[%s4] sm:$0x1]
  %v777 = vperm.slane %v775, 0
  %v795 = vunpack.c.l.b16 %v759
  %v796 = vunpack.c.l.b16 %v760
  %v797 = vunpack.c.l.b16 %v761
  %v798 = vunpack.c.l.b16 %v762
  %v799 = vunpack.c.l.b16 %v763
  %v800 = vunpack.c.l.b16 %v764
  %v801 = vunpack.c.l.b16 %v765
  %v802 = vunpack.c.l.b16 %v766
  %v803 = vunpack.c.l.b16 %v767
  %v804 = vunpack.c.l.b16 %v768
  %v805 = vunpack.c.l.b16 %v769
  %v806 = vunpack.c.l.b16 %v770
  %v807 = vunpack.c.l.b16 %v771
  %v808 = vunpack.c.l.b16 %v772
  %v809 = vunpack.c.l.b16 %v773
  %v810 = vunpack.c.l.b16 %v774
  %v811 = vpack.c.b16 %v796, %v795
  %v812 = vpack.c.b16 %v798, %v797
  %v813 = vpack.c.b16 %v800, %v799
  %v814 = vpack.c.b16 %v802, %v801
  %v815 = vpack.c.b16 %v804, %v803
  %v816 = vpack.c.b16 %v806, %v805
  %v817 = vpack.c.b16 %v808, %v807
  %v818 = vpack.c.b16 %v810, %v809
  %827 = vmatpush.bf16.msra.mxu0 %v818
  %828 = vmatpush.bf16.msra.mxu0 %v817
  %829 = vmatpush.bf16.msra.mxu0 %v816
  %830 = vmatpush.bf16.msra.mxu0 %v815
  %831 = vmatpush.bf16.msra.mxu0 %v814
  %832 = vmatpush.bf16.msra.mxu0 %v813
  %833 = vmatpush.bf16.msra.mxu0 %v812
  %834 = vmatpush.bf16.msra.mxu0 %v811
  %835 = vmatmul.bf16.gmra.mxu0 %v24
  %v836 = vpop.f32.mrf.mxu0
  %v837 = vadd.f32 %v777, %v836
  %v838 = vpop.f32.mrf.mxu0
  %839 = vdwg.mxu0
  %v840 = vpack.c.bf16 %v837, %v837
  %841 = vst [vmem:[%s6] sm:$0xf] %v840
  // Predicated region
  $region22: #{glimpse_network_forward.17} parent=0 // pred_check
    _
  $region23: #{glimpse_network_forward.17} parent=0 // pred_check_branch
    %843 = sbr.rel (0) target = $region25
  $region24: #{glimpse_network_forward.17} parent=0 // pred_region
    _
  $region25: #{glimpse_network_forward.17} parent=0 // pred_fallthru
    _
  // Predicated region
  $region26: #{glimpse_network_forward.17} parent=0 // pred_check
    _
  $region27: #{glimpse_network_forward.17} parent=0 // pred_check_branch
    %845 = sbr.rel (0) target = $region29
  $region28: #{glimpse_network_forward.17} parent=0 // pred_region
    _
  $region29: #{glimpse_network_forward.17} parent=0 // pred_fallthru
    _
  // Predicated region
  $region30: #{glimpse_network_forward.17} parent=0 // pred_check
    _
  $region31: #{glimpse_network_forward.17} parent=0 // pred_check_branch
    %847 = sbr.rel (0) target = $region33
  $region32: #{glimpse_network_forward.17} parent=0 // pred_region
    _
  $region33: #{glimpse_network_forward.17} parent=0 // pred_fallthru
    _
  // Predicated region
  $region34: #{glimpse_network_forward.17} parent=0 // pred_check
    _
  $region35: #{glimpse_network_forward.17} parent=0 // pred_check_branch
    %849 = sbr.rel (0) target = $region37
  $region36: #{glimpse_network_forward.17} parent=0 // pred_region
    _
  $region37: #{glimpse_network_forward.17} parent=0 // pred_fallthru
    _

// kernel: glimpse_network_forward.19
$region0: #{glimpse_network_forward.19}
  #allocation0 [shape = 'u32[]', space=smem, size = 0x4, offset = 0x4, fixed_abs, tag = 'smem constant byte address 0x4 - core index']
  #allocation1 [shape = 'u32[72,128]{1,0:T(1,128)}', space=vmem, size = 0x9000, scoped, tag = 'internal scratch']
  %s0 = inlined_call_operand.vmem [shape: bf16[8,1152], index: 0, kind: input, shape index: {}]
  %s1 = inlined_call_operand.vmem [shape: bf16[1152,128], index: 1, kind: input, shape index: {}]
  %s2 = inlined_call_operand.vmem [shape: f32[1,128], index: 2, kind: input, shape index: {}]
  %s3 = inlined_call_operand.vmem [shape: bf16[8,128], index: 3, kind: output, shape index: {}]
  %s4 = sld [smem:[#allocation0]]
  $region22: #{glimpse_network_forward.19} parent=0
    _
  %s6 = ssub.s32 1, %s4
  %s7 = scalar_select 0, %s6, %s4
  // Predicated region
  $region2: #{glimpse_network_forward.19} parent=0 // pred_check
    _
  $region3: #{glimpse_network_forward.19} parent=0 // pred_check_branch
    %9 = sbr.rel (0) target = $region5
  $region4: #{glimpse_network_forward.19} parent=0 // pred_region
    _
  $region5: #{glimpse_network_forward.19} parent=0 // pred_fallthru
    _
  // Predicated region
  $region6: #{glimpse_network_forward.19} parent=0 // pred_check
    _
  $region7: #{glimpse_network_forward.19} parent=0 // pred_check_branch
    %11 = sbr.rel (0) target = $region9
  $region8: #{glimpse_network_forward.19} parent=0 // pred_region
    _
  $region9: #{glimpse_network_forward.19} parent=0 // pred_fallthru
    _
  // Predicated region
  $region10: #{glimpse_network_forward.19} parent=0 // pred_check
    _
  $region11: #{glimpse_network_forward.19} parent=0 // pred_check_branch
    %13 = sbr.rel (0) target = $region13
  $region12: #{glimpse_network_forward.19} parent=0 // pred_region
    _
  $region13: #{glimpse_network_forward.19} parent=0 // pred_fallthru
    _
  %v14 = vld [vmem:[%s0] sm:$0xff]
  %v15 = vld [vmem:[%s0 + $0x8] sm:$0xff]
  %v16 = vld [vmem:[%s0 + $0x10] sm:$0xff]
  %v17 = vld [vmem:[%s0 + $0x18] sm:$0xff]
  %v18 = vld [vmem:[%s0 + $0x20] sm:$0xf]
  %v19 = vld [vmem:[%s1] sm:$0xf]
  %v20 = vld [vmem:[%s1 + $0x4] sm:$0xf]
  %v21 = vld [vmem:[%s1 + $0x8] sm:$0xf]
  %v22 = vld [vmem:[%s1 + $0xc] sm:$0xf]
  %v23 = vld [vmem:[%s1 + $0x10] sm:$0xf]
  %v24 = vld [vmem:[%s1 + $0x14] sm:$0xf]
  %v25 = vld [vmem:[%s1 + $0x18] sm:$0xf]
  %v26 = vld [vmem:[%s1 + $0x1c] sm:$0xf]
  %v27 = vld [vmem:[%s1 + $0x20] sm:$0xf]
  %v28 = vld [vmem:[%s1 + $0x24] sm:$0xf]
  %v29 = vld [vmem:[%s1 + $0x28] sm:$0xf]
  %v30 = vld [vmem:[%s1 + $0x2c] sm:$0xf]
  %v31 = vld [vmem:[%s1 + $0x30] sm:$0xf]
  %v32 = vld [vmem:[%s1 + $0x34] sm:$0xf]
  %v33 = vld [vmem:[%s1 + $0x38] sm:$0xf]
  %v34 = vld [vmem:[%s1 + $0x3c] sm:$0xf]
  %v35 = vld [vmem:[%s1 + $0x40] sm:$0xf]
  %v36 = vld [vmem:[%s1 + $0x44] sm:$0xf]
  %v37 = vld [vmem:[%s1 + $0x48] sm:$0xf]
  %v38 = vld [vmem:[%s1 + $0x4c] sm:$0xf]
  %v39 = vld [vmem:[%s1 + $0x50] sm:$0xf]
  %v40 = vld [vmem:[%s1 + $0x54] sm:$0xf]
  %v41 = vld [vmem:[%s1 + $0x58] sm:$0xf]
  %v42 = vld [vmem:[%s1 + $0x5c] sm:$0xf]
  %v43 = vld [vmem:[%s1 + $0x60] sm:$0xf]
  %v44 = vld [vmem:[%s1 + $0x64] sm:$0xf]
  %v45 = vld [vmem:[%s1 + $0x68] sm:$0xf]
  %v46 = vld [vmem:[%s1 + $0x6c] sm:$0xf]
  %v47 = vld [vmem:[%s1 + $0x70] sm:$0xf]
  %v48 = vld [vmem:[%s1 + $0x74] sm:$0xf]
  %v49 = vld [vmem:[%s1 + $0x78] sm:$0xf]
  %v50 = vld [vmem:[%s1 + $0x7c] sm:$0xf]
  %v51 = vld [vmem:[%s1 + $0x80] sm:$0xf]
  %v52 = vld [vmem:[%s1 + $0x84] sm:$0xf]
  %v53 = vld [vmem:[%s1 + $0x88] sm:$0xf]
  %v54 = vld [vmem:[%s1 + $0x8c] sm:$0xf]
  %v55 = vld [vmem:[%s1 + $0x90] sm:$0xf]
  %v56 = vld [vmem:[%s1 + $0x94] sm:$0xf]
  %v57 = vld [vmem:[%s1 + $0x98] sm:$0xf]
  %v58 = vld [vmem:[%s1 + $0x9c] sm:$0xf]
  %v59 = vld [vmem:[%s1 + $0xa0] sm:$0xf]
  %v60 = vld [vmem:[%s1 + $0xa4] sm:$0xf]
  %v61 = vld [vmem:[%s1 + $0xa8] sm:$0xf]
  %v62 = vld [vmem:[%s1 + $0xac] sm:$0xf]
  %v63 = vld [vmem:[%s1 + $0xb0] sm:$0xf]
  %v64 = vld [vmem:[%s1 + $0xb4] sm:$0xf]
  %v65 = vld [vmem:[%s1 + $0xb8] sm:$0xf]
  %v66 = vld [vmem:[%s1 + $0xbc] sm:$0xf]
  %v67 = vld [vmem:[%s1 + $0xc0] sm:$0xf]
  %v68 = vld [vmem:[%s1 + $0xc4] sm:$0xf]
  %v69 = vld [vmem:[%s1 + $0xc8] sm:$0xf]
  %v70 = vld [vmem:[%s1 + $0xcc] sm:$0xf]
  %v71 = vld [vmem:[%s1 + $0xd0] sm:$0xf]
  %v72 = vld [vmem:[%s1 + $0xd4] sm:$0xf]
  %v73 = vld [vmem:[%s1 + $0xd8] sm:$0xf]
  %v74 = vld [vmem:[%s1 + $0xdc] sm:$0xf]
  %v75 = vld [vmem:[%s1 + $0xe0] sm:$0xf]
  %v76 = vld [vmem:[%s1 + $0xe4] sm:$0xf]
  %v77 = vld [vmem:[%s1 + $0xe8] sm:$0xf]
  %v78 = vld [vmem:[%s1 + $0xec] sm:$0xf]
  %v79 = vld [vmem:[%s1 + $0xf0] sm:$0xf]
  %v80 = vld [vmem:[%s1 + $0xf4] sm:$0xf]
  %v81 = vld [vmem:[%s1 + $0xf8] sm:$0xf]
  %v82 = vld [vmem:[%s1 + $0xfc] sm:$0xf]
  %v83 = vld [vmem:[%s1 + $0x100] sm:$0xf]
  %v84 = vld [vmem:[%s1 + $0x104] sm:$0xf]
  %v85 = vld [vmem:[%s1 + $0x108] sm:$0xf]
  %v86 = vld [vmem:[%s1 + $0x10c] sm:$0xf]
  %v87 = vld [vmem:[%s1 + $0x110] sm:$0xf]
  %v88 = vld [vmem:[%s1 + $0x114] sm:$0xf]
  %v89 = vld [vmem:[%s1 + $0x118] sm:$0xf]
  %v90 = vld [vmem:[%s1 + $0x11c] sm:$0xf]
  %v91 = vld [vmem:[%s1 + $0x120] sm:$0xf]
  %v92 = vld [vmem:[%s1 + $0x124] sm:$0xf]
  %v93 = vld [vmem:[%s1 + $0x128] sm:$0xf]
  %v94 = vld [vmem:[%s1 + $0x12c] sm:$0xf]
  %v95 = vld [vmem:[%s1 + $0x130] sm:$0xf]
  %v96 = vld [vmem:[%s1 + $0x134] sm:$0xf]
  %v97 = vld [vmem:[%s1 + $0x138] sm:$0xf]
  %v98 = vld [vmem:[%s1 + $0x13c] sm:$0xf]
  %v99 = vld [vmem:[%s1 + $0x140] sm:$0xf]
  %v100 = vld [vmem:[%s1 + $0x144] sm:$0xf]
  %v101 = vld [vmem:[%s1 + $0x148] sm:$0xf]
  %v102 = vld [vmem:[%s1 + $0x14c] sm:$0xf]
  %v103 = vld [vmem:[%s1 + $0x150] sm:$0xf]
  %v104 = vld [vmem:[%s1 + $0x154] sm:$0xf]
  %v105 = vld [vmem:[%s1 + $0x158] sm:$0xf]
  %v106 = vld [vmem:[%s1 + $0x15c] sm:$0xf]
  %v107 = vld [vmem:[%s1 + $0x160] sm:$0xf]
  %v108 = vld [vmem:[%s1 + $0x164] sm:$0xf]
  %v109 = vld [vmem:[%s1 + $0x168] sm:$0xf]
  %v110 = vld [vmem:[%s1 + $0x16c] sm:$0xf]
  %v111 = vld [vmem:[%s1 + $0x170] sm:$0xf]
  %v112 = vld [vmem:[%s1 + $0x174] sm:$0xf]
  %v113 = vld [vmem:[%s1 + $0x178] sm:$0xf]
  %v114 = vld [vmem:[%s1 + $0x17c] sm:$0xf]
  %v115 = vld [vmem:[%s1 + $0x180] sm:$0xf]
  %v116 = vld [vmem:[%s1 + $0x184] sm:$0xf]
  %v117 = vld [vmem:[%s1 + $0x188] sm:$0xf]
  %v118 = vld [vmem:[%s1 + $0x18c] sm:$0xf]
  %v119 = vld [vmem:[%s1 + $0x190] sm:$0xf]
  %v120 = vld [vmem:[%s1 + $0x194] sm:$0xf]
  %v121 = vld [vmem:[%s1 + $0x198] sm:$0xf]
  %v122 = vld [vmem:[%s1 + $0x19c] sm:$0xf]
  %v123 = vld [vmem:[%s1 + $0x1a0] sm:$0xf]
  %v124 = vld [vmem:[%s1 + $0x1a4] sm:$0xf]
  %v125 = vld [vmem:[%s1 + $0x1a8] sm:$0xf]
  %v126 = vld [vmem:[%s1 + $0x1ac] sm:$0xf]
  %v127 = vld [vmem:[%s1 + $0x1b0] sm:$0xf]
  %v128 = vld [vmem:[%s1 + $0x1b4] sm:$0xf]
  %v129 = vld [vmem:[%s1 + $0x1b8] sm:$0xf]
  %v130 = vld [vmem:[%s1 + $0x1bc] sm:$0xf]
  %v131 = vld [vmem:[%s1 + $0x1c0] sm:$0xf]
  %v132 = vld [vmem:[%s1 + $0x1c4] sm:$0xf]
  %v133 = vld [vmem:[%s1 + $0x1c8] sm:$0xf]
  %v134 = vld [vmem:[%s1 + $0x1cc] sm:$0xf]
  %v135 = vld [vmem:[%s1 + $0x1d0] sm:$0xf]
  %v136 = vld [vmem:[%s1 + $0x1d4] sm:$0xf]
  %v137 = vld [vmem:[%s1 + $0x1d8] sm:$0xf]
  %v138 = vld [vmem:[%s1 + $0x1dc] sm:$0xf]
  %v139 = vld [vmem:[%s1 + $0x1e0] sm:$0xf]
  %v140 = vld [vmem:[%s1 + $0x1e4] sm:$0xf]
  %v141 = vld [vmem:[%s1 + $0x1e8] sm:$0xf]
  %v142 = vld [vmem:[%s1 + $0x1ec] sm:$0xf]
  %v143 = vld [vmem:[%s1 + $0x1f0] sm:$0xf]
  %v144 = vld [vmem:[%s1 + $0x1f4] sm:$0xf]
  %v145 = vld [vmem:[%s1 + $0x1f8] sm:$0xf]
  %v146 = vld [vmem:[%s1 + $0x1fc] sm:$0xf]
  %v147 = vld [vmem:[%s1 + $0x200] sm:$0xf]
  %v148 = vld [vmem:[%s1 + $0x204] sm:$0xf]
  %v149 = vld [vmem:[%s1 + $0x208] sm:$0xf]
  %v150 = vld [vmem:[%s1 + $0x20c] sm:$0xf]
  %v151 = vld [vmem:[%s1 + $0x210] sm:$0xf]
  %v152 = vld [vmem:[%s1 + $0x214] sm:$0xf]
  %v153 = vld [vmem:[%s1 + $0x218] sm:$0xf]
  %v154 = vld [vmem:[%s1 + $0x21c] sm:$0xf]
  %v155 = vld [vmem:[%s1 + $0x220] sm:$0xf]
  %v156 = vld [vmem:[%s1 + $0x224] sm:$0xf]
  %v157 = vld [vmem:[%s1 + $0x228] sm:$0xf]
  %v158 = vld [vmem:[%s1 + $0x22c] sm:$0xf]
  %v159 = vld [vmem:[%s1 + $0x230] sm:$0xf]
  %v160 = vld [vmem:[%s1 + $0x234] sm:$0xf]
  %v161 = vld [vmem:[%s1 + $0x238] sm:$0xf]
  %v162 = vld [vmem:[%s1 + $0x23c] sm:$0xf]
  %v163 = vld [vmem:[%s2] sm:$0x1]
  %v165 = vperm.slane %v163, 0
  %v172 = vunpack.c.l.b16 %v14
  %v173 = vunpack.c.h.b16 %v14
  %v174 = vunpack.c.l.b16 %v15
  %v175 = vunpack.c.h.b16 %v15
  %v176 = vunpack.c.l.b16 %v16
  %v177 = vunpack.c.h.b16 %v16
  %v178 = vunpack.c.l.b16 %v17
  %v179 = vunpack.c.h.b16 %v17
  %v180 = vunpack.c.l.b16 %v18
  %v181 = vpack.c.b16 %v172, %v172
  %v182 = vpack.c.b16 %v173, %v173
  %v183 = vpack.c.b16 %v174, %v174
  %v184 = vpack.c.b16 %v175, %v175
  %v185 = vpack.c.b16 %v176, %v176
  %v186 = vpack.c.b16 %v177, %v177
  %v187 = vpack.c.b16 %v178, %v178
  %v188 = vpack.c.b16 %v179, %v179
  %v189 = vpack.c.b16 %v180, %v180
  %v343 = vunpack.c.l.b16 %v19
  %v344 = vunpack.c.l.b16 %v20
  %v345 = vunpack.c.l.b16 %v21
  %v346 = vunpack.c.l.b16 %v22
  %v347 = vunpack.c.l.b16 %v23
  %v348 = vunpack.c.l.b16 %v24
  %v349 = vunpack.c.l.b16 %v25
  %v350 = vunpack.c.l.b16 %v26
  %v351 = vunpack.c.l.b16 %v27
  %v352 = vunpack.c.l.b16 %v28
  %v353 = vunpack.c.l.b16 %v29
  %v354 = vunpack.c.l.b16 %v30
  %v355 = vunpack.c.l.b16 %v31
  %v356 = vunpack.c.l.b16 %v32
  %v357 = vunpack.c.l.b16 %v33
  %v358 = vunpack.c.l.b16 %v34
  %v359 = vunpack.c.l.b16 %v35
  %v360 = vunpack.c.l.b16 %v36
  %v361 = vunpack.c.l.b16 %v37
  %v362 = vunpack.c.l.b16 %v38
  %v363 = vunpack.c.l.b16 %v39
  %v364 = vunpack.c.l.b16 %v40
  %v365 = vunpack.c.l.b16 %v41
  %v366 = vunpack.c.l.b16 %v42
  %v367 = vunpack.c.l.b16 %v43
  %v368 = vunpack.c.l.b16 %v44
  %v369 = vunpack.c.l.b16 %v45
  %v370 = vunpack.c.l.b16 %v46
  %v371 = vunpack.c.l.b16 %v47
  %v372 = vunpack.c.l.b16 %v48
  %v373 = vunpack.c.l.b16 %v49
  %v374 = vunpack.c.l.b16 %v50
  %v375 = vunpack.c.l.b16 %v51
  %v376 = vunpack.c.l.b16 %v52
  %v377 = vunpack.c.l.b16 %v53
  %v378 = vunpack.c.l.b16 %v54
  %v379 = vunpack.c.l.b16 %v55
  %v380 = vunpack.c.l.b16 %v56
  %v381 = vunpack.c.l.b16 %v57
  %v382 = vunpack.c.l.b16 %v58
  %v383 = vunpack.c.l.b16 %v59
  %v384 = vunpack.c.l.b16 %v60
  %v385 = vunpack.c.l.b16 %v61
  %v386 = vunpack.c.l.b16 %v62
  %v387 = vunpack.c.l.b16 %v63
  %v388 = vunpack.c.l.b16 %v64
  %v389 = vunpack.c.l.b16 %v65
  %v390 = vunpack.c.l.b16 %v66
  %v391 = vunpack.c.l.b16 %v67
  %v392 = vunpack.c.l.b16 %v68
  %v393 = vunpack.c.l.b16 %v69
  %v394 = vunpack.c.l.b16 %v70
  %v395 = vunpack.c.l.b16 %v71
  %v396 = vunpack.c.l.b16 %v72
  %v397 = vunpack.c.l.b16 %v73
  %v398 = vunpack.c.l.b16 %v74
  %v399 = vunpack.c.l.b16 %v75
  %v400 = vunpack.c.l.b16 %v76
  %v401 = vunpack.c.l.b16 %v77
  %v402 = vunpack.c.l.b16 %v78
  %v403 = vunpack.c.l.b16 %v79
  %v404 = vunpack.c.l.b16 %v80
  %v405 = vunpack.c.l.b16 %v81
  %v406 = vunpack.c.l.b16 %v82
  %v407 = vunpack.c.l.b16 %v83
  %v408 = vunpack.c.l.b16 %v84
  %v409 = vunpack.c.l.b16 %v85
  %v410 = vunpack.c.l.b16 %v86
  %v411 = vunpack.c.l.b16 %v87
  %v412 = vunpack.c.l.b16 %v88
  %v413 = vunpack.c.l.b16 %v89
  %v414 = vunpack.c.l.b16 %v90
  %v415 = vunpack.c.l.b16 %v91
  %v416 = vunpack.c.l.b16 %v92
  %v417 = vunpack.c.l.b16 %v93
  %v418 = vunpack.c.l.b16 %v94
  %v419 = vunpack.c.l.b16 %v95
  %v420 = vunpack.c.l.b16 %v96
  %v421 = vunpack.c.l.b16 %v97
  %v422 = vunpack.c.l.b16 %v98
  %v423 = vunpack.c.l.b16 %v99
  %v424 = vunpack.c.l.b16 %v100
  %v425 = vunpack.c.l.b16 %v101
  %v426 = vunpack.c.l.b16 %v102
  %v427 = vunpack.c.l.b16 %v103
  %v428 = vunpack.c.l.b16 %v104
  %v429 = vunpack.c.l.b16 %v105
  %v430 = vunpack.c.l.b16 %v106
  %v431 = vunpack.c.l.b16 %v107
  %v432 = vunpack.c.l.b16 %v108
  %v433 = vunpack.c.l.b16 %v109
  %v434 = vunpack.c.l.b16 %v110
  %v435 = vunpack.c.l.b16 %v111
  %v436 = vunpack.c.l.b16 %v112
  %v437 = vunpack.c.l.b16 %v113
  %v438 = vunpack.c.l.b16 %v114
  %v439 = vunpack.c.l.b16 %v115
  %v440 = vunpack.c.l.b16 %v116
  %v441 = vunpack.c.l.b16 %v117
  %v442 = vunpack.c.l.b16 %v118
  %v443 = vunpack.c.l.b16 %v119
  %v444 = vunpack.c.l.b16 %v120
  %v445 = vunpack.c.l.b16 %v121
  %v446 = vunpack.c.l.b16 %v122
  %v447 = vunpack.c.l.b16 %v123
  %v448 = vunpack.c.l.b16 %v124
  %v449 = vunpack.c.l.b16 %v125
  %v450 = vunpack.c.l.b16 %v126
  %v451 = vunpack.c.l.b16 %v127
  %v452 = vunpack.c.l.b16 %v128
  %v453 = vunpack.c.l.b16 %v129
  %v454 = vunpack.c.l.b16 %v130
  %v455 = vunpack.c.l.b16 %v131
  %v456 = vunpack.c.l.b16 %v132
  %v457 = vunpack.c.l.b16 %v133
  %v458 = vunpack.c.l.b16 %v134
  %v459 = vunpack.c.l.b16 %v135
  %v460 = vunpack.c.l.b16 %v136
  %v461 = vunpack.c.l.b16 %v137
  %v462 = vunpack.c.l.b16 %v138
  %v463 = vunpack.c.l.b16 %v139
  %v464 = vunpack.c.l.b16 %v140
  %v465 = vunpack.c.l.b16 %v141
  %v466 = vunpack.c.l.b16 %v142
  %v467 = vunpack.c.l.b16 %v143
  %v468 = vunpack.c.l.b16 %v144
  %v469 = vunpack.c.l.b16 %v145
  %v470 = vunpack.c.l.b16 %v146
  %v471 = vunpack.c.l.b16 %v147
  %v472 = vunpack.c.l.b16 %v148
  %v473 = vunpack.c.l.b16 %v149
  %v474 = vunpack.c.l.b16 %v150
  %v475 = vunpack.c.l.b16 %v151
  %v476 = vunpack.c.l.b16 %v152
  %v477 = vunpack.c.l.b16 %v153
  %v478 = vunpack.c.l.b16 %v154
  %v479 = vunpack.c.l.b16 %v155
  %v480 = vunpack.c.l.b16 %v156
  %v481 = vunpack.c.l.b16 %v157
  %v482 = vunpack.c.l.b16 %v158
  %v483 = vunpack.c.l.b16 %v159
  %v484 = vunpack.c.l.b16 %v160
  %v485 = vunpack.c.l.b16 %v161
  %v486 = vunpack.c.l.b16 %v162
  %v487 = vpack.c.b16 %v344, %v343
  %v488 = vpack.c.b16 %v346, %v345
  %v489 = vpack.c.b16 %v348, %v347
  %v490 = vpack.c.b16 %v350, %v349
  %v491 = vpack.c.b16 %v352, %v351
  %v492 = vpack.c.b16 %v354, %v353
  %v493 = vpack.c.b16 %v356, %v355
  %v494 = vpack.c.b16 %v358, %v357
  %v495 = vpack.c.b16 %v360, %v359
  %v496 = vpack.c.b16 %v362, %v361
  %v497 = vpack.c.b16 %v364, %v363
  %v498 = vpack.c.b16 %v366, %v365
  %v499 = vpack.c.b16 %v368, %v367
  %v500 = vpack.c.b16 %v370, %v369
  %v501 = vpack.c.b16 %v372, %v371
  %v502 = vpack.c.b16 %v374, %v373
  %v503 = vpack.c.b16 %v376, %v375
  %v504 = vpack.c.b16 %v378, %v377
  %v505 = vpack.c.b16 %v380, %v379
  %v506 = vpack.c.b16 %v382, %v381
  %v507 = vpack.c.b16 %v384, %v383
  %v508 = vpack.c.b16 %v386, %v385
  %v509 = vpack.c.b16 %v388, %v387
  %v510 = vpack.c.b16 %v390, %v389
  %v511 = vpack.c.b16 %v392, %v391
  %v512 = vpack.c.b16 %v394, %v393
  %v513 = vpack.c.b16 %v396, %v395
  %v514 = vpack.c.b16 %v398, %v397
  %v515 = vpack.c.b16 %v400, %v399
  %v516 = vpack.c.b16 %v402, %v401
  %v517 = vpack.c.b16 %v404, %v403
  %v518 = vpack.c.b16 %v406, %v405
  %v519 = vpack.c.b16 %v408, %v407
  %v520 = vpack.c.b16 %v410, %v409
  %v521 = vpack.c.b16 %v412, %v411
  %v522 = vpack.c.b16 %v414, %v413
  %v523 = vpack.c.b16 %v416, %v415
  %v524 = vpack.c.b16 %v418, %v417
  %v525 = vpack.c.b16 %v420, %v419
  %v526 = vpack.c.b16 %v422, %v421
  %v527 = vpack.c.b16 %v424, %v423
  %v528 = vpack.c.b16 %v426, %v425
  %v529 = vpack.c.b16 %v428, %v427
  %v530 = vpack.c.b16 %v430, %v429
  %v531 = vpack.c.b16 %v432, %v431
  %v532 = vpack.c.b16 %v434, %v433
  %v533 = vpack.c.b16 %v436, %v435
  %v534 = vpack.c.b16 %v438, %v437
  %v535 = vpack.c.b16 %v440, %v439
  %v536 = vpack.c.b16 %v442, %v441
  %v537 = vpack.c.b16 %v444, %v443
  %v538 = vpack.c.b16 %v446, %v445
  %v539 = vpack.c.b16 %v448, %v447
  %v540 = vpack.c.b16 %v450, %v449
  %v541 = vpack.c.b16 %v452, %v451
  %v542 = vpack.c.b16 %v454, %v453
  %v543 = vpack.c.b16 %v456, %v455
  %v544 = vpack.c.b16 %v458, %v457
  %v545 = vpack.c.b16 %v460, %v459
  %v546 = vpack.c.b16 %v462, %v461
  %v547 = vpack.c.b16 %v464, %v463
  %v548 = vpack.c.b16 %v466, %v465
  %v549 = vpack.c.b16 %v468, %v467
  %v550 = vpack.c.b16 %v470, %v469
  %v551 = vpack.c.b16 %v472, %v471
  %v552 = vpack.c.b16 %v474, %v473
  %v553 = vpack.c.b16 %v476, %v475
  %v554 = vpack.c.b16 %v478, %v477
  %v555 = vpack.c.b16 %v480, %v479
  %v556 = vpack.c.b16 %v482, %v481
  %v557 = vpack.c.b16 %v484, %v483
  %v558 = vpack.c.b16 %v486, %v485
  %631 = vmatpush.bf16.msra.mxu0 %v494
  %632 = vmatpush.bf16.msra.mxu0 %v493
  %633 = vmatpush.bf16.msra.mxu0 %v492
  %634 = vmatpush.bf16.msra.mxu0 %v491
  %635 = vmatpush.bf16.msra.mxu0 %v490
  %636 = vmatpush.bf16.msra.mxu0 %v489
  %637 = vmatpush.bf16.msra.mxu0 %v488
  %638 = vmatpush.bf16.msra.mxu0 %v487
  %639 = vmatmul.bf16.gmra.mxu0 %v181
  %v640 = vpop.f32.mrf.mxu0
  %v641 = vadd.f32 %v165, %v640
  %v642 = vpop.f32.mrf.mxu0
  %643 = vdwg.mxu0
  %644 = vmatpush.bf16.msra.mxu0 %v502
  %645 = vmatpush.bf16.msra.mxu0 %v501
  %646 = vmatpush.bf16.msra.mxu0 %v500
  %647 = vmatpush.bf16.msra.mxu0 %v499
  %648 = vmatpush.bf16.msra.mxu0 %v498
  %649 = vmatpush.bf16.msra.mxu0 %v497
  %650 = vmatpush.bf16.msra.mxu0 %v496
  %651 = vmatpush.bf16.msra.mxu0 %v495
  %652 = vmatmul.bf16.gmra.mxu0 %v182
  %v653 = vpop.f32.mrf.mxu0
  %v654 = vadd.f32 %v641, %v653
  %v655 = vpop.f32.mrf.mxu0
  %656 = vdwg.mxu0
  %657 = vmatpush.bf16.msra.mxu0 %v510
  %658 = vmatpush.bf16.msra.mxu0 %v509
  %659 = vmatpush.bf16.msra.mxu0 %v508
  %660 = vmatpush.bf16.msra.mxu0 %v507
  %661 = vmatpush.bf16.msra.mxu0 %v506
  %662 = vmatpush.bf16.msra.mxu0 %v505
  %663 = vmatpush.bf16.msra.mxu0 %v504
  %664 = vmatpush.bf16.msra.mxu0 %v503
  %665 = vmatmul.bf16.gmra.mxu0 %v183
  %v666 = vpop.f32.mrf.mxu0
  %v667 = vadd.f32 %v654, %v666
  %v668 = vpop.f32.mrf.mxu0
  %669 = vdwg.mxu0
  %670 = vmatpush.bf16.msra.mxu0 %v518
  %671 = vmatpush.bf16.msra.mxu0 %v517
  %672 = vmatpush.bf16.msra.mxu0 %v516
  %673 = vmatpush.bf16.msra.mxu0 %v515
  %674 = vmatpush.bf16.msra.mxu0 %v514
  %675 = vmatpush.bf16.msra.mxu0 %v513
  %676 = vmatpush.bf16.msra.mxu0 %v512
  %677 = vmatpush.bf16.msra.mxu0 %v511
  %678 = vmatmul.bf16.gmra.mxu0 %v184
  %v679 = vpop.f32.mrf.mxu0
  %v680 = vadd.f32 %v667, %v679
  %v681 = vpop.f32.mrf.mxu0
  %682 = vdwg.mxu0
  %683 = vmatpush.bf16.msra.mxu0 %v526
  %684 = vmatpush.bf16.msra.mxu0 %v525
  %685 = vmatpush.bf16.msra.mxu0 %v524
  %686 = vmatpush.bf16.msra.mxu0 %v523
  %687 = vmatpush.bf16.msra.mxu0 %v522
  %688 = vmatpush.bf16.msra.mxu0 %v521
  %689 = vmatpush.bf16.msra.mxu0 %v520
  %690 = vmatpush.bf16.msra.mxu0 %v519
  %691 = vmatmul.bf16.gmra.mxu0 %v185
  %v692 = vpop.f32.mrf.mxu0
  %v693 = vadd.f32 %v680, %v692
  %v694 = vpop.f32.mrf.mxu0
  %695 = vdwg.mxu0
  %696 = vmatpush.bf16.msra.mxu0 %v534
  %697 = vmatpush.bf16.msra.mxu0 %v533
  %698 = vmatpush.bf16.msra.mxu0 %v532
  %699 = vmatpush.bf16.msra.mxu0 %v531
  %700 = vmatpush.bf16.msra.mxu0 %v530
  %701 = vmatpush.bf16.msra.mxu0 %v529
  %702 = vmatpush.bf16.msra.mxu0 %v528
  %703 = vmatpush.bf16.msra.mxu0 %v527
  %704 = vmatmul.bf16.gmra.mxu0 %v186
  %v705 = vpop.f32.mrf.mxu0
  %v706 = vadd.f32 %v693, %v705
  %v707 = vpop.f32.mrf.mxu0
  %708 = vdwg.mxu0
  %709 = vmatpush.bf16.msra.mxu0 %v542
  %710 = vmatpush.bf16.msra.mxu0 %v541
  %711 = vmatpush.bf16.msra.mxu0 %v540
  %712 = vmatpush.bf16.msra.mxu0 %v539
  %713 = vmatpush.bf16.msra.mxu0 %v538
  %714 = vmatpush.bf16.msra.mxu0 %v537
  %715 = vmatpush.bf16.msra.mxu0 %v536
  %716 = vmatpush.bf16.msra.mxu0 %v535
  %717 = vmatmul.bf16.gmra.mxu0 %v187
  %v718 = vpop.f32.mrf.mxu0
  %v719 = vadd.f32 %v706, %v718
  %v720 = vpop.f32.mrf.mxu0
  %721 = vdwg.mxu0
  %722 = vmatpush.bf16.msra.mxu0 %v550
  %723 = vmatpush.bf16.msra.mxu0 %v549
  %724 = vmatpush.bf16.msra.mxu0 %v548
  %725 = vmatpush.bf16.msra.mxu0 %v547
  %726 = vmatpush.bf16.msra.mxu0 %v546
  %727 = vmatpush.bf16.msra.mxu0 %v545
  %728 = vmatpush.bf16.msra.mxu0 %v544
  %729 = vmatpush.bf16.msra.mxu0 %v543
  %730 = vmatmul.bf16.gmra.mxu0 %v188
  %v731 = vpop.f32.mrf.mxu0
  %v732 = vadd.f32 %v719, %v731
  %v733 = vpop.f32.mrf.mxu0
  %734 = vdwg.mxu0
  %735 = vmatpush.bf16.msra.mxu0 %v558
  %736 = vmatpush.bf16.msra.mxu0 %v557
  %737 = vmatpush.bf16.msra.mxu0 %v556
  %738 = vmatpush.bf16.msra.mxu0 %v555
  %739 = vmatpush.bf16.msra.mxu0 %v554
  %740 = vmatpush.bf16.msra.mxu0 %v553
  %741 = vmatpush.bf16.msra.mxu0 %v552
  %742 = vmatpush.bf16.msra.mxu0 %v551
  %743 = vmatmul.bf16.gmra.mxu0 %v189
  %v744 = vpop.f32.mrf.mxu0
  %v745 = vadd.f32 %v732, %v744
  %v746 = vpop.f32.mrf.mxu0
  %747 = vdwg.mxu0
  %v748 = vmax.f32 %v745, 0.0
  %v749 = vpack.c.bf16 %v748, %v748
  %750 = vst [vmem:[%s3] sm:$0xf] %v749
  // Predicated region
  $region14: #{glimpse_network_forward.19} parent=0 // pred_check
    _
  $region15: #{glimpse_network_forward.19} parent=0 // pred_check_branch
    %752 = sbr.rel (0) target = $region17
  $region16: #{glimpse_network_forward.19} parent=0 // pred_region
    _
  $region17: #{glimpse_network_forward.19} parent=0 // pred_fallthru
    _
  // Predicated region
  $region18: #{glimpse_network_forward.19} parent=0 // pred_check
    _
  $region19: #{glimpse_network_forward.19} parent=0 // pred_check_branch
    %754 = sbr.rel (0) target = $region21
  $region20: #{glimpse_network_forward.19} parent=0 // pred_region
    _
  $region21: #{glimpse_network_forward.19} parent=0 // pred_fallthru
    _

// kernel: glimpse_network_forward.21
$region0: #{glimpse_network_forward.21}
  #allocation0 [shape = 'u32[]', space=smem, size = 0x4, offset = 0x4, fixed_abs, tag = 'smem constant byte address 0x4 - core index']
  #allocation1 [shape = 'u32[72,128]{1,0:T(1,128)}', space=vmem, size = 0x9000, scoped, tag = 'internal scratch']
  %s0 = inlined_call_operand.vmem [shape: bf16[8,128], index: 0, kind: input, shape index: {}]
  %s1 = inlined_call_operand.vmem [shape: f32[8,128], index: 1, kind: input, shape index: {}]
  %s2 = inlined_call_operand.vmem [shape: f32[128,128], index: 2, kind: input, shape index: {}]
  %s3 = inlined_call_operand.vmem [shape: f32[128,128], index: 3, kind: input, shape index: {}]
  %s4 = inlined_call_operand.vmem [shape: f32[1,128], index: 4, kind: input, shape index: {}]
  %s5 = inlined_call_operand.vmem [shape: f32[128,128], index: 5, kind: input, shape index: {}]
  %s6 = inlined_call_operand.vmem [shape: f32[1,128], index: 6, kind: input, shape index: {}]
  %s7 = inlined_call_operand.vmem [shape: f32[128,128], index: 7, kind: input, shape index: {}]
  %s8 = inlined_call_operand.vmem [shape: f32[1,128], index: 8, kind: input, shape index: {}]
  %s9 = inlined_call_operand.vmem [shape: f32[128,128], index: 9, kind: input, shape index: {}]
  %s10 = inlined_call_operand.vmem [shape: f32[1,128], index: 10, kind: input, shape index: {}]
  %s11 = inlined_call_operand.vmem [shape: f32[8,128], index: 11, kind: output, shape index: {}]
  %s12 = sld [smem:[#allocation0]]
  $region54: #{glimpse_network_forward.21} parent=0
    _
  %s14 = ssub.s32 1, %s12
  %s15 = scalar_select 0, %s14, %s12
  // Predicated region
  $region2: #{glimpse_network_forward.21} parent=0 // pred_check
    _
  $region3: #{glimpse_network_forward.21} parent=0 // pred_check_branch
    %17 = sbr.rel (0) target = $region5
  $region4: #{glimpse_network_forward.21} parent=0 // pred_region
    _
  $region5: #{glimpse_network_forward.21} parent=0 // pred_fallthru
    _
  // Predicated region
  $region6: #{glimpse_network_forward.21} parent=0 // pred_check
    _
  $region7: #{glimpse_network_forward.21} parent=0 // pred_check_branch
    %19 = sbr.rel (0) target = $region9
  $region8: #{glimpse_network_forward.21} parent=0 // pred_region
    _
  $region9: #{glimpse_network_forward.21} parent=0 // pred_fallthru
    _
  // Predicated region
  $region10: #{glimpse_network_forward.21} parent=0 // pred_check
    _
  $region11: #{glimpse_network_forward.21} parent=0 // pred_check_branch
    %21 = sbr.rel (0) target = $region13
  $region12: #{glimpse_network_forward.21} parent=0 // pred_region
    _
  $region13: #{glimpse_network_forward.21} parent=0 // pred_fallthru
    _
  // Predicated region
  $region14: #{glimpse_network_forward.21} parent=0 // pred_check
    _
  $region15: #{glimpse_network_forward.21} parent=0 // pred_check_branch
    %23 = sbr.rel (0) target = $region17
  $region16: #{glimpse_network_forward.21} parent=0 // pred_region
    _
  $region17: #{glimpse_network_forward.21} parent=0 // pred_fallthru
    _
  // Predicated region
  $region18: #{glimpse_network_forward.21} parent=0 // pred_check
    _
  $region19: #{glimpse_network_forward.21} parent=0 // pred_check_branch
    %25 = sbr.rel (0) target = $region21
  $region20: #{glimpse_network_forward.21} parent=0 // pred_region
    _
  $region21: #{glimpse_network_forward.21} parent=0 // pred_fallthru
    _
  // Predicated region
  $region22: #{glimpse_network_forward.21} parent=0 // pred_check
    _
  $region23: #{glimpse_network_forward.21} parent=0 // pred_check_branch
    %27 = sbr.rel (0) target = $region25
  $region24: #{glimpse_network_forward.21} parent=0 // pred_region
    _
  $region25: #{glimpse_network_forward.21} parent=0 // pred_fallthru
    _
  // Predicated region
  $region26: #{glimpse_network_forward.21} parent=0 // pred_check
    _
  $region27: #{glimpse_network_forward.21} parent=0 // pred_check_branch
    %29 = sbr.rel (0) target = $region29
  $region28: #{glimpse_network_forward.21} parent=0 // pred_region
    _
  $region29: #{glimpse_network_forward.21} parent=0 // pred_fallthru
    _
  // Predicated region
  $region30: #{glimpse_network_forward.21} parent=0 // pred_check
    _
  $region31: #{glimpse_network_forward.21} parent=0 // pred_check_branch
    %31 = sbr.rel (0) target = $region33
  $region32: #{glimpse_network_forward.21} parent=0 // pred_region
    _
  $region33: #{glimpse_network_forward.21} parent=0 // pred_fallthru
    _
  // Predicated region
  $region34: #{glimpse_network_forward.21} parent=0 // pred_check
    _
  $region35: #{glimpse_network_forward.21} parent=0 // pred_check_branch
    %33 = sbr.rel (0) target = $region37
  $region36: #{glimpse_network_forward.21} parent=0 // pred_region
    _
  $region37: #{glimpse_network_forward.21} parent=0 // pred_fallthru
    _
  // Predicated region
  $region38: #{glimpse_network_forward.21} parent=0 // pred_check
    _
  $region39: #{glimpse_network_forward.21} parent=0 // pred_check_branch
    %35 = sbr.rel (0) target = $region41
  $region40: #{glimpse_network_forward.21} parent=0 // pred_region
    _
  $region41: #{glimpse_network_forward.21} parent=0 // pred_fallthru
    _
  // Predicated region
  $region42: #{glimpse_network_forward.21} parent=0 // pred_check
    _
  $region43: #{glimpse_network_forward.21} parent=0 // pred_check_branch
    %37 = sbr.rel (0) target = $region45
  $region44: #{glimpse_network_forward.21} parent=0 // pred_region
    _
  $region45: #{glimpse_network_forward.21} parent=0 // pred_fallthru
    _
  %v38 = vld [vmem:[%s0] sm:$0xf]
  %v39 = vunpack.c.l.bf16 %v38
  %v40 = vlaneseq
  %v41 = vshrl.u32 %v40, 7
  %vm42 = vcmp.lt.s32.totalorder %v41, 4
  %v43 = vsel %vm42, %v39, 0.0
  %v44 = vrot.slane %v43, 4
  %v45 = vadd.f32 %v43, %v44
  %v46 = vrot.slane %v45, 2
  %v47 = vadd.f32 %v45, %v46
  %v48 = vrot.slane %v47, 1
  %v49 = vadd.f32 %v47, %v48
  %v50 = vmul.f32 %v49, 0.25
  %vm51 = vcmp.ge.s32.totalorder %v41, 4
  %vm52 = vcmp.lt.s32.totalorder %v41, 8
  %vm53 = vmand %vm51, %vm52
  %v54 = vsel %vm53, %v39, 0.0
  %v55 = vrot.slane %v54, 4
  %v56 = vadd.f32 %v54, %v55
  %v57 = vrot.slane %v56, 2
  %v58 = vadd.f32 %v56, %v57
  %v59 = vrot.slane %v58, 1
  %v60 = vadd.f32 %v58, %v59
  %v61 = vmul.f32 %v60, 0.25
  %v62 = vld [vmem:[%s2] sm:$0xff]
  %v63 = vld [vmem:[%s2 + $0x8] sm:$0xff]
  %v64 = vld [vmem:[%s2 + $0x10] sm:$0xff]
  %v65 = vld [vmem:[%s2 + $0x18] sm:$0xff]
  %v66 = vld [vmem:[%s2 + $0x20] sm:$0xff]
  %v67 = vld [vmem:[%s2 + $0x28] sm:$0xff]
  %v68 = vld [vmem:[%s2 + $0x30] sm:$0xff]
  %v69 = vld [vmem:[%s2 + $0x38] sm:$0xff]
  %v70 = vld [vmem:[%s2 + $0x40] sm:$0xff]
  %v71 = vld [vmem:[%s2 + $0x48] sm:$0xff]
  %v72 = vld [vmem:[%s2 + $0x50] sm:$0xff]
  %v73 = vld [vmem:[%s2 + $0x58] sm:$0xff]
  %v74 = vld [vmem:[%s2 + $0x60] sm:$0xff]
  %v75 = vld [vmem:[%s2 + $0x68] sm:$0xff]
  %v76 = vld [vmem:[%s2 + $0x70] sm:$0xff]
  %v77 = vld [vmem:[%s2 + $0x78] sm:$0xff]
  %v78 = vld [vmem:[%s3] sm:$0xff]
  %v79 = vld [vmem:[%s3 + $0x8] sm:$0xff]
  %v80 = vld [vmem:[%s3 + $0x10] sm:$0xff]
  %v81 = vld [vmem:[%s3 + $0x18] sm:$0xff]
  %v82 = vld [vmem:[%s3 + $0x20] sm:$0xff]
  %v83 = vld [vmem:[%s3 + $0x28] sm:$0xff]
  %v84 = vld [vmem:[%s3 + $0x30] sm:$0xff]
  %v85 = vld [vmem:[%s3 + $0x38] sm:$0xff]
  %v86 = vld [vmem:[%s3 + $0x40] sm:$0xff]
  %v87 = vld [vmem:[%s3 + $0x48] sm:$0xff]
  %v88 = vld [vmem:[%s3 + $0x50] sm:$0xff]
  %v89 = vld [vmem:[%s3 + $0x58] sm:$0xff]
  %v90 = vld [vmem:[%s3 + $0x60] sm:$0xff]
  %v91 = vld [vmem:[%s3 + $0x68] sm:$0xff]
  %v92 = vld [vmem:[%s3 + $0x70] sm:$0xff]
  %v93 = vld [vmem:[%s3 + $0x78] sm:$0xff]
  %94 = vmatpush.msra.mxu0 %v93
  %95 = vmatpush.msra.mxu0 %v92
  %96 = vmatpush.msra.mxu0 %v91
  %97 = vmatpush.msra.mxu0 %v90
  %98 = vmatpush.msra.mxu0 %v89
  %99 = vmatpush.msra.mxu0 %v88
  %100 = vmatpush.msra.mxu0 %v87
  %101 = vmatpush.msra.mxu0 %v86
  %102 = vmatpush.msra.mxu0 %v85
  %103 = vmatpush.msra.mxu0 %v84
  %104 = vmatpush.msra.mxu0 %v83
  %105 = vmatpush.msra.mxu0 %v82
  %106 = vmatpush.msra.mxu0 %v81
  %107 = vmatpush.msra.mxu0 %v80
  %108 = vmatpush.msra.mxu0 %v79
  %109 = vmatpush.msra.mxu0 %v78
  %110 = vmatmul.f32.gmra.mxu0 %v61
  %v111 = vpop.f32.mrf.mxu0
  %v112 = vadd.f32 0.0, %v111
  %113 = vdwg.mxu0
  %114 = vmatpush.msra.mxu0 %v77
  %115 = vmatpush.msra.mxu0 %v76
  %116 = vmatpush.msra.mxu0 %v75
  %117 = vmatpush.msra.mxu0 %v74
  %118 = vmatpush.msra.mxu0 %v73
  %119 = vmatpush.msra.mxu0 %v72
  %120 = vmatpush.msra.mxu0 %v71
  %121 = vmatpush.msra.mxu0 %v70
  %122 = vmatpush.msra.mxu0 %v69
  %123 = vmatpush.msra.mxu0 %v68
  %124 = vmatpush.msra.mxu0 %v67
  %125 = vmatpush.msra.mxu0 %v66
  %126 = vmatpush.msra.mxu0 %v65
  %127 = vmatpush.msra.mxu0 %v64
  %128 = vmatpush.msra.mxu0 %v63
  %129 = vmatpush.msra.mxu0 %v62
  %130 = vmatmul.f32.gmra.mxu0 %v50
  %v131 = vpop.f32.mrf.mxu0
  %v132 = vadd.f32 %v112, %v131
  %133 = vdwg.mxu0
  %v134 = vld [vmem:[%s4] sm:$0x1]
  %v136 = vperm.slane %v134, 0
  %v138 = vadd.f32 %v132, %v136
  %v139 = vmax.f32 %v138, 0.0
  %v140 = vld [vmem:[%s1] sm:$0xff]
  %v141 = vld [vmem:[%s5] sm:$0xff]
  %v142 = vld [vmem:[%s5 + $0x8] sm:$0xff]
  %v143 = vld [vmem:[%s5 + $0x10] sm:$0xff]
  %v144 = vld [vmem:[%s5 + $0x18] sm:$0xff]
  %v145 = vld [vmem:[%s5 + $0x20] sm:$0xff]
  %v146 = vld [vmem:[%s5 + $0x28] sm:$0xff]
  %v147 = vld [vmem:[%s5 + $0x30] sm:$0xff]
  %v148 = vld [vmem:[%s5 + $0x38] sm:$0xff]
  %v149 = vld [vmem:[%s5 + $0x40] sm:$0xff]
  %v150 = vld [vmem:[%s5 + $0x48] sm:$0xff]
  %v151 = vld [vmem:[%s5 + $0x50] sm:$0xff]
  %v152 = vld [vmem:[%s5 + $0x58] sm:$0xff]
  %v153 = vld [vmem:[%s5 + $0x60] sm:$0xff]
  %v154 = vld [vmem:[%s5 + $0x68] sm:$0xff]
  %v155 = vld [vmem:[%s5 + $0x70] sm:$0xff]
  %v156 = vld [vmem:[%s5 + $0x78] sm:$0xff]
  %v157 = vld [vmem:[%s6] sm:$0x1]
  %v159 = vperm.slane %v157, 0
  %161 = vmatpush.msra.mxu0 %v156
  %162 = vmatpush.msra.mxu0 %v155
  %163 = vmatpush.msra.mxu0 %v154
  %164 = vmatpush.msra.mxu0 %v153
  %165 = vmatpush.msra.mxu0 %v152
  %166 = vmatpush.msra.mxu0 %v151
  %167 = vmatpush.msra.mxu0 %v150
  %168 = vmatpush.msra.mxu0 %v149
  %169 = vmatpush.msra.mxu0 %v148
  %170 = vmatpush.msra.mxu0 %v147
  %171 = vmatpush.msra.mxu0 %v146
  %172 = vmatpush.msra.mxu0 %v145
  %173 = vmatpush.msra.mxu0 %v144
  %174 = vmatpush.msra.mxu0 %v143
  %175 = vmatpush.msra.mxu0 %v142
  %176 = vmatpush.msra.mxu0 %v141
  %177 = vmatmul.f32.gmra.mxu0 %v140
  %v178 = vpop.f32.mrf.mxu0
  %v179 = vadd.f32 %v159, %v178
  %180 = vdwg.mxu0
  %v181 = vmax.f32 %v179, 0.0
  %v182 = vld [vmem:[%s7] sm:$0xff]
  %v183 = vld [vmem:[%s7 + $0x8] sm:$0xff]
  %v184 = vld [vmem:[%s7 + $0x10] sm:$0xff]
  %v185 = vld [vmem:[%s7 + $0x18] sm:$0xff]
  %v186 = vld [vmem:[%s7 + $0x20] sm:$0xff]
  %v187 = vld [vmem:[%s7 + $0x28] sm:$0xff]
  %v188 = vld [vmem:[%s7 + $0x30] sm:$0xff]
  %v189 = vld [vmem:[%s7 + $0x38] sm:$0xff]
  %v190 = vld [vmem:[%s7 + $0x40] sm:$0xff]
  %v191 = vld [vmem:[%s7 + $0x48] sm:$0xff]
  %v192 = vld [vmem:[%s7 + $0x50] sm:$0xff]
  %v193 = vld [vmem:[%s7 + $0x58] sm:$0xff]
  %v194 = vld [vmem:[%s7 + $0x60] sm:$0xff]
  %v195 = vld [vmem:[%s7 + $0x68] sm:$0xff]
  %v196 = vld [vmem:[%s7 + $0x70] sm:$0xff]
  %v197 = vld [vmem:[%s7 + $0x78] sm:$0xff]
  %v198 = vld [vmem:[%s8] sm:$0x1]
  %v200 = vperm.slane %v198, 0
  %202 = vmatpush.msra.mxu0 %v197
  %203 = vmatpush.msra.mxu0 %v196
  %204 = vmatpush.msra.mxu0 %v195
  %205 = vmatpush.msra.mxu0 %v194
  %206 = vmatpush.msra.mxu0 %v193
  %207 = vmatpush.msra.mxu0 %v192
  %208 = vmatpush.msra.mxu0 %v191
  %209 = vmatpush.msra.mxu0 %v190
  %210 = vmatpush.msra.mxu0 %v189
  %211 = vmatpush.msra.mxu0 %v188
  %212 = vmatpush.msra.mxu0 %v187
  %213 = vmatpush.msra.mxu0 %v186
  %214 = vmatpush.msra.mxu0 %v185
  %215 = vmatpush.msra.mxu0 %v184
  %216 = vmatpush.msra.mxu0 %v183
  %217 = vmatpush.msra.mxu0 %v182
  %218 = vmatmul.f32.gmra.mxu0 %v139
  %v219 = vpop.f32.mrf.mxu0
  %v220 = vadd.f32 %v200, %v219
  %221 = vdwg.mxu0
  %v222 = vld [vmem:[%s9] sm:$0xff]
  %v223 = vld [vmem:[%s9 + $0x8] sm:$0xff]
  %v224 = vld [vmem:[%s9 + $0x10] sm:$0xff]
  %v225 = vld [vmem:[%s9 + $0x18] sm:$0xff]
  %v226 = vld [vmem:[%s9 + $0x20] sm:$0xff]
  %v227 = vld [vmem:[%s9 + $0x28] sm:$0xff]
  %v228 = vld [vmem:[%s9 + $0x30] sm:$0xff]
  %v229 = vld [vmem:[%s9 + $0x38] sm:$0xff]
  %v230 = vld [vmem:[%s9 + $0x40] sm:$0xff]
  %v231 = vld [vmem:[%s9 + $0x48] sm:$0xff]
  %v232 = vld [vmem:[%s9 + $0x50] sm:$0xff]
  %v233 = vld [vmem:[%s9 + $0x58] sm:$0xff]
  %v234 = vld [vmem:[%s9 + $0x60] sm:$0xff]
  %v235 = vld [vmem:[%s9 + $0x68] sm:$0xff]
  %v236 = vld [vmem:[%s9 + $0x70] sm:$0xff]
  %v237 = vld [vmem:[%s9 + $0x78] sm:$0xff]
  %v238 = vld [vmem:[%s10] sm:$0x1]
  %v240 = vperm.slane %v238, 0
  %242 = vmatpush.msra.mxu0 %v237
  %243 = vmatpush.msra.mxu0 %v236
  %244 = vmatpush.msra.mxu0 %v235
  %245 = vmatpush.msra.mxu0 %v234
  %246 = vmatpush.msra.mxu0 %v233
  %247 = vmatpush.msra.mxu0 %v232
  %248 = vmatpush.msra.mxu0 %v231
  %249 = vmatpush.msra.mxu0 %v230
  %250 = vmatpush.msra.mxu0 %v229
  %251 = vmatpush.msra.mxu0 %v228
  %252 = vmatpush.msra.mxu0 %v227
  %253 = vmatpush.msra.mxu0 %v226
  %254 = vmatpush.msra.mxu0 %v225
  %255 = vmatpush.msra.mxu0 %v224
  %256 = vmatpush.msra.mxu0 %v223
  %257 = vmatpush.msra.mxu0 %v222
  %258 = vmatmul.f32.gmra.mxu0 %v181
  %v259 = vpop.f32.mrf.mxu0
  %v260 = vadd.f32 %v240, %v259
  %261 = vdwg.mxu0
  %v262 = vadd.f32 %v220, %v260
  %v263 = vmax.f32 %v262, 0.0
  %264 = vst [vmem:[%s11] sm:$0xff] %v263
  // Predicated region
  $region46: #{glimpse_network_forward.21} parent=0 // pred_check
    _
  $region47: #{glimpse_network_forward.21} parent=0 // pred_check_branch
    %266 = sbr.rel (0) target = $region49
  $region48: #{glimpse_network_forward.21} parent=0 // pred_region
    _
  $region49: #{glimpse_network_forward.21} parent=0 // pred_fallthru
    _
  // Predicated region
  $region50: #{glimpse_network_forward.21} parent=0 // pred_check
    _
  $region51: #{glimpse_network_forward.21} parent=0 // pred_check_branch
    %268 = sbr.rel (0) target = $region53
  $region52: #{glimpse_network_forward.21} parent=0 // pred_region
    _
  $region53: #{glimpse_network_forward.21} parent=0 // pred_fallthru
    _

</llo_original>
